<compile_context>
chip_gen: v5e
topology: v5e:2x2
jax: 0.10.0
libtpu: 0.0.40
codegen_flags: <defaults>
</compile_context>

<pallas_src>
import functools

import jax
import jax.numpy as jnp
from jax.experimental import pallas as pl
from jax.experimental.pallas import tpu as pltpu


def _pad_to(n, m):
    return ((n + m - 1) // m) * m


def _coords(i_float, extent):
    # align_corners=False pixel-center coordinates: (2*i + 1)/extent - 1
    return (2.0 * i_float + 1.0) / float(extent) - 1.0


def _floor_div(a, d):
    # Exact floor(a / d) for non-negative integer-valued float32 `a`.
    # The +0.5 midpoint keeps the result exact even if the f32 division is a
    # few ulps off (true fractional parts are multiples of 1/d, so the value
    # is always >= 0.5/d away from the nearest integer).
    return jnp.floor((a + 0.5) / float(d))


def _fused_affine_grid_kernel(theta2_ref, theta3_ref, out2_ref, out3_ref, *,
                              H2, W2, D3, H3, W3):
    # ---------------- 2-D grid:  out2[nc, p] = t0*x + t1*y + t2 -------------
    t2 = theta2_ref[...]                                       # (N2*2, 3)
    P2p = out2_ref.shape[1]
    p2 = jax.lax.broadcasted_iota(jnp.int32, (1, P2p), 1).astype(jnp.float32)
    h2 = _floor_div(p2, W2)                                    # p // W
    w2 = p2 - h2 * W2                                          # p %  W
    x2 = _coords(w2, W2)
    y2 = _coords(h2, H2)
    out2_ref[...] = t2[:, 0:1] * x2 + t2[:, 1:2] * y2 + t2[:, 2:3]

    # ---------------- 3-D grid:  out3[nc, p] = t0*x + t1*y + t2*z + t3 ------
    t3 = theta3_ref[...]                                       # (N3*3, 4)
    P3p = out3_ref.shape[1]
    p3 = jax.lax.broadcasted_iota(jnp.int32, (1, P3p), 1).astype(jnp.float32)
    q3 = _floor_div(p3, W3)                                    # p // W = d*H + h
    w3 = p3 - q3 * W3                                          # p %  W
    d3 = _floor_div(q3, H3)                                    # d
    h3 = q3 - d3 * H3                                          # h
    x3 = _coords(w3, W3)
    y3 = _coords(h3, H3)
    z3 = _coords(d3, D3)
    out3_ref[...] = (t3[:, 0:1] * x3 + t3[:, 1:2] * y3
                     + t3[:, 2:3] * z3 + t3[:, 3:4])


def _fused_affine_grid(theta2, size2, theta3, size3):
    # theta2: (N2, 2, 3), size2: (N2, C, H, W)   -> (N2, H, W, 2)
    # theta3: (N3, 3, 4), size3: (N3, C, D, H, W)-> (N3, D, H, W, 3)
    N2, _, H2, W2 = size2
    N3, _, D3, H3, W3 = size3
    P2, P3 = H2 * W2, D3 * H3 * W3
    P2p, P3p = _pad_to(P2, 128), _pad_to(P3, 128)

    t2 = theta2.reshape(N2 * 2, 3).astype(jnp.float32)
    t3 = theta3.reshape(N3 * 3, 4).astype(jnp.float32)

    kernel = functools.partial(_fused_affine_grid_kernel,
                               H2=H2, W2=W2, D3=D3, H3=H3, W3=W3)

    out2, out3 = pl.pallas_call(
        kernel,
        out_shape=(jax.ShapeDtypeStruct((N2 * 2, P2p), jnp.float32),
                   jax.ShapeDtypeStruct((N3 * 3, P3p), jnp.float32)),
        in_specs=[pl.BlockSpec(memory_space=pltpu.MemorySpace.VMEM),
                  pl.BlockSpec(memory_space=pltpu.MemorySpace.VMEM)],
        out_specs=(pl.BlockSpec(memory_space=pltpu.MemorySpace.VMEM),
                   pl.BlockSpec(memory_space=pltpu.MemorySpace.VMEM)),
    )(t2, t3)

    gx = jnp.transpose(out2[:, :P2].reshape(N2, 2, H2, W2), (0, 2, 3, 1))
    gy = jnp.transpose(out3[:, :P3].reshape(N3, 3, D3, H3, W3), (0, 2, 3, 4, 1))
    return gx, gy


def model_forward(x, y):
    # Mirrors the PyTorch module: fixed output sizes.
    return _fused_affine_grid(x, (32, 3, 24, 24), y, (12, 3, 10, 20, 30))


def _linspace_from_neg_one(num_steps):
    i = jnp.arange(num_steps, dtype=jnp.float32)
    return (2.0 * i + 1.0) / num_steps - 1.0


def _reference(x, y):
    # pure-JAX reference of F.affine_grid(align_corners=False)
    xs = _linspace_from_neg_one(24)
    ys = _linspace_from_neg_one(24)
    X, Y = jnp.meshgrid(xs, ys, indexing="xy")                    # (H, W)
    base2 = jnp.stack([X, Y, jnp.ones_like(X)], axis=-1)          # (H, W, 3)
    ref_gx = jnp.einsum("hwk,nck->nhwc", base2, x)

    xs3 = _linspace_from_neg_one(30)
    ys3 = _linspace_from_neg_one(20)
    zs3 = _linspace_from_neg_one(10)
    Z, Yh, Xw = jnp.meshgrid(zs3, ys3, xs3, indexing="ij")        # (D, H, W)
    base3 = jnp.stack([Xw, Yh, Z, jnp.ones_like(Xw)], axis=-1)    # (D, H, W, 4)
    ref_gy = jnp.einsum("dhwk,nck->ndhwc", base3, y)
    return ref_gx, ref_gy


if __name__ == "__main__":
    key = jax.random.PRNGKey(0)
    k1, k2 = jax.random.split(key)
    x = jax.random.normal(k1, (32, 2, 3), dtype=jnp.float32)  # theta for 2D grid
    y = jax.random.normal(k2, (12, 3, 4), dtype=jnp.float32)  # theta for 3D grid

    gx, gy = model_forward(x, y)
    jax.block_until_ready((gx, gy))

    assert gx.shape == (32, 24, 24, 2), gx.shape
    assert gy.shape == (12, 10, 20, 30, 3), gy.shape

    ref_gx, ref_gy = _reference(x, y)
    assert jnp.allclose(gx, ref_gx, atol=1e-5, rtol=1e-5)
    assert jnp.allclose(gy, ref_gy, atol=1e-5, rtol=1e-5)

    print("KERNEL_OK")
</pallas_src>

<mosaic_0001>
module attributes {stable_mosaic.version = 11 : i64} {
  func.func @_fused_affine_grid_kernel(%arg0: memref<64x3xf32, #tpu.memory_space<vmem>>, %arg1: memref<36x4xf32, #tpu.memory_space<vmem>>, %arg2: memref<64x640xf32, #tpu.memory_space<vmem>>, %arg3: memref<36x6016xf32, #tpu.memory_space<vmem>>) attributes {dimension_semantics = [], scalar_prefetch = 0 : i64, scratch_operands = 0 : i64, tpu.core_type = #tpu.core_type<tc>} {
    %c0 = arith.constant 0 : index
    %c0_0 = arith.constant 0 : index
    %0 = vector.load %arg0[%c0, %c0_0] : memref<64x3xf32, #tpu.memory_space<vmem>>, vector<64x3xf32>
    %1 = tpu.iota {dimensions = array<i32: 1>} : vector<1x640xi32>
    %2 = arith.sitofp %1 : vector<1x640xi32> to vector<1x640xf32>
    %cst = arith.constant 5.000000e-01 : f32
    %3 = vector.broadcast %cst : f32 to vector<1x640xf32>
    %4 = arith.addf %2, %3 : vector<1x640xf32>
    %cst_1 = arith.constant 2.400000e+01 : f32
    %5 = vector.broadcast %cst_1 : f32 to vector<1x640xf32>
    %6 = arith.divf %4, %5 : vector<1x640xf32>
    %7 = math.floor %6 : vector<1x640xf32>
    %cst_2 = arith.constant 2.400000e+01 : f32
    %8 = vector.broadcast %cst_2 : f32 to vector<1x640xf32>
    %9 = arith.mulf %7, %8 : vector<1x640xf32>
    %10 = arith.subf %2, %9 : vector<1x640xf32>
    %cst_3 = arith.constant 2.000000e+00 : f32
    %11 = vector.broadcast %cst_3 : f32 to vector<1x640xf32>
    %12 = arith.mulf %11, %10 : vector<1x640xf32>
    %cst_4 = arith.constant 1.000000e+00 : f32
    %13 = vector.broadcast %cst_4 : f32 to vector<1x640xf32>
    %14 = arith.addf %12, %13 : vector<1x640xf32>
    %cst_5 = arith.constant 2.400000e+01 : f32
    %15 = vector.broadcast %cst_5 : f32 to vector<1x640xf32>
    %16 = arith.divf %14, %15 : vector<1x640xf32>
    %cst_6 = arith.constant 1.000000e+00 : f32
    %17 = vector.broadcast %cst_6 : f32 to vector<1x640xf32>
    %18 = arith.subf %16, %17 : vector<1x640xf32>
    %cst_7 = arith.constant 2.000000e+00 : f32
    %19 = vector.broadcast %cst_7 : f32 to vector<1x640xf32>
    %20 = arith.mulf %19, %7 : vector<1x640xf32>
    %cst_8 = arith.constant 1.000000e+00 : f32
    %21 = vector.broadcast %cst_8 : f32 to vector<1x640xf32>
    %22 = arith.addf %20, %21 : vector<1x640xf32>
    %cst_9 = arith.constant 2.400000e+01 : f32
    %23 = vector.broadcast %cst_9 : f32 to vector<1x640xf32>
    %24 = arith.divf %22, %23 : vector<1x640xf32>
    %cst_10 = arith.constant 1.000000e+00 : f32
    %25 = vector.broadcast %cst_10 : f32 to vector<1x640xf32>
    %26 = arith.subf %24, %25 : vector<1x640xf32>
    %27 = vector.extract_strided_slice %0 {offsets = [0, 0], sizes = [64, 1], strides = [1, 1]} : vector<64x3xf32> to vector<64x1xf32>
    %28 = vector.broadcast %27 : vector<64x1xf32> to vector<64x640xf32>
    %29 = vector.broadcast %18 : vector<1x640xf32> to vector<64x640xf32>
    %30 = arith.mulf %28, %29 : vector<64x640xf32>
    %31 = vector.extract_strided_slice %0 {offsets = [0, 1], sizes = [64, 1], strides = [1, 1]} : vector<64x3xf32> to vector<64x1xf32>
    %32 = vector.broadcast %31 : vector<64x1xf32> to vector<64x640xf32>
    %33 = vector.broadcast %26 : vector<1x640xf32> to vector<64x640xf32>
    %34 = arith.mulf %32, %33 : vector<64x640xf32>
    %35 = arith.addf %30, %34 : vector<64x640xf32>
    %36 = vector.extract_strided_slice %0 {offsets = [0, 2], sizes = [64, 1], strides = [1, 1]} : vector<64x3xf32> to vector<64x1xf32>
    %37 = vector.broadcast %36 : vector<64x1xf32> to vector<64x640xf32>
    %38 = arith.addf %35, %37 : vector<64x640xf32>
    %c0_11 = arith.constant 0 : index
    %c0_12 = arith.constant 0 : index
    %39 = vector.load %arg2[%c0_11, %c0_12] : memref<64x640xf32, #tpu.memory_space<vmem>>, vector<64x640xf32>
    tpu.vector_store %arg2[%c0_11, %c0_12], %38 {strides = array<i32>} : memref<64x640xf32, #tpu.memory_space<vmem>>, vector<64x640xf32>,
    %c0_13 = arith.constant 0 : index
    %c0_14 = arith.constant 0 : index
    %40 = vector.load %arg1[%c0_13, %c0_14] : memref<36x4xf32, #tpu.memory_space<vmem>>, vector<36x4xf32>
    %41 = tpu.iota {dimensions = array<i32: 1>} : vector<1x6016xi32>
    %42 = arith.sitofp %41 : vector<1x6016xi32> to vector<1x6016xf32>
    %cst_15 = arith.constant 5.000000e-01 : f32
    %43 = vector.broadcast %cst_15 : f32 to vector<1x6016xf32>
    %44 = arith.addf %42, %43 : vector<1x6016xf32>
    %cst_16 = arith.constant 3.000000e+01 : f32
    %45 = vector.broadcast %cst_16 : f32 to vector<1x6016xf32>
    %46 = arith.divf %44, %45 : vector<1x6016xf32>
    %47 = math.floor %46 : vector<1x6016xf32>
    %cst_17 = arith.constant 3.000000e+01 : f32
    %48 = vector.broadcast %cst_17 : f32 to vector<1x6016xf32>
    %49 = arith.mulf %47, %48 : vector<1x6016xf32>
    %50 = arith.subf %42, %49 : vector<1x6016xf32>
    %cst_18 = arith.constant 5.000000e-01 : f32
    %51 = vector.broadcast %cst_18 : f32 to vector<1x6016xf32>
    %52 = arith.addf %47, %51 : vector<1x6016xf32>
    %cst_19 = arith.constant 2.000000e+01 : f32
    %53 = vector.broadcast %cst_19 : f32 to vector<1x6016xf32>
    %54 = arith.divf %52, %53 : vector<1x6016xf32>
    %55 = math.floor %54 : vector<1x6016xf32>
    %cst_20 = arith.constant 2.000000e+01 : f32
    %56 = vector.broadcast %cst_20 : f32 to vector<1x6016xf32>
    %57 = arith.mulf %55, %56 : vector<1x6016xf32>
    %58 = arith.subf %47, %57 : vector<1x6016xf32>
    %cst_21 = arith.constant 2.000000e+00 : f32
    %59 = vector.broadcast %cst_21 : f32 to vector<1x6016xf32>
    %60 = arith.mulf %59, %50 : vector<1x6016xf32>
    %cst_22 = arith.constant 1.000000e+00 : f32
    %61 = vector.broadcast %cst_22 : f32 to vector<1x6016xf32>
    %62 = arith.addf %60, %61 : vector<1x6016xf32>
    %cst_23 = arith.constant 3.000000e+01 : f32
    %63 = vector.broadcast %cst_23 : f32 to vector<1x6016xf32>
    %64 = arith.divf %62, %63 : vector<1x6016xf32>
    %cst_24 = arith.constant 1.000000e+00 : f32
    %65 = vector.broadcast %cst_24 : f32 to vector<1x6016xf32>
    %66 = arith.subf %64, %65 : vector<1x6016xf32>
    %cst_25 = arith.constant 2.000000e+00 : f32
    %67 = vector.broadcast %cst_25 : f32 to vector<1x6016xf32>
    %68 = arith.mulf %67, %58 : vector<1x6016xf32>
    %cst_26 = arith.constant 1.000000e+00 : f32
    %69 = vector.broadcast %cst_26 : f32 to vector<1x6016xf32>
    %70 = arith.addf %68, %69 : vector<1x6016xf32>
    %cst_27 = arith.constant 2.000000e+01 : f32
    %71 = vector.broadcast %cst_27 : f32 to vector<1x6016xf32>
    %72 = arith.divf %70, %71 : vector<1x6016xf32>
    %cst_28 = arith.constant 1.000000e+00 : f32
    %73 = vector.broadcast %cst_28 : f32 to vector<1x6016xf32>
    %74 = arith.subf %72, %73 : vector<1x6016xf32>
    %cst_29 = arith.constant 2.000000e+00 : f32
    %75 = vector.broadcast %cst_29 : f32 to vector<1x6016xf32>
    %76 = arith.mulf %75, %55 : vector<1x6016xf32>
    %cst_30 = arith.constant 1.000000e+00 : f32
    %77 = vector.broadcast %cst_30 : f32 to vector<1x6016xf32>
    %78 = arith.addf %76, %77 : vector<1x6016xf32>
    %cst_31 = arith.constant 1.000000e+01 : f32
    %79 = vector.broadcast %cst_31 : f32 to vector<1x6016xf32>
    %80 = arith.divf %78, %79 : vector<1x6016xf32>
    %cst_32 = arith.constant 1.000000e+00 : f32
    %81 = vector.broadcast %cst_32 : f32 to vector<1x6016xf32>
    %82 = arith.subf %80, %81 : vector<1x6016xf32>
    %83 = vector.extract_strided_slice %40 {offsets = [0, 0], sizes = [36, 1], strides = [1, 1]} : vector<36x4xf32> to vector<36x1xf32>
    %84 = vector.broadcast %83 : vector<36x1xf32> to vector<36x6016xf32>
    %85 = vector.broadcast %66 : vector<1x6016xf32> to vector<36x6016xf32>
    %86 = arith.mulf %84, %85 : vector<36x6016xf32>
    %87 = vector.extract_strided_slice %40 {offsets = [0, 1], sizes = [36, 1], strides = [1, 1]} : vector<36x4xf32> to vector<36x1xf32>
    %88 = vector.broadcast %87 : vector<36x1xf32> to vector<36x6016xf32>
    %89 = vector.broadcast %74 : vector<1x6016xf32> to vector<36x6016xf32>
    %90 = arith.mulf %88, %89 : vector<36x6016xf32>
    %91 = arith.addf %86, %90 : vector<36x6016xf32>
    %92 = vector.extract_strided_slice %40 {offsets = [0, 2], sizes = [36, 1], strides = [1, 1]} : vector<36x4xf32> to vector<36x1xf32>
    %93 = vector.broadcast %92 : vector<36x1xf32> to vector<36x6016xf32>
    %94 = vector.broadcast %82 : vector<1x6016xf32> to vector<36x6016xf32>
    %95 = arith.mulf %93, %94 : vector<36x6016xf32>
    %96 = arith.addf %91, %95 : vector<36x6016xf32>
    %97 = vector.extract_strided_slice %40 {offsets = [0, 3], sizes = [36, 1], strides = [1, 1]} : vector<36x4xf32> to vector<36x1xf32>
    %98 = vector.broadcast %97 : vector<36x1xf32> to vector<36x6016xf32>
    %99 = arith.addf %96, %98 : vector<36x6016xf32>
    %c0_33 = arith.constant 0 : index
    %c0_34 = arith.constant 0 : index
    %100 = vector.load %arg3[%c0_33, %c0_34] : memref<36x6016xf32, #tpu.memory_space<vmem>>, vector<36x6016xf32>
    tpu.vector_store %arg3[%c0_33, %c0_34], %99 {strides = array<i32>} : memref<36x6016xf32, #tpu.memory_space<vmem>>, vector<36x6016xf32>,
    return
  }
}

</mosaic_0001>

<llo_original>
// kernel: tpu_custom_call.1
$region0: #{tpu_custom_call.1}
  #allocation0 [shape = 'u32[]', space=smem, size = 0x4, offset = 0x4, fixed_abs, tag = 'smem constant byte address 0x4 - core index']
  #allocation1 [shape = 'u32[72,128]{1,0:T(1,128)}', space=vmem, size = 0x9000, scoped, tag = 'internal scratch']
  %s0 = inlined_call_operand.vmem [shape: f32[64,3], index: 0, kind: input, shape index: {}]
  %s1 = inlined_call_operand.vmem [shape: f32[36,4], index: 1, kind: input, shape index: {}]
  %s2 = inlined_call_operand.hbm [shape: f32[64,640], index: 2, kind: output, shape index: {0}]
  %s3 = inlined_call_operand.hbm [shape: f32[36,6016], index: 3, kind: output, shape index: {1}]
  %4 = xla_tuple %s2, %s3
  %s5 = sld [smem:[#allocation0]]
  $region26: #{tpu_custom_call.1} parent=0
    _
  %s7 = ssub.s32 1, %s5
  %s8 = scalar_select 0, %s7, %s5
  $region1: #{tpu_custom_call.1} parent=0
    #allocation2 [shape = 'u8[163840]{0}', space=vmem, size = 0x28000, scoped, tag = 'output window, operand 0, single buffered']
    #allocation3 [shape = 's32[1]{0}', space=sflag, size = 0x4, scoped, tag = 'scoped memory for tpu_custom_call.1']
    #allocation4 [shape = 'u8[962560]{0}', space=vmem, size = 0xeb000, scoped, tag = 'output window, operand 1, single buffered']
    #allocation5 [shape = 's32[1]{0}', space=sflag, size = 0x4, scoped, tag = 'scoped memory for tpu_custom_call.1']
    %9 = vsyncpa [#allocation3], 0
    %10 = vsyncpa [#allocation5], 0
    // Predicated region
    $region2: #{tpu_custom_call.1} parent=1 // pred_check
      _
    $region3: #{tpu_custom_call.1} parent=1 // pred_check_branch
      %12 = sbr.rel (0) target = $region5
    $region4: #{tpu_custom_call.1} parent=1 // pred_region
      _
    $region5: #{tpu_custom_call.1} parent=1 // pred_fallthru
      _
    // Predicated region
    $region6: #{tpu_custom_call.1} parent=1 // pred_check
      _
    $region7: #{tpu_custom_call.1} parent=1 // pred_check_branch
      %14 = sbr.rel (0) target = $region9
    $region8: #{tpu_custom_call.1} parent=1 // pred_region
      _
    $region9: #{tpu_custom_call.1} parent=1 // pred_fallthru
      _
    %v15 = vld [vmem:[%s0] sm:$0xff]
    %v16 = vld [vmem:[%s0 + $0x8] sm:$0xff]
    %v17 = vld [vmem:[%s0 + $0x10] sm:$0xff]
    %v18 = vld [vmem:[%s0 + $0x18] sm:$0xff]
    %v19 = vld [vmem:[%s0 + $0x20] sm:$0xff]
    %v20 = vld [vmem:[%s0 + $0x28] sm:$0xff]
    %v21 = vld [vmem:[%s0 + $0x30] sm:$0xff]
    %v22 = vld [vmem:[%s0 + $0x38] sm:$0xff]
    %v23 = vlaneseq
    %v24 = vand.u32 %v23, 127
    %v25 = vadd.s32 %v24, 128
    %v26 = vadd.s32 %v24, 256
    %v27 = vadd.s32 %v24, 384
    %v28 = vadd.s32 %v24, 512
    %v29 = vcvt.s32.f32 %v24
    %v30 = vcvt.s32.f32 %v25
    %v31 = vcvt.s32.f32 %v26
    %v32 = vcvt.s32.f32 %v27
    %v33 = vcvt.s32.f32 %v28
    %v34 = vadd.f32 %v29, 0.5
    %v35 = vadd.f32 %v30, 0.5
    %v36 = vadd.f32 %v31, 0.5
    %v37 = vadd.f32 %v32, 0.5
    %v38 = vadd.f32 %v33, 0.5
    %v39 = vrcp.pop 24.0
    %v40 = vmul.f32 24.0, %v39
    %v41 = vsub.f32 1.0, %v40
    %v42 = vmul.f32 %v39, %v41
    %v43 = vadd.f32 %v39, %v42
    %vm44 = vweird.f32 %v39
    %v45 = vsel %vm44, %v39, %v43
    %v46 = vmul.f32 %v34, %v45
    %v47 = vmul.f32 %v35, %v45
    %v48 = vmul.f32 %v36, %v45
    %v49 = vmul.f32 %v37, %v45
    %v50 = vmul.f32 %v38, %v45
    %v51 = vfloor.f32 %v46
    %v52 = vfloor.f32 %v47
    %v53 = vfloor.f32 %v48
    %v54 = vfloor.f32 %v49
    %v55 = vfloor.f32 %v50
    %v56 = vmul.f32 %v51, 24.0
    %v57 = vmul.f32 %v52, 24.0
    %v58 = vmul.f32 %v53, 24.0
    %v59 = vmul.f32 %v54, 24.0
    %v60 = vmul.f32 %v55, 24.0
    %v61 = vsub.f32 %v29, %v56
    %v62 = vsub.f32 %v30, %v57
    %v63 = vsub.f32 %v31, %v58
    %v64 = vsub.f32 %v32, %v59
    %v65 = vsub.f32 %v33, %v60
    %v66 = vmul.f32 %v61, 2.0
    %v67 = vmul.f32 %v62, 2.0
    %v68 = vmul.f32 %v63, 2.0
    %v69 = vmul.f32 %v64, 2.0
    %v70 = vmul.f32 %v65, 2.0
    %v71 = vadd.f32 %v66, 1.0
    %v72 = vadd.f32 %v67, 1.0
    %v73 = vadd.f32 %v68, 1.0
    %v74 = vadd.f32 %v69, 1.0
    %v75 = vadd.f32 %v70, 1.0
    %v76 = vmul.f32 %v71, %v45
    %v77 = vmul.f32 %v72, %v45
    %v78 = vmul.f32 %v73, %v45
    %v79 = vmul.f32 %v74, %v45
    %v80 = vmul.f32 %v75, %v45
    %v81 = vsub.f32 %v76, 1.0
    %v82 = vsub.f32 %v77, 1.0
    %v83 = vsub.f32 %v78, 1.0
    %v84 = vsub.f32 %v79, 1.0
    %v85 = vsub.f32 %v80, 1.0
    %v86 = vmul.f32 %v51, 2.0
    %v87 = vmul.f32 %v52, 2.0
    %v88 = vmul.f32 %v53, 2.0
    %v89 = vmul.f32 %v54, 2.0
    %v90 = vmul.f32 %v55, 2.0
    %v91 = vadd.f32 %v86, 1.0
    %v92 = vadd.f32 %v87, 1.0
    %v93 = vadd.f32 %v88, 1.0
    %v94 = vadd.f32 %v89, 1.0
    %v95 = vadd.f32 %v90, 1.0
    %v96 = vmul.f32 %v91, %v45
    %v97 = vmul.f32 %v92, %v45
    %v98 = vmul.f32 %v93, %v45
    %v99 = vmul.f32 %v94, %v45
    %v100 = vmul.f32 %v95, %v45
    %v101 = vsub.f32 %v96, 1.0
    %v102 = vsub.f32 %v97, 1.0
    %v103 = vsub.f32 %v98, 1.0
    %v104 = vsub.f32 %v99, 1.0
    %v105 = vsub.f32 %v100, 1.0
    %107 = vset.pattern.permute.xlu0 0
    %108 = vperm.xlu0 %107, %v15
    %v109 = vpop.permute.xlu0 %108
    %112 = vset.pattern.permute.xlu0 0
    %113 = vperm.xlu0 %112, %v16
    %v114 = vpop.permute.xlu0 %113
    %117 = vset.pattern.permute.xlu0 0
    %118 = vperm.xlu0 %117, %v17
    %v119 = vpop.permute.xlu0 %118
    %122 = vset.pattern.permute.xlu0 0
    %123 = vperm.xlu0 %122, %v18
    %v124 = vpop.permute.xlu0 %123
    %127 = vset.pattern.permute.xlu0 0
    %128 = vperm.xlu0 %127, %v19
    %v129 = vpop.permute.xlu0 %128
    %132 = vset.pattern.permute.xlu0 0
    %133 = vperm.xlu0 %132, %v20
    %v134 = vpop.permute.xlu0 %133
    %137 = vset.pattern.permute.xlu0 0
    %138 = vperm.xlu0 %137, %v21
    %v139 = vpop.permute.xlu0 %138
    %142 = vset.pattern.permute.xlu0 0
    %143 = vperm.xlu0 %142, %v22
    %v144 = vpop.permute.xlu0 %143
    %v146 = vmul.f32 %v109, %v81
    %v147 = vmul.f32 %v109, %v82
    %v148 = vmul.f32 %v109, %v83
    %v149 = vmul.f32 %v109, %v84
    %v150 = vmul.f32 %v109, %v85
    %v151 = vmul.f32 %v114, %v81
    %v152 = vmul.f32 %v114, %v82
    %v153 = vmul.f32 %v114, %v83
    %v154 = vmul.f32 %v114, %v84
    %v155 = vmul.f32 %v114, %v85
    %v156 = vmul.f32 %v119, %v81
    %v157 = vmul.f32 %v119, %v82
    %v158 = vmul.f32 %v119, %v83
    %v159 = vmul.f32 %v119, %v84
    %v160 = vmul.f32 %v119, %v85
    %v161 = vmul.f32 %v124, %v81
    %v162 = vmul.f32 %v124, %v82
    %v163 = vmul.f32 %v124, %v83
    %v164 = vmul.f32 %v124, %v84
    %v165 = vmul.f32 %v124, %v85
    %v166 = vmul.f32 %v129, %v81
    %v167 = vmul.f32 %v129, %v82
    %v168 = vmul.f32 %v129, %v83
    %v169 = vmul.f32 %v129, %v84
    %v170 = vmul.f32 %v129, %v85
    %v171 = vmul.f32 %v134, %v81
    %v172 = vmul.f32 %v134, %v82
    %v173 = vmul.f32 %v134, %v83
    %v174 = vmul.f32 %v134, %v84
    %v175 = vmul.f32 %v134, %v85
    %v176 = vmul.f32 %v139, %v81
    %v177 = vmul.f32 %v139, %v82
    %v178 = vmul.f32 %v139, %v83
    %v179 = vmul.f32 %v139, %v84
    %v180 = vmul.f32 %v139, %v85
    %v181 = vmul.f32 %v144, %v81
    %v182 = vmul.f32 %v144, %v82
    %v183 = vmul.f32 %v144, %v83
    %v184 = vmul.f32 %v144, %v84
    %v185 = vmul.f32 %v144, %v85
    %186 = vset.pattern.permute.xlu0 1
    %187 = vperm.xlu0 %186, %v15
    %v188 = vpop.permute.xlu0 %187
    %190 = vset.pattern.permute.xlu0 1
    %191 = vperm.xlu0 %190, %v16
    %v192 = vpop.permute.xlu0 %191
    %194 = vset.pattern.permute.xlu0 1
    %195 = vperm.xlu0 %194, %v17
    %v196 = vpop.permute.xlu0 %195
    %198 = vset.pattern.permute.xlu0 1
    %199 = vperm.xlu0 %198, %v18
    %v200 = vpop.permute.xlu0 %199
    %202 = vset.pattern.permute.xlu0 1
    %203 = vperm.xlu0 %202, %v19
    %v204 = vpop.permute.xlu0 %203
    %206 = vset.pattern.permute.xlu0 1
    %207 = vperm.xlu0 %206, %v20
    %v208 = vpop.permute.xlu0 %207
    %210 = vset.pattern.permute.xlu0 1
    %211 = vperm.xlu0 %210, %v21
    %v212 = vpop.permute.xlu0 %211
    %214 = vset.pattern.permute.xlu0 1
    %215 = vperm.xlu0 %214, %v22
    %v216 = vpop.permute.xlu0 %215
    %v218 = vmul.f32 %v188, %v101
    %v219 = vmul.f32 %v188, %v102
    %v220 = vmul.f32 %v188, %v103
    %v221 = vmul.f32 %v188, %v104
    %v222 = vmul.f32 %v188, %v105
    %v223 = vmul.f32 %v192, %v101
    %v224 = vmul.f32 %v192, %v102
    %v225 = vmul.f32 %v192, %v103
    %v226 = vmul.f32 %v192, %v104
    %v227 = vmul.f32 %v192, %v105
    %v228 = vmul.f32 %v196, %v101
    %v229 = vmul.f32 %v196, %v102
    %v230 = vmul.f32 %v196, %v103
    %v231 = vmul.f32 %v196, %v104
    %v232 = vmul.f32 %v196, %v105
    %v233 = vmul.f32 %v200, %v101
    %v234 = vmul.f32 %v200, %v102
    %v235 = vmul.f32 %v200, %v103
    %v236 = vmul.f32 %v200, %v104
    %v237 = vmul.f32 %v200, %v105
    %v238 = vmul.f32 %v204, %v101
    %v239 = vmul.f32 %v204, %v102
    %v240 = vmul.f32 %v204, %v103
    %v241 = vmul.f32 %v204, %v104
    %v242 = vmul.f32 %v204, %v105
    %v243 = vmul.f32 %v208, %v101
    %v244 = vmul.f32 %v208, %v102
    %v245 = vmul.f32 %v208, %v103
    %v246 = vmul.f32 %v208, %v104
    %v247 = vmul.f32 %v208, %v105
    %v248 = vmul.f32 %v212, %v101
    %v249 = vmul.f32 %v212, %v102
    %v250 = vmul.f32 %v212, %v103
    %v251 = vmul.f32 %v212, %v104
    %v252 = vmul.f32 %v212, %v105
    %v253 = vmul.f32 %v216, %v101
    %v254 = vmul.f32 %v216, %v102
    %v255 = vmul.f32 %v216, %v103
    %v256 = vmul.f32 %v216, %v104
    %v257 = vmul.f32 %v216, %v105
    %v258 = vadd.f32 %v146, %v218
    %v259 = vadd.f32 %v147, %v219
    %v260 = vadd.f32 %v148, %v220
    %v261 = vadd.f32 %v149, %v221
    %v262 = vadd.f32 %v150, %v222
    %v263 = vadd.f32 %v151, %v223
    %v264 = vadd.f32 %v152, %v224
    %v265 = vadd.f32 %v153, %v225
    %v266 = vadd.f32 %v154, %v226
    %v267 = vadd.f32 %v155, %v227
    %v268 = vadd.f32 %v156, %v228
    %v269 = vadd.f32 %v157, %v229
    %v270 = vadd.f32 %v158, %v230
    %v271 = vadd.f32 %v159, %v231
    %v272 = vadd.f32 %v160, %v232
    %v273 = vadd.f32 %v161, %v233
    %v274 = vadd.f32 %v162, %v234
    %v275 = vadd.f32 %v163, %v235
    %v276 = vadd.f32 %v164, %v236
    %v277 = vadd.f32 %v165, %v237
    %v278 = vadd.f32 %v166, %v238
    %v279 = vadd.f32 %v167, %v239
    %v280 = vadd.f32 %v168, %v240
    %v281 = vadd.f32 %v169, %v241
    %v282 = vadd.f32 %v170, %v242
    %v283 = vadd.f32 %v171, %v243
    %v284 = vadd.f32 %v172, %v244
    %v285 = vadd.f32 %v173, %v245
    %v286 = vadd.f32 %v174, %v246
    %v287 = vadd.f32 %v175, %v247
    %v288 = vadd.f32 %v176, %v248
    %v289 = vadd.f32 %v177, %v249
    %v290 = vadd.f32 %v178, %v250
    %v291 = vadd.f32 %v179, %v251
    %v292 = vadd.f32 %v180, %v252
    %v293 = vadd.f32 %v181, %v253
    %v294 = vadd.f32 %v182, %v254
    %v295 = vadd.f32 %v183, %v255
    %v296 = vadd.f32 %v184, %v256
    %v297 = vadd.f32 %v185, %v257
    %298 = vset.pattern.permute.xlu0 2
    %299 = vperm.xlu0 %298, %v15
    %v300 = vpop.permute.xlu0 %299
    %302 = vset.pattern.permute.xlu0 2
    %303 = vperm.xlu0 %302, %v16
    %v304 = vpop.permute.xlu0 %303
    %306 = vset.pattern.permute.xlu0 2
    %307 = vperm.xlu0 %306, %v17
    %v308 = vpop.permute.xlu0 %307
    %310 = vset.pattern.permute.xlu0 2
    %311 = vperm.xlu0 %310, %v18
    %v312 = vpop.permute.xlu0 %311
    %314 = vset.pattern.permute.xlu0 2
    %315 = vperm.xlu0 %314, %v19
    %v316 = vpop.permute.xlu0 %315
    %318 = vset.pattern.permute.xlu0 2
    %319 = vperm.xlu0 %318, %v20
    %v320 = vpop.permute.xlu0 %319
    %322 = vset.pattern.permute.xlu0 2
    %323 = vperm.xlu0 %322, %v21
    %v324 = vpop.permute.xlu0 %323
    %326 = vset.pattern.permute.xlu0 2
    %327 = vperm.xlu0 %326, %v22
    %v328 = vpop.permute.xlu0 %327
    %v330 = vadd.f32 %v258, %v300
    %v331 = vadd.f32 %v259, %v300
    %v332 = vadd.f32 %v260, %v300
    %v333 = vadd.f32 %v261, %v300
    %v334 = vadd.f32 %v262, %v300
    %v335 = vadd.f32 %v263, %v304
    %v336 = vadd.f32 %v264, %v304
    %v337 = vadd.f32 %v265, %v304
    %v338 = vadd.f32 %v266, %v304
    %v339 = vadd.f32 %v267, %v304
    %v340 = vadd.f32 %v268, %v308
    %v341 = vadd.f32 %v269, %v308
    %v342 = vadd.f32 %v270, %v308
    %v343 = vadd.f32 %v271, %v308
    %v344 = vadd.f32 %v272, %v308
    %v345 = vadd.f32 %v273, %v312
    %v346 = vadd.f32 %v274, %v312
    %v347 = vadd.f32 %v275, %v312
    %v348 = vadd.f32 %v276, %v312
    %v349 = vadd.f32 %v277, %v312
    %v350 = vadd.f32 %v278, %v316
    %v351 = vadd.f32 %v279, %v316
    %v352 = vadd.f32 %v280, %v316
    %v353 = vadd.f32 %v281, %v316
    %v354 = vadd.f32 %v282, %v316
    %v355 = vadd.f32 %v283, %v320
    %v356 = vadd.f32 %v284, %v320
    %v357 = vadd.f32 %v285, %v320
    %v358 = vadd.f32 %v286, %v320
    %v359 = vadd.f32 %v287, %v320
    %v360 = vadd.f32 %v288, %v324
    %v361 = vadd.f32 %v289, %v324
    %v362 = vadd.f32 %v290, %v324
    %v363 = vadd.f32 %v291, %v324
    %v364 = vadd.f32 %v292, %v324
    %v365 = vadd.f32 %v293, %v328
    %v366 = vadd.f32 %v294, %v328
    %v367 = vadd.f32 %v295, %v328
    %v368 = vadd.f32 %v296, %v328
    %v369 = vadd.f32 %v297, %v328
    %370 = vst [vmem:[#allocation2] sm:$0xff] %v330
    %371 = vst [vmem:[#allocation2 + $0x8] sm:$0xff] %v331
    %372 = vst [vmem:[#allocation2 + $0x10] sm:$0xff] %v332
    %373 = vst [vmem:[#allocation2 + $0x18] sm:$0xff] %v333
    %374 = vst [vmem:[#allocation2 + $0x20] sm:$0xff] %v334
    %375 = vst [vmem:[#allocation2 + $0x28] sm:$0xff] %v335
    %376 = vst [vmem:[#allocation2 + $0x30] sm:$0xff] %v336
    %377 = vst [vmem:[#allocation2 + $0x38] sm:$0xff] %v337
    %378 = vst [vmem:[#allocation2 + $0x40] sm:$0xff] %v338
    %379 = vst [vmem:[#allocation2 + $0x48] sm:$0xff] %v339
    %380 = vst [vmem:[#allocation2 + $0x50] sm:$0xff] %v340
    %381 = vst [vmem:[#allocation2 + $0x58] sm:$0xff] %v341
    %382 = vst [vmem:[#allocation2 + $0x60] sm:$0xff] %v342
    %383 = vst [vmem:[#allocation2 + $0x68] sm:$0xff] %v343
    %384 = vst [vmem:[#allocation2 + $0x70] sm:$0xff] %v344
    %385 = vst [vmem:[#allocation2 + $0x78] sm:$0xff] %v345
    %386 = vst [vmem:[#allocation2 + $0x80] sm:$0xff] %v346
    %387 = vst [vmem:[#allocation2 + $0x88] sm:$0xff] %v347
    %388 = vst [vmem:[#allocation2 + $0x90] sm:$0xff] %v348
    %389 = vst [vmem:[#allocation2 + $0x98] sm:$0xff] %v349
    %390 = vst [vmem:[#allocation2 + $0xa0] sm:$0xff] %v350
    %391 = vst [vmem:[#allocation2 + $0xa8] sm:$0xff] %v351
    %392 = vst [vmem:[#allocation2 + $0xb0] sm:$0xff] %v352
    %393 = vst [vmem:[#allocation2 + $0xb8] sm:$0xff] %v353
    %394 = vst [vmem:[#allocation2 + $0xc0] sm:$0xff] %v354
    %395 = vst [vmem:[#allocation2 + $0xc8] sm:$0xff] %v355
    %396 = vst [vmem:[#allocation2 + $0xd0] sm:$0xff] %v356
    %397 = vst [vmem:[#allocation2 + $0xd8] sm:$0xff] %v357
    %398 = vst [vmem:[#allocation2 + $0xe0] sm:$0xff] %v358
    %399 = vst [vmem:[#allocation2 + $0xe8] sm:$0xff] %v359
    %400 = vst [vmem:[#allocation2 + $0xf0] sm:$0xff] %v360
    %401 = vst [vmem:[#allocation2 + $0xf8] sm:$0xff] %v361
    %402 = vst [vmem:[#allocation2 + $0x100] sm:$0xff] %v362
    %403 = vst [vmem:[#allocation2 + $0x108] sm:$0xff] %v363
    %404 = vst [vmem:[#allocation2 + $0x110] sm:$0xff] %v364
    %405 = vst [vmem:[#allocation2 + $0x118] sm:$0xff] %v365
    %406 = vst [vmem:[#allocation2 + $0x120] sm:$0xff] %v366
    %407 = vst [vmem:[#allocation2 + $0x128] sm:$0xff] %v367
    %408 = vst [vmem:[#allocation2 + $0x130] sm:$0xff] %v368
    %409 = vst [vmem:[#allocation2 + $0x138] sm:$0xff] %v369
    %v410 = vld [vmem:[%s1] sm:$0xff]
    %v411 = vld [vmem:[%s1 + $0x8] sm:$0xff]
    %v412 = vld [vmem:[%s1 + $0x10] sm:$0xff]
    %v413 = vld [vmem:[%s1 + $0x18] sm:$0xff]
    %v414 = vld [vmem:[%s1 + $0x20] sm:$0xf]
    %v415 = vadd.s32 %v24, 640
    %v416 = vadd.s32 %v24, 768
    %v417 = vadd.s32 %v24, 896
    %v418 = vadd.s32 %v24, 1024
    %v419 = vadd.s32 %v24, 1152
    %v420 = vadd.s32 %v24, 1280
    %v421 = vadd.s32 %v24, 1408
    %v422 = vadd.s32 %v24, 1536
    %v423 = vadd.s32 %v24, 1664
    %v424 = vadd.s32 %v24, 1792
    %v425 = vadd.s32 %v24, 1920
    %v426 = vadd.s32 %v24, 2048
    %v427 = vadd.s32 %v24, 2176
    %v428 = vadd.s32 %v24, 2304
    %v429 = vadd.s32 %v24, 2432
    %v430 = vadd.s32 %v24, 2560
    %v431 = vadd.s32 %v24, 2688
    %v432 = vadd.s32 %v24, 2816
    %v433 = vadd.s32 %v24, 2944
    %v434 = vadd.s32 %v24, 3072
    %v435 = vadd.s32 %v24, 3200
    %v436 = vadd.s32 %v24, 3328
    %v437 = vadd.s32 %v24, 3456
    %v438 = vadd.s32 %v24, 3584
    %v439 = vadd.s32 %v24, 3712
    %v440 = vadd.s32 %v24, 3840
    %v441 = vadd.s32 %v24, 3968
    %v442 = vadd.s32 %v24, 4096
    %v443 = vadd.s32 %v24, 4224
    %v444 = vadd.s32 %v24, 4352
    %v445 = vadd.s32 %v24, 4480
    %v446 = vadd.s32 %v24, 4608
    %v447 = vadd.s32 %v24, 4736
    %v448 = vadd.s32 %v24, 4864
    %v449 = vadd.s32 %v24, 4992
    %v450 = vadd.s32 %v24, 5120
    %v451 = vadd.s32 %v24, 5248
    %v452 = vadd.s32 %v24, 5376
    %v453 = vadd.s32 %v24, 5504
    %v454 = vadd.s32 %v24, 5632
    %v455 = vadd.s32 %v24, 5760
    %v456 = vadd.s32 %v24, 5888
    %v457 = vcvt.s32.f32 %v415
    %v458 = vcvt.s32.f32 %v416
    %v459 = vcvt.s32.f32 %v417
    %v460 = vcvt.s32.f32 %v418
    %v461 = vcvt.s32.f32 %v419
    %v462 = vcvt.s32.f32 %v420
    %v463 = vcvt.s32.f32 %v421
    %v464 = vcvt.s32.f32 %v422
    %v465 = vcvt.s32.f32 %v423
    %v466 = vcvt.s32.f32 %v424
    %v467 = vcvt.s32.f32 %v425
    %v468 = vcvt.s32.f32 %v426
    %v469 = vcvt.s32.f32 %v427
    %v470 = vcvt.s32.f32 %v428
    %v471 = vcvt.s32.f32 %v429
    %v472 = vcvt.s32.f32 %v430
    %v473 = vcvt.s32.f32 %v431
    %v474 = vcvt.s32.f32 %v432
    %v475 = vcvt.s32.f32 %v433
    %v476 = vcvt.s32.f32 %v434
    %v477 = vcvt.s32.f32 %v435
    %v478 = vcvt.s32.f32 %v436
    %v479 = vcvt.s32.f32 %v437
    %v480 = vcvt.s32.f32 %v438
    %v481 = vcvt.s32.f32 %v439
    %v482 = vcvt.s32.f32 %v440
    %v483 = vcvt.s32.f32 %v441
    %v484 = vcvt.s32.f32 %v442
    %v485 = vcvt.s32.f32 %v443
    %v486 = vcvt.s32.f32 %v444
    %v487 = vcvt.s32.f32 %v445
    %v488 = vcvt.s32.f32 %v446
    %v489 = vcvt.s32.f32 %v447
    %v490 = vcvt.s32.f32 %v448
    %v491 = vcvt.s32.f32 %v449
    %v492 = vcvt.s32.f32 %v450
    %v493 = vcvt.s32.f32 %v451
    %v494 = vcvt.s32.f32 %v452
    %v495 = vcvt.s32.f32 %v453
    %v496 = vcvt.s32.f32 %v454
    %v497 = vcvt.s32.f32 %v455
    %v498 = vcvt.s32.f32 %v456
    %v499 = vadd.f32 %v457, 0.5
    %v500 = vadd.f32 %v458, 0.5
    %v501 = vadd.f32 %v459, 0.5
    %v502 = vadd.f32 %v460, 0.5
    %v503 = vadd.f32 %v461, 0.5
    %v504 = vadd.f32 %v462, 0.5
    %v505 = vadd.f32 %v463, 0.5
    %v506 = vadd.f32 %v464, 0.5
    %v507 = vadd.f32 %v465, 0.5
    %v508 = vadd.f32 %v466, 0.5
    %v509 = vadd.f32 %v467, 0.5
    %v510 = vadd.f32 %v468, 0.5
    %v511 = vadd.f32 %v469, 0.5
    %v512 = vadd.f32 %v470, 0.5
    %v513 = vadd.f32 %v471, 0.5
    %v514 = vadd.f32 %v472, 0.5
    %v515 = vadd.f32 %v473, 0.5
    %v516 = vadd.f32 %v474, 0.5
    %v517 = vadd.f32 %v475, 0.5
    %v518 = vadd.f32 %v476, 0.5
    %v519 = vadd.f32 %v477, 0.5
    %v520 = vadd.f32 %v478, 0.5
    %v521 = vadd.f32 %v479, 0.5
    %v522 = vadd.f32 %v480, 0.5
    %v523 = vadd.f32 %v481, 0.5
    %v524 = vadd.f32 %v482, 0.5
    %v525 = vadd.f32 %v483, 0.5
    %v526 = vadd.f32 %v484, 0.5
    %v527 = vadd.f32 %v485, 0.5
    %v528 = vadd.f32 %v486, 0.5
    %v529 = vadd.f32 %v487, 0.5
    %v530 = vadd.f32 %v488, 0.5
    %v531 = vadd.f32 %v489, 0.5
    %v532 = vadd.f32 %v490, 0.5
    %v533 = vadd.f32 %v491, 0.5
    %v534 = vadd.f32 %v492, 0.5
    %v535 = vadd.f32 %v493, 0.5
    %v536 = vadd.f32 %v494, 0.5
    %v537 = vadd.f32 %v495, 0.5
    %v538 = vadd.f32 %v496, 0.5
    %v539 = vadd.f32 %v497, 0.5
    %v540 = vadd.f32 %v498, 0.5
    %v541 = vrcp.pop 30.0
    %v542 = vmul.f32 30.0, %v541
    %v543 = vsub.f32 1.0, %v542
    %v544 = vmul.f32 %v541, %v543
    %v545 = vadd.f32 %v541, %v544
    %vm546 = vweird.f32 %v541
    %v547 = vsel %vm546, %v541, %v545
    %v548 = vmul.f32 %v34, %v547
    %v549 = vmul.f32 %v35, %v547
    %v550 = vmul.f32 %v36, %v547
    %v551 = vmul.f32 %v37, %v547
    %v552 = vmul.f32 %v38, %v547
    %v553 = vmul.f32 %v499, %v547
    %v554 = vmul.f32 %v500, %v547
    %v555 = vmul.f32 %v501, %v547
    %v556 = vmul.f32 %v502, %v547
    %v557 = vmul.f32 %v503, %v547
    %v558 = vmul.f32 %v504, %v547
    %v559 = vmul.f32 %v505, %v547
    %v560 = vmul.f32 %v506, %v547
    %v561 = vmul.f32 %v507, %v547
    %v562 = vmul.f32 %v508, %v547
    %v563 = vmul.f32 %v509, %v547
    %v564 = vmul.f32 %v510, %v547
    %v565 = vmul.f32 %v511, %v547
    %v566 = vmul.f32 %v512, %v547
    %v567 = vmul.f32 %v513, %v547
    %v568 = vmul.f32 %v514, %v547
    %v569 = vmul.f32 %v515, %v547
    %v570 = vmul.f32 %v516, %v547
    %v571 = vmul.f32 %v517, %v547
    %v572 = vmul.f32 %v518, %v547
    %v573 = vmul.f32 %v519, %v547
    %v574 = vmul.f32 %v520, %v547
    %v575 = vmul.f32 %v521, %v547
    %v576 = vmul.f32 %v522, %v547
    %v577 = vmul.f32 %v523, %v547
    %v578 = vmul.f32 %v524, %v547
    %v579 = vmul.f32 %v525, %v547
    %v580 = vmul.f32 %v526, %v547
    %v581 = vmul.f32 %v527, %v547
    %v582 = vmul.f32 %v528, %v547
    %v583 = vmul.f32 %v529, %v547
    %v584 = vmul.f32 %v530, %v547
    %v585 = vmul.f32 %v531, %v547
    %v586 = vmul.f32 %v532, %v547
    %v587 = vmul.f32 %v533, %v547
    %v588 = vmul.f32 %v534, %v547
    %v589 = vmul.f32 %v535, %v547
    %v590 = vmul.f32 %v536, %v547
    %v591 = vmul.f32 %v537, %v547
    %v592 = vmul.f32 %v538, %v547
    %v593 = vmul.f32 %v539, %v547
    %v594 = vmul.f32 %v540, %v547
    %v595 = vfloor.f32 %v548
    %v596 = vfloor.f32 %v549
    %v597 = vfloor.f32 %v550
    %v598 = vfloor.f32 %v551
    %v599 = vfloor.f32 %v552
    %v600 = vfloor.f32 %v553
    %v601 = vfloor.f32 %v554
    %v602 = vfloor.f32 %v555
    %v603 = vfloor.f32 %v556
    %v604 = vfloor.f32 %v557
    %v605 = vfloor.f32 %v558
    %v606 = vfloor.f32 %v559
    %v607 = vfloor.f32 %v560
    %v608 = vfloor.f32 %v561
    %v609 = vfloor.f32 %v562
    %v610 = vfloor.f32 %v563
    %v611 = vfloor.f32 %v564
    %v612 = vfloor.f32 %v565
    %v613 = vfloor.f32 %v566
    %v614 = vfloor.f32 %v567
    %v615 = vfloor.f32 %v568
    %v616 = vfloor.f32 %v569
    %v617 = vfloor.f32 %v570
    %v618 = vfloor.f32 %v571
    %v619 = vfloor.f32 %v572
    %v620 = vfloor.f32 %v573
    %v621 = vfloor.f32 %v574
    %v622 = vfloor.f32 %v575
    %v623 = vfloor.f32 %v576
    %v624 = vfloor.f32 %v577
    %v625 = vfloor.f32 %v578
    %v626 = vfloor.f32 %v579
    %v627 = vfloor.f32 %v580
    %v628 = vfloor.f32 %v581
    %v629 = vfloor.f32 %v582
    %v630 = vfloor.f32 %v583
    %v631 = vfloor.f32 %v584
    %v632 = vfloor.f32 %v585
    %v633 = vfloor.f32 %v586
    %v634 = vfloor.f32 %v587
    %v635 = vfloor.f32 %v588
    %v636 = vfloor.f32 %v589
    %v637 = vfloor.f32 %v590
    %v638 = vfloor.f32 %v591
    %v639 = vfloor.f32 %v592
    %v640 = vfloor.f32 %v593
    %v641 = vfloor.f32 %v594
    %v642 = vmul.f32 %v595, 30.0
    %v643 = vmul.f32 %v596, 30.0
    %v644 = vmul.f32 %v597, 30.0
    %v645 = vmul.f32 %v598, 30.0
    %v646 = vmul.f32 %v599, 30.0
    %v647 = vmul.f32 %v600, 30.0
    %v648 = vmul.f32 %v601, 30.0
    %v649 = vmul.f32 %v602, 30.0
    %v650 = vmul.f32 %v603, 30.0
    %v651 = vmul.f32 %v604, 30.0
    %v652 = vmul.f32 %v605, 30.0
    %v653 = vmul.f32 %v606, 30.0
    %v654 = vmul.f32 %v607, 30.0
    %v655 = vmul.f32 %v608, 30.0
    %v656 = vmul.f32 %v609, 30.0
    %v657 = vmul.f32 %v610, 30.0
    %v658 = vmul.f32 %v611, 30.0
    %v659 = vmul.f32 %v612, 30.0
    %v660 = vmul.f32 %v613, 30.0
    %v661 = vmul.f32 %v614, 30.0
    %v662 = vmul.f32 %v615, 30.0
    %v663 = vmul.f32 %v616, 30.0
    %v664 = vmul.f32 %v617, 30.0
    %v665 = vmul.f32 %v618, 30.0
    %v666 = vmul.f32 %v619, 30.0
    %v667 = vmul.f32 %v620, 30.0
    %v668 = vmul.f32 %v621, 30.0
    %v669 = vmul.f32 %v622, 30.0
    %v670 = vmul.f32 %v623, 30.0
    %v671 = vmul.f32 %v624, 30.0
    %v672 = vmul.f32 %v625, 30.0
    %v673 = vmul.f32 %v626, 30.0
    %v674 = vmul.f32 %v627, 30.0
    %v675 = vmul.f32 %v628, 30.0
    %v676 = vmul.f32 %v629, 30.0
    %v677 = vmul.f32 %v630, 30.0
    %v678 = vmul.f32 %v631, 30.0
    %v679 = vmul.f32 %v632, 30.0
    %v680 = vmul.f32 %v633, 30.0
    %v681 = vmul.f32 %v634, 30.0
    %v682 = vmul.f32 %v635, 30.0
    %v683 = vmul.f32 %v636, 30.0
    %v684 = vmul.f32 %v637, 30.0
    %v685 = vmul.f32 %v638, 30.0
    %v686 = vmul.f32 %v639, 30.0
    %v687 = vmul.f32 %v640, 30.0
    %v688 = vmul.f32 %v641, 30.0
    %v689 = vsub.f32 %v29, %v642
    %v690 = vsub.f32 %v30, %v643
    %v691 = vsub.f32 %v31, %v644
    %v692 = vsub.f32 %v32, %v645
    %v693 = vsub.f32 %v33, %v646
    %v694 = vsub.f32 %v457, %v647
    %v695 = vsub.f32 %v458, %v648
    %v696 = vsub.f32 %v459, %v649
    %v697 = vsub.f32 %v460, %v650
    %v698 = vsub.f32 %v461, %v651
    %v699 = vsub.f32 %v462, %v652
    %v700 = vsub.f32 %v463, %v653
    %v701 = vsub.f32 %v464, %v654
    %v702 = vsub.f32 %v465, %v655
    %v703 = vsub.f32 %v466, %v656
    %v704 = vsub.f32 %v467, %v657
    %v705 = vsub.f32 %v468, %v658
    %v706 = vsub.f32 %v469, %v659
    %v707 = vsub.f32 %v470, %v660
    %v708 = vsub.f32 %v471, %v661
    %v709 = vsub.f32 %v472, %v662
    %v710 = vsub.f32 %v473, %v663
    %v711 = vsub.f32 %v474, %v664
    %v712 = vsub.f32 %v475, %v665
    %v713 = vsub.f32 %v476, %v666
    %v714 = vsub.f32 %v477, %v667
    %v715 = vsub.f32 %v478, %v668
    %v716 = vsub.f32 %v479, %v669
    %v717 = vsub.f32 %v480, %v670
    %v718 = vsub.f32 %v481, %v671
    %v719 = vsub.f32 %v482, %v672
    %v720 = vsub.f32 %v483, %v673
    %v721 = vsub.f32 %v484, %v674
    %v722 = vsub.f32 %v485, %v675
    %v723 = vsub.f32 %v486, %v676
    %v724 = vsub.f32 %v487, %v677
    %v725 = vsub.f32 %v488, %v678
    %v726 = vsub.f32 %v489, %v679
    %v727 = vsub.f32 %v490, %v680
    %v728 = vsub.f32 %v491, %v681
    %v729 = vsub.f32 %v492, %v682
    %v730 = vsub.f32 %v493, %v683
    %v731 = vsub.f32 %v494, %v684
    %v732 = vsub.f32 %v495, %v685
    %v733 = vsub.f32 %v496, %v686
    %v734 = vsub.f32 %v497, %v687
    %v735 = vsub.f32 %v498, %v688
    %v736 = vadd.f32 %v595, 0.5
    %v737 = vadd.f32 %v596, 0.5
    %v738 = vadd.f32 %v597, 0.5
    %v739 = vadd.f32 %v598, 0.5
    %v740 = vadd.f32 %v599, 0.5
    %v741 = vadd.f32 %v600, 0.5
    %v742 = vadd.f32 %v601, 0.5
    %v743 = vadd.f32 %v602, 0.5
    %v744 = vadd.f32 %v603, 0.5
    %v745 = vadd.f32 %v604, 0.5
    %v746 = vadd.f32 %v605, 0.5
    %v747 = vadd.f32 %v606, 0.5
    %v748 = vadd.f32 %v607, 0.5
    %v749 = vadd.f32 %v608, 0.5
    %v750 = vadd.f32 %v609, 0.5
    %v751 = vadd.f32 %v610, 0.5
    %v752 = vadd.f32 %v611, 0.5
    %v753 = vadd.f32 %v612, 0.5
    %v754 = vadd.f32 %v613, 0.5
    %v755 = vadd.f32 %v614, 0.5
    %v756 = vadd.f32 %v615, 0.5
    %v757 = vadd.f32 %v616, 0.5
    %v758 = vadd.f32 %v617, 0.5
    %v759 = vadd.f32 %v618, 0.5
    %v760 = vadd.f32 %v619, 0.5
    %v761 = vadd.f32 %v620, 0.5
    %v762 = vadd.f32 %v621, 0.5
    %v763 = vadd.f32 %v622, 0.5
    %v764 = vadd.f32 %v623, 0.5
    %v765 = vadd.f32 %v624, 0.5
    %v766 = vadd.f32 %v625, 0.5
    %v767 = vadd.f32 %v626, 0.5
    %v768 = vadd.f32 %v627, 0.5
    %v769 = vadd.f32 %v628, 0.5
    %v770 = vadd.f32 %v629, 0.5
    %v771 = vadd.f32 %v630, 0.5
    %v772 = vadd.f32 %v631, 0.5
    %v773 = vadd.f32 %v632, 0.5
    %v774 = vadd.f32 %v633, 0.5
    %v775 = vadd.f32 %v634, 0.5
    %v776 = vadd.f32 %v635, 0.5
    %v777 = vadd.f32 %v636, 0.5
    %v778 = vadd.f32 %v637, 0.5
    %v779 = vadd.f32 %v638, 0.5
    %v780 = vadd.f32 %v639, 0.5
    %v781 = vadd.f32 %v640, 0.5
    %v782 = vadd.f32 %v641, 0.5
    %v783 = vrcp.pop 20.0
    %v784 = vmul.f32 20.0, %v783
    %v785 = vsub.f32 1.0, %v784
    %v786 = vmul.f32 %v783, %v785
    %v787 = vadd.f32 %v783, %v786
    %vm788 = vweird.f32 %v783
    %v789 = vsel %vm788, %v783, %v787
    %v790 = vmul.f32 %v736, %v789
    %v791 = vmul.f32 %v737, %v789
    %v792 = vmul.f32 %v738, %v789
    %v793 = vmul.f32 %v739, %v789
    %v794 = vmul.f32 %v740, %v789
    %v795 = vmul.f32 %v741, %v789
    %v796 = vmul.f32 %v742, %v789
    %v797 = vmul.f32 %v743, %v789
    %v798 = vmul.f32 %v744, %v789
    %v799 = vmul.f32 %v745, %v789
    %v800 = vmul.f32 %v746, %v789
    %v801 = vmul.f32 %v747, %v789
    %v802 = vmul.f32 %v748, %v789
    %v803 = vmul.f32 %v749, %v789
    %v804 = vmul.f32 %v750, %v789
    %v805 = vmul.f32 %v751, %v789
    %v806 = vmul.f32 %v752, %v789
    %v807 = vmul.f32 %v753, %v789
    %v808 = vmul.f32 %v754, %v789
    %v809 = vmul.f32 %v755, %v789
    %v810 = vmul.f32 %v756, %v789
    %v811 = vmul.f32 %v757, %v789
    %v812 = vmul.f32 %v758, %v789
    %v813 = vmul.f32 %v759, %v789
    %v814 = vmul.f32 %v760, %v789
    %v815 = vmul.f32 %v761, %v789
    %v816 = vmul.f32 %v762, %v789
    %v817 = vmul.f32 %v763, %v789
    %v818 = vmul.f32 %v764, %v789
    %v819 = vmul.f32 %v765, %v789
    %v820 = vmul.f32 %v766, %v789
    %v821 = vmul.f32 %v767, %v789
    %v822 = vmul.f32 %v768, %v789
    %v823 = vmul.f32 %v769, %v789
    %v824 = vmul.f32 %v770, %v789
    %v825 = vmul.f32 %v771, %v789
    %v826 = vmul.f32 %v772, %v789
    %v827 = vmul.f32 %v773, %v789
    %v828 = vmul.f32 %v774, %v789
    %v829 = vmul.f32 %v775, %v789
    %v830 = vmul.f32 %v776, %v789
    %v831 = vmul.f32 %v777, %v789
    %v832 = vmul.f32 %v778, %v789
    %v833 = vmul.f32 %v779, %v789
    %v834 = vmul.f32 %v780, %v789
    %v835 = vmul.f32 %v781, %v789
    %v836 = vmul.f32 %v782, %v789
    %v837 = vfloor.f32 %v790
    %v838 = vfloor.f32 %v791
    %v839 = vfloor.f32 %v792
    %v840 = vfloor.f32 %v793
    %v841 = vfloor.f32 %v794
    %v842 = vfloor.f32 %v795
    %v843 = vfloor.f32 %v796
    %v844 = vfloor.f32 %v797
    %v845 = vfloor.f32 %v798
    %v846 = vfloor.f32 %v799
    %v847 = vfloor.f32 %v800
    %v848 = vfloor.f32 %v801
    %v849 = vfloor.f32 %v802
    %v850 = vfloor.f32 %v803
    %v851 = vfloor.f32 %v804
    %v852 = vfloor.f32 %v805
    %v853 = vfloor.f32 %v806
    %v854 = vfloor.f32 %v807
    %v855 = vfloor.f32 %v808
    %v856 = vfloor.f32 %v809
    %v857 = vfloor.f32 %v810
    %v858 = vfloor.f32 %v811
    %v859 = vfloor.f32 %v812
    %v860 = vfloor.f32 %v813
    %v861 = vfloor.f32 %v814
    %v862 = vfloor.f32 %v815
    %v863 = vfloor.f32 %v816
    %v864 = vfloor.f32 %v817
    %v865 = vfloor.f32 %v818
    %v866 = vfloor.f32 %v819
    %v867 = vfloor.f32 %v820
    %v868 = vfloor.f32 %v821
    %v869 = vfloor.f32 %v822
    %v870 = vfloor.f32 %v823
    %v871 = vfloor.f32 %v824
    %v872 = vfloor.f32 %v825
    %v873 = vfloor.f32 %v826
    %v874 = vfloor.f32 %v827
    %v875 = vfloor.f32 %v828
    %v876 = vfloor.f32 %v829
    %v877 = vfloor.f32 %v830
    %v878 = vfloor.f32 %v831
    %v879 = vfloor.f32 %v832
    %v880 = vfloor.f32 %v833
    %v881 = vfloor.f32 %v834
    %v882 = vfloor.f32 %v835
    %v883 = vfloor.f32 %v836
    %v884 = vmul.f32 %v837, 20.0
    %v885 = vmul.f32 %v838, 20.0
    %v886 = vmul.f32 %v839, 20.0
    %v887 = vmul.f32 %v840, 20.0
    %v888 = vmul.f32 %v841, 20.0
    %v889 = vmul.f32 %v842, 20.0
    %v890 = vmul.f32 %v843, 20.0
    %v891 = vmul.f32 %v844, 20.0
    %v892 = vmul.f32 %v845, 20.0
    %v893 = vmul.f32 %v846, 20.0
    %v894 = vmul.f32 %v847, 20.0
    %v895 = vmul.f32 %v848, 20.0
    %v896 = vmul.f32 %v849, 20.0
    %v897 = vmul.f32 %v850, 20.0
    %v898 = vmul.f32 %v851, 20.0
    %v899 = vmul.f32 %v852, 20.0
    %v900 = vmul.f32 %v853, 20.0
    %v901 = vmul.f32 %v854, 20.0
    %v902 = vmul.f32 %v855, 20.0
    %v903 = vmul.f32 %v856, 20.0
    %v904 = vmul.f32 %v857, 20.0
    %v905 = vmul.f32 %v858, 20.0
    %v906 = vmul.f32 %v859, 20.0
    %v907 = vmul.f32 %v860, 20.0
    %v908 = vmul.f32 %v861, 20.0
    %v909 = vmul.f32 %v862, 20.0
    %v910 = vmul.f32 %v863, 20.0
    %v911 = vmul.f32 %v864, 20.0
    %v912 = vmul.f32 %v865, 20.0
    %v913 = vmul.f32 %v866, 20.0
    %v914 = vmul.f32 %v867, 20.0
    %v915 = vmul.f32 %v868, 20.0
    %v916 = vmul.f32 %v869, 20.0
    %v917 = vmul.f32 %v870, 20.0
    %v918 = vmul.f32 %v871, 20.0
    %v919 = vmul.f32 %v872, 20.0
    %v920 = vmul.f32 %v873, 20.0
    %v921 = vmul.f32 %v874, 20.0
    %v922 = vmul.f32 %v875, 20.0
    %v923 = vmul.f32 %v876, 20.0
    %v924 = vmul.f32 %v877, 20.0
    %v925 = vmul.f32 %v878, 20.0
    %v926 = vmul.f32 %v879, 20.0
    %v927 = vmul.f32 %v880, 20.0
    %v928 = vmul.f32 %v881, 20.0
    %v929 = vmul.f32 %v882, 20.0
    %v930 = vmul.f32 %v883, 20.0
    %v931 = vsub.f32 %v595, %v884
    %v932 = vsub.f32 %v596, %v885
    %v933 = vsub.f32 %v597, %v886
    %v934 = vsub.f32 %v598, %v887
    %v935 = vsub.f32 %v599, %v888
    %v936 = vsub.f32 %v600, %v889
    %v937 = vsub.f32 %v601, %v890
    %v938 = vsub.f32 %v602, %v891
    %v939 = vsub.f32 %v603, %v892
    %v940 = vsub.f32 %v604, %v893
    %v941 = vsub.f32 %v605, %v894
    %v942 = vsub.f32 %v606, %v895
    %v943 = vsub.f32 %v607, %v896
    %v944 = vsub.f32 %v608, %v897
    %v945 = vsub.f32 %v609, %v898
    %v946 = vsub.f32 %v610, %v899
    %v947 = vsub.f32 %v611, %v900
    %v948 = vsub.f32 %v612, %v901
    %v949 = vsub.f32 %v613, %v902
    %v950 = vsub.f32 %v614, %v903
    %v951 = vsub.f32 %v615, %v904
    %v952 = vsub.f32 %v616, %v905
    %v953 = vsub.f32 %v617, %v906
    %v954 = vsub.f32 %v618, %v907
    %v955 = vsub.f32 %v619, %v908
    %v956 = vsub.f32 %v620, %v909
    %v957 = vsub.f32 %v621, %v910
    %v958 = vsub.f32 %v622, %v911
    %v959 = vsub.f32 %v623, %v912
    %v960 = vsub.f32 %v624, %v913
    %v961 = vsub.f32 %v625, %v914
    %v962 = vsub.f32 %v626, %v915
    %v963 = vsub.f32 %v627, %v916
    %v964 = vsub.f32 %v628, %v917
    %v965 = vsub.f32 %v629, %v918
    %v966 = vsub.f32 %v630, %v919
    %v967 = vsub.f32 %v631, %v920
    %v968 = vsub.f32 %v632, %v921
    %v969 = vsub.f32 %v633, %v922
    %v970 = vsub.f32 %v634, %v923
    %v971 = vsub.f32 %v635, %v924
    %v972 = vsub.f32 %v636, %v925
    %v973 = vsub.f32 %v637, %v926
    %v974 = vsub.f32 %v638, %v927
    %v975 = vsub.f32 %v639, %v928
    %v976 = vsub.f32 %v640, %v929
    %v977 = vsub.f32 %v641, %v930
    %v978 = vmul.f32 %v689, 2.0
    %v979 = vmul.f32 %v690, 2.0
    %v980 = vmul.f32 %v691, 2.0
    %v981 = vmul.f32 %v692, 2.0
    %v982 = vmul.f32 %v693, 2.0
    %v983 = vmul.f32 %v694, 2.0
    %v984 = vmul.f32 %v695, 2.0
    %v985 = vmul.f32 %v696, 2.0
    %v986 = vmul.f32 %v697, 2.0
    %v987 = vmul.f32 %v698, 2.0
    %v988 = vmul.f32 %v699, 2.0
    %v989 = vmul.f32 %v700, 2.0
    %v990 = vmul.f32 %v701, 2.0
    %v991 = vmul.f32 %v702, 2.0
    %v992 = vmul.f32 %v703, 2.0
    %v993 = vmul.f32 %v704, 2.0
    %v994 = vmul.f32 %v705, 2.0
    %v995 = vmul.f32 %v706, 2.0
    %v996 = vmul.f32 %v707, 2.0
    %v997 = vmul.f32 %v708, 2.0
    %v998 = vmul.f32 %v709, 2.0
    %v999 = vmul.f32 %v710, 2.0
    %v1000 = vmul.f32 %v711, 2.0
    %v1001 = vmul.f32 %v712, 2.0
    %v1002 = vmul.f32 %v713, 2.0
    %v1003 = vmul.f32 %v714, 2.0
    %v1004 = vmul.f32 %v715, 2.0
    %v1005 = vmul.f32 %v716, 2.0
    %v1006 = vmul.f32 %v717, 2.0
    %v1007 = vmul.f32 %v718, 2.0
    %v1008 = vmul.f32 %v719, 2.0
    %v1009 = vmul.f32 %v720, 2.0
    %v1010 = vmul.f32 %v721, 2.0
    %v1011 = vmul.f32 %v722, 2.0
    %v1012 = vmul.f32 %v723, 2.0
    %v1013 = vmul.f32 %v724, 2.0
    %v1014 = vmul.f32 %v725, 2.0
    %v1015 = vmul.f32 %v726, 2.0
    %v1016 = vmul.f32 %v727, 2.0
    %v1017 = vmul.f32 %v728, 2.0
    %v1018 = vmul.f32 %v729, 2.0
    %v1019 = vmul.f32 %v730, 2.0
    %v1020 = vmul.f32 %v731, 2.0
    %v1021 = vmul.f32 %v732, 2.0
    %v1022 = vmul.f32 %v733, 2.0
    %v1023 = vmul.f32 %v734, 2.0
    %v1024 = vmul.f32 %v735, 2.0
    %v1025 = vadd.f32 %v978, 1.0
    %v1026 = vadd.f32 %v979, 1.0
    %v1027 = vadd.f32 %v980, 1.0
    %v1028 = vadd.f32 %v981, 1.0
    %v1029 = vadd.f32 %v982, 1.0
    %v1030 = vadd.f32 %v983, 1.0
    %v1031 = vadd.f32 %v984, 1.0
    %v1032 = vadd.f32 %v985, 1.0
    %v1033 = vadd.f32 %v986, 1.0
    %v1034 = vadd.f32 %v987, 1.0
    %v1035 = vadd.f32 %v988, 1.0
    %v1036 = vadd.f32 %v989, 1.0
    %v1037 = vadd.f32 %v990, 1.0
    %v1038 = vadd.f32 %v991, 1.0
    %v1039 = vadd.f32 %v992, 1.0
    %v1040 = vadd.f32 %v993, 1.0
    %v1041 = vadd.f32 %v994, 1.0
    %v1042 = vadd.f32 %v995, 1.0
    %v1043 = vadd.f32 %v996, 1.0
    %v1044 = vadd.f32 %v997, 1.0
    %v1045 = vadd.f32 %v998, 1.0
    %v1046 = vadd.f32 %v999, 1.0
    %v1047 = vadd.f32 %v1000, 1.0
    %v1048 = vadd.f32 %v1001, 1.0
    %v1049 = vadd.f32 %v1002, 1.0
    %v1050 = vadd.f32 %v1003, 1.0
    %v1051 = vadd.f32 %v1004, 1.0
    %v1052 = vadd.f32 %v1005, 1.0
    %v1053 = vadd.f32 %v1006, 1.0
    %v1054 = vadd.f32 %v1007, 1.0
    %v1055 = vadd.f32 %v1008, 1.0
    %v1056 = vadd.f32 %v1009, 1.0
    %v1057 = vadd.f32 %v1010, 1.0
    %v1058 = vadd.f32 %v1011, 1.0
    %v1059 = vadd.f32 %v1012, 1.0
    %v1060 = vadd.f32 %v1013, 1.0
    %v1061 = vadd.f32 %v1014, 1.0
    %v1062 = vadd.f32 %v1015, 1.0
    %v1063 = vadd.f32 %v1016, 1.0
    %v1064 = vadd.f32 %v1017, 1.0
    %v1065 = vadd.f32 %v1018, 1.0
    %v1066 = vadd.f32 %v1019, 1.0
    %v1067 = vadd.f32 %v1020, 1.0
    %v1068 = vadd.f32 %v1021, 1.0
    %v1069 = vadd.f32 %v1022, 1.0
    %v1070 = vadd.f32 %v1023, 1.0
    %v1071 = vadd.f32 %v1024, 1.0
    %v1072 = vmul.f32 %v1025, %v547
    %v1073 = vmul.f32 %v1026, %v547
    %v1074 = vmul.f32 %v1027, %v547
    %v1075 = vmul.f32 %v1028, %v547
    %v1076 = vmul.f32 %v1029, %v547
    %v1077 = vmul.f32 %v1030, %v547
    %v1078 = vmul.f32 %v1031, %v547
    %v1079 = vmul.f32 %v1032, %v547
    %v1080 = vmul.f32 %v1033, %v547
    %v1081 = vmul.f32 %v1034, %v547
    %v1082 = vmul.f32 %v1035, %v547
    %v1083 = vmul.f32 %v1036, %v547
    %v1084 = vmul.f32 %v1037, %v547
    %v1085 = vmul.f32 %v1038, %v547
    %v1086 = vmul.f32 %v1039, %v547
    %v1087 = vmul.f32 %v1040, %v547
    %v1088 = vmul.f32 %v1041, %v547
    %v1089 = vmul.f32 %v1042, %v547
    %v1090 = vmul.f32 %v1043, %v547
    %v1091 = vmul.f32 %v1044, %v547
    %v1092 = vmul.f32 %v1045, %v547
    %v1093 = vmul.f32 %v1046, %v547
    %v1094 = vmul.f32 %v1047, %v547
    %v1095 = vmul.f32 %v1048, %v547
    %v1096 = vmul.f32 %v1049, %v547
    %v1097 = vmul.f32 %v1050, %v547
    %v1098 = vmul.f32 %v1051, %v547
    %v1099 = vmul.f32 %v1052, %v547
    %v1100 = vmul.f32 %v1053, %v547
    %v1101 = vmul.f32 %v1054, %v547
    %v1102 = vmul.f32 %v1055, %v547
    %v1103 = vmul.f32 %v1056, %v547
    %v1104 = vmul.f32 %v1057, %v547
    %v1105 = vmul.f32 %v1058, %v547
    %v1106 = vmul.f32 %v1059, %v547
    %v1107 = vmul.f32 %v1060, %v547
    %v1108 = vmul.f32 %v1061, %v547
    %v1109 = vmul.f32 %v1062, %v547
    %v1110 = vmul.f32 %v1063, %v547
    %v1111 = vmul.f32 %v1064, %v547
    %v1112 = vmul.f32 %v1065, %v547
    %v1113 = vmul.f32 %v1066, %v547
    %v1114 = vmul.f32 %v1067, %v547
    %v1115 = vmul.f32 %v1068, %v547
    %v1116 = vmul.f32 %v1069, %v547
    %v1117 = vmul.f32 %v1070, %v547
    %v1118 = vmul.f32 %v1071, %v547
    %v1119 = vsub.f32 %v1072, 1.0
    %v1120 = vsub.f32 %v1073, 1.0
    %v1121 = vsub.f32 %v1074, 1.0
    %v1122 = vsub.f32 %v1075, 1.0
    %v1123 = vsub.f32 %v1076, 1.0
    %v1124 = vsub.f32 %v1077, 1.0
    %v1125 = vsub.f32 %v1078, 1.0
    %v1126 = vsub.f32 %v1079, 1.0
    %v1127 = vsub.f32 %v1080, 1.0
    %v1128 = vsub.f32 %v1081, 1.0
    %v1129 = vsub.f32 %v1082, 1.0
    %v1130 = vsub.f32 %v1083, 1.0
    %v1131 = vsub.f32 %v1084, 1.0
    %v1132 = vsub.f32 %v1085, 1.0
    %v1133 = vsub.f32 %v1086, 1.0
    %v1134 = vsub.f32 %v1087, 1.0
    %v1135 = vsub.f32 %v1088, 1.0
    %v1136 = vsub.f32 %v1089, 1.0
    %v1137 = vsub.f32 %v1090, 1.0
    %v1138 = vsub.f32 %v1091, 1.0
    %v1139 = vsub.f32 %v1092, 1.0
    %v1140 = vsub.f32 %v1093, 1.0
    %v1141 = vsub.f32 %v1094, 1.0
    %v1142 = vsub.f32 %v1095, 1.0
    %v1143 = vsub.f32 %v1096, 1.0
    %v1144 = vsub.f32 %v1097, 1.0
    %v1145 = vsub.f32 %v1098, 1.0
    %v1146 = vsub.f32 %v1099, 1.0
    %v1147 = vsub.f32 %v1100, 1.0
    %v1148 = vsub.f32 %v1101, 1.0
    %v1149 = vsub.f32 %v1102, 1.0
    %v1150 = vsub.f32 %v1103, 1.0
    %v1151 = vsub.f32 %v1104, 1.0
    %v1152 = vsub.f32 %v1105, 1.0
    %v1153 = vsub.f32 %v1106, 1.0
    %v1154 = vsub.f32 %v1107, 1.0
    %v1155 = vsub.f32 %v1108, 1.0
    %v1156 = vsub.f32 %v1109, 1.0
    %v1157 = vsub.f32 %v1110, 1.0
    %v1158 = vsub.f32 %v1111, 1.0
    %v1159 = vsub.f32 %v1112, 1.0
    %v1160 = vsub.f32 %v1113, 1.0
    %v1161 = vsub.f32 %v1114, 1.0
    %v1162 = vsub.f32 %v1115, 1.0
    %v1163 = vsub.f32 %v1116, 1.0
    %v1164 = vsub.f32 %v1117, 1.0
    %v1165 = vsub.f32 %v1118, 1.0
    %v1166 = vmul.f32 %v931, 2.0
    %v1167 = vmul.f32 %v932, 2.0
    %v1168 = vmul.f32 %v933, 2.0
    %v1169 = vmul.f32 %v934, 2.0
    %v1170 = vmul.f32 %v935, 2.0
    %v1171 = vmul.f32 %v936, 2.0
    %v1172 = vmul.f32 %v937, 2.0
    %v1173 = vmul.f32 %v938, 2.0
    %v1174 = vmul.f32 %v939, 2.0
    %v1175 = vmul.f32 %v940, 2.0
    %v1176 = vmul.f32 %v941, 2.0
    %v1177 = vmul.f32 %v942, 2.0
    %v1178 = vmul.f32 %v943, 2.0
    %v1179 = vmul.f32 %v944, 2.0
    %v1180 = vmul.f32 %v945, 2.0
    %v1181 = vmul.f32 %v946, 2.0
    %v1182 = vmul.f32 %v947, 2.0
    %v1183 = vmul.f32 %v948, 2.0
    %v1184 = vmul.f32 %v949, 2.0
    %v1185 = vmul.f32 %v950, 2.0
    %v1186 = vmul.f32 %v951, 2.0
    %v1187 = vmul.f32 %v952, 2.0
    %v1188 = vmul.f32 %v953, 2.0
    %v1189 = vmul.f32 %v954, 2.0
    %v1190 = vmul.f32 %v955, 2.0
    %v1191 = vmul.f32 %v956, 2.0
    %v1192 = vmul.f32 %v957, 2.0
    %v1193 = vmul.f32 %v958, 2.0
    %v1194 = vmul.f32 %v959, 2.0
    %v1195 = vmul.f32 %v960, 2.0
    %v1196 = vmul.f32 %v961, 2.0
    %v1197 = vmul.f32 %v962, 2.0
    %v1198 = vmul.f32 %v963, 2.0
    %v1199 = vmul.f32 %v964, 2.0
    %v1200 = vmul.f32 %v965, 2.0
    %v1201 = vmul.f32 %v966, 2.0
    %v1202 = vmul.f32 %v967, 2.0
    %v1203 = vmul.f32 %v968, 2.0
    %v1204 = vmul.f32 %v969, 2.0
    %v1205 = vmul.f32 %v970, 2.0
    %v1206 = vmul.f32 %v971, 2.0
    %v1207 = vmul.f32 %v972, 2.0
    %v1208 = vmul.f32 %v973, 2.0
    %v1209 = vmul.f32 %v974, 2.0
    %v1210 = vmul.f32 %v975, 2.0
    %v1211 = vmul.f32 %v976, 2.0
    %v1212 = vmul.f32 %v977, 2.0
    %v1213 = vadd.f32 %v1166, 1.0
    %v1214 = vadd.f32 %v1167, 1.0
    %v1215 = vadd.f32 %v1168, 1.0
    %v1216 = vadd.f32 %v1169, 1.0
    %v1217 = vadd.f32 %v1170, 1.0
    %v1218 = vadd.f32 %v1171, 1.0
    %v1219 = vadd.f32 %v1172, 1.0
    %v1220 = vadd.f32 %v1173, 1.0
    %v1221 = vadd.f32 %v1174, 1.0
    %v1222 = vadd.f32 %v1175, 1.0
    %v1223 = vadd.f32 %v1176, 1.0
    %v1224 = vadd.f32 %v1177, 1.0
    %v1225 = vadd.f32 %v1178, 1.0
    %v1226 = vadd.f32 %v1179, 1.0
    %v1227 = vadd.f32 %v1180, 1.0
    %v1228 = vadd.f32 %v1181, 1.0
    %v1229 = vadd.f32 %v1182, 1.0
    %v1230 = vadd.f32 %v1183, 1.0
    %v1231 = vadd.f32 %v1184, 1.0
    %v1232 = vadd.f32 %v1185, 1.0
    %v1233 = vadd.f32 %v1186, 1.0
    %v1234 = vadd.f32 %v1187, 1.0
    %v1235 = vadd.f32 %v1188, 1.0
    %v1236 = vadd.f32 %v1189, 1.0
    %v1237 = vadd.f32 %v1190, 1.0
    %v1238 = vadd.f32 %v1191, 1.0
    %v1239 = vadd.f32 %v1192, 1.0
    %v1240 = vadd.f32 %v1193, 1.0
    %v1241 = vadd.f32 %v1194, 1.0
    %v1242 = vadd.f32 %v1195, 1.0
    %v1243 = vadd.f32 %v1196, 1.0
    %v1244 = vadd.f32 %v1197, 1.0
    %v1245 = vadd.f32 %v1198, 1.0
    %v1246 = vadd.f32 %v1199, 1.0
    %v1247 = vadd.f32 %v1200, 1.0
    %v1248 = vadd.f32 %v1201, 1.0
    %v1249 = vadd.f32 %v1202, 1.0
    %v1250 = vadd.f32 %v1203, 1.0
    %v1251 = vadd.f32 %v1204, 1.0
    %v1252 = vadd.f32 %v1205, 1.0
    %v1253 = vadd.f32 %v1206, 1.0
    %v1254 = vadd.f32 %v1207, 1.0
    %v1255 = vadd.f32 %v1208, 1.0
    %v1256 = vadd.f32 %v1209, 1.0
    %v1257 = vadd.f32 %v1210, 1.0
    %v1258 = vadd.f32 %v1211, 1.0
    %v1259 = vadd.f32 %v1212, 1.0
    %v1260 = vmul.f32 %v1213, %v789
    %v1261 = vmul.f32 %v1214, %v789
    %v1262 = vmul.f32 %v1215, %v789
    %v1263 = vmul.f32 %v1216, %v789
    %v1264 = vmul.f32 %v1217, %v789
    %v1265 = vmul.f32 %v1218, %v789
    %v1266 = vmul.f32 %v1219, %v789
    %v1267 = vmul.f32 %v1220, %v789
    %v1268 = vmul.f32 %v1221, %v789
    %v1269 = vmul.f32 %v1222, %v789
    %v1270 = vmul.f32 %v1223, %v789
    %v1271 = vmul.f32 %v1224, %v789
    %v1272 = vmul.f32 %v1225, %v789
    %v1273 = vmul.f32 %v1226, %v789
    %v1274 = vmul.f32 %v1227, %v789
    %v1275 = vmul.f32 %v1228, %v789
    %v1276 = vmul.f32 %v1229, %v789
    %v1277 = vmul.f32 %v1230, %v789
    %v1278 = vmul.f32 %v1231, %v789
    %v1279 = vmul.f32 %v1232, %v789
    %v1280 = vmul.f32 %v1233, %v789
    %v1281 = vmul.f32 %v1234, %v789
    %v1282 = vmul.f32 %v1235, %v789
    %v1283 = vmul.f32 %v1236, %v789
    %v1284 = vmul.f32 %v1237, %v789
    %v1285 = vmul.f32 %v1238, %v789
    %v1286 = vmul.f32 %v1239, %v789
    %v1287 = vmul.f32 %v1240, %v789
    %v1288 = vmul.f32 %v1241, %v789
    %v1289 = vmul.f32 %v1242, %v789
    %v1290 = vmul.f32 %v1243, %v789
    %v1291 = vmul.f32 %v1244, %v789
    %v1292 = vmul.f32 %v1245, %v789
    %v1293 = vmul.f32 %v1246, %v789
    %v1294 = vmul.f32 %v1247, %v789
    %v1295 = vmul.f32 %v1248, %v789
    %v1296 = vmul.f32 %v1249, %v789
    %v1297 = vmul.f32 %v1250, %v789
    %v1298 = vmul.f32 %v1251, %v789
    %v1299 = vmul.f32 %v1252, %v789
    %v1300 = vmul.f32 %v1253, %v789
    %v1301 = vmul.f32 %v1254, %v789
    %v1302 = vmul.f32 %v1255, %v789
    %v1303 = vmul.f32 %v1256, %v789
    %v1304 = vmul.f32 %v1257, %v789
    %v1305 = vmul.f32 %v1258, %v789
    %v1306 = vmul.f32 %v1259, %v789
    %v1307 = vsub.f32 %v1260, 1.0
    %v1308 = vsub.f32 %v1261, 1.0
    %v1309 = vsub.f32 %v1262, 1.0
    %v1310 = vsub.f32 %v1263, 1.0
    %v1311 = vsub.f32 %v1264, 1.0
    %v1312 = vsub.f32 %v1265, 1.0
    %v1313 = vsub.f32 %v1266, 1.0
    %v1314 = vsub.f32 %v1267, 1.0
    %v1315 = vsub.f32 %v1268, 1.0
    %v1316 = vsub.f32 %v1269, 1.0
    %v1317 = vsub.f32 %v1270, 1.0
    %v1318 = vsub.f32 %v1271, 1.0
    %v1319 = vsub.f32 %v1272, 1.0
    %v1320 = vsub.f32 %v1273, 1.0
    %v1321 = vsub.f32 %v1274, 1.0
    %v1322 = vsub.f32 %v1275, 1.0
    %v1323 = vsub.f32 %v1276, 1.0
    %v1324 = vsub.f32 %v1277, 1.0
    %v1325 = vsub.f32 %v1278, 1.0
    %v1326 = vsub.f32 %v1279, 1.0
    %v1327 = vsub.f32 %v1280, 1.0
    %v1328 = vsub.f32 %v1281, 1.0
    %v1329 = vsub.f32 %v1282, 1.0
    %v1330 = vsub.f32 %v1283, 1.0
    %v1331 = vsub.f32 %v1284, 1.0
    %v1332 = vsub.f32 %v1285, 1.0
    %v1333 = vsub.f32 %v1286, 1.0
    %v1334 = vsub.f32 %v1287, 1.0
    %v1335 = vsub.f32 %v1288, 1.0
    %v1336 = vsub.f32 %v1289, 1.0
    %v1337 = vsub.f32 %v1290, 1.0
    %v1338 = vsub.f32 %v1291, 1.0
    %v1339 = vsub.f32 %v1292, 1.0
    %v1340 = vsub.f32 %v1293, 1.0
    %v1341 = vsub.f32 %v1294, 1.0
    %v1342 = vsub.f32 %v1295, 1.0
    %v1343 = vsub.f32 %v1296, 1.0
    %v1344 = vsub.f32 %v1297, 1.0
    %v1345 = vsub.f32 %v1298, 1.0
    %v1346 = vsub.f32 %v1299, 1.0
    %v1347 = vsub.f32 %v1300, 1.0
    %v1348 = vsub.f32 %v1301, 1.0
    %v1349 = vsub.f32 %v1302, 1.0
    %v1350 = vsub.f32 %v1303, 1.0
    %v1351 = vsub.f32 %v1304, 1.0
    %v1352 = vsub.f32 %v1305, 1.0
    %v1353 = vsub.f32 %v1306, 1.0
    %v1354 = vmul.f32 %v837, 2.0
    %v1355 = vmul.f32 %v838, 2.0
    %v1356 = vmul.f32 %v839, 2.0
    %v1357 = vmul.f32 %v840, 2.0
    %v1358 = vmul.f32 %v841, 2.0
    %v1359 = vmul.f32 %v842, 2.0
    %v1360 = vmul.f32 %v843, 2.0
    %v1361 = vmul.f32 %v844, 2.0
    %v1362 = vmul.f32 %v845, 2.0
    %v1363 = vmul.f32 %v846, 2.0
    %v1364 = vmul.f32 %v847, 2.0
    %v1365 = vmul.f32 %v848, 2.0
    %v1366 = vmul.f32 %v849, 2.0
    %v1367 = vmul.f32 %v850, 2.0
    %v1368 = vmul.f32 %v851, 2.0
    %v1369 = vmul.f32 %v852, 2.0
    %v1370 = vmul.f32 %v853, 2.0
    %v1371 = vmul.f32 %v854, 2.0
    %v1372 = vmul.f32 %v855, 2.0
    %v1373 = vmul.f32 %v856, 2.0
    %v1374 = vmul.f32 %v857, 2.0
    %v1375 = vmul.f32 %v858, 2.0
    %v1376 = vmul.f32 %v859, 2.0
    %v1377 = vmul.f32 %v860, 2.0
    %v1378 = vmul.f32 %v861, 2.0
    %v1379 = vmul.f32 %v862, 2.0
    %v1380 = vmul.f32 %v863, 2.0
    %v1381 = vmul.f32 %v864, 2.0
    %v1382 = vmul.f32 %v865, 2.0
    %v1383 = vmul.f32 %v866, 2.0
    %v1384 = vmul.f32 %v867, 2.0
    %v1385 = vmul.f32 %v868, 2.0
    %v1386 = vmul.f32 %v869, 2.0
    %v1387 = vmul.f32 %v870, 2.0
    %v1388 = vmul.f32 %v871, 2.0
    %v1389 = vmul.f32 %v872, 2.0
    %v1390 = vmul.f32 %v873, 2.0
    %v1391 = vmul.f32 %v874, 2.0
    %v1392 = vmul.f32 %v875, 2.0
    %v1393 = vmul.f32 %v876, 2.0
    %v1394 = vmul.f32 %v877, 2.0
    %v1395 = vmul.f32 %v878, 2.0
    %v1396 = vmul.f32 %v879, 2.0
    %v1397 = vmul.f32 %v880, 2.0
    %v1398 = vmul.f32 %v881, 2.0
    %v1399 = vmul.f32 %v882, 2.0
    %v1400 = vmul.f32 %v883, 2.0
    %v1401 = vadd.f32 %v1354, 1.0
    %v1402 = vadd.f32 %v1355, 1.0
    %v1403 = vadd.f32 %v1356, 1.0
    %v1404 = vadd.f32 %v1357, 1.0
    %v1405 = vadd.f32 %v1358, 1.0
    %v1406 = vadd.f32 %v1359, 1.0
    %v1407 = vadd.f32 %v1360, 1.0
    %v1408 = vadd.f32 %v1361, 1.0
    %v1409 = vadd.f32 %v1362, 1.0
    %v1410 = vadd.f32 %v1363, 1.0
    %v1411 = vadd.f32 %v1364, 1.0
    %v1412 = vadd.f32 %v1365, 1.0
    %v1413 = vadd.f32 %v1366, 1.0
    %v1414 = vadd.f32 %v1367, 1.0
    %v1415 = vadd.f32 %v1368, 1.0
    %v1416 = vadd.f32 %v1369, 1.0
    %v1417 = vadd.f32 %v1370, 1.0
    %v1418 = vadd.f32 %v1371, 1.0
    %v1419 = vadd.f32 %v1372, 1.0
    %v1420 = vadd.f32 %v1373, 1.0
    %v1421 = vadd.f32 %v1374, 1.0
    %v1422 = vadd.f32 %v1375, 1.0
    %v1423 = vadd.f32 %v1376, 1.0
    %v1424 = vadd.f32 %v1377, 1.0
    %v1425 = vadd.f32 %v1378, 1.0
    %v1426 = vadd.f32 %v1379, 1.0
    %v1427 = vadd.f32 %v1380, 1.0
    %v1428 = vadd.f32 %v1381, 1.0
    %v1429 = vadd.f32 %v1382, 1.0
    %v1430 = vadd.f32 %v1383, 1.0
    %v1431 = vadd.f32 %v1384, 1.0
    %v1432 = vadd.f32 %v1385, 1.0
    %v1433 = vadd.f32 %v1386, 1.0
    %v1434 = vadd.f32 %v1387, 1.0
    %v1435 = vadd.f32 %v1388, 1.0
    %v1436 = vadd.f32 %v1389, 1.0
    %v1437 = vadd.f32 %v1390, 1.0
    %v1438 = vadd.f32 %v1391, 1.0
    %v1439 = vadd.f32 %v1392, 1.0
    %v1440 = vadd.f32 %v1393, 1.0
    %v1441 = vadd.f32 %v1394, 1.0
    %v1442 = vadd.f32 %v1395, 1.0
    %v1443 = vadd.f32 %v1396, 1.0
    %v1444 = vadd.f32 %v1397, 1.0
    %v1445 = vadd.f32 %v1398, 1.0
    %v1446 = vadd.f32 %v1399, 1.0
    %v1447 = vadd.f32 %v1400, 1.0
    %v1448 = vrcp.pop 10.0
    %v1449 = vmul.f32 10.0, %v1448
    %v1450 = vsub.f32 1.0, %v1449
    %v1451 = vmul.f32 %v1448, %v1450
    %v1452 = vadd.f32 %v1448, %v1451
    %vm1453 = vweird.f32 %v1448
    %v1454 = vsel %vm1453, %v1448, %v1452
    %v1455 = vmul.f32 %v1401, %v1454
    %v1456 = vmul.f32 %v1402, %v1454
    %v1457 = vmul.f32 %v1403, %v1454
    %v1458 = vmul.f32 %v1404, %v1454
    %v1459 = vmul.f32 %v1405, %v1454
    %v1460 = vmul.f32 %v1406, %v1454
    %v1461 = vmul.f32 %v1407, %v1454
    %v1462 = vmul.f32 %v1408, %v1454
    %v1463 = vmul.f32 %v1409, %v1454
    %v1464 = vmul.f32 %v1410, %v1454
    %v1465 = vmul.f32 %v1411, %v1454
    %v1466 = vmul.f32 %v1412, %v1454
    %v1467 = vmul.f32 %v1413, %v1454
    %v1468 = vmul.f32 %v1414, %v1454
    %v1469 = vmul.f32 %v1415, %v1454
    %v1470 = vmul.f32 %v1416, %v1454
    %v1471 = vmul.f32 %v1417, %v1454
    %v1472 = vmul.f32 %v1418, %v1454
    %v1473 = vmul.f32 %v1419, %v1454
    %v1474 = vmul.f32 %v1420, %v1454
    %v1475 = vmul.f32 %v1421, %v1454
    %v1476 = vmul.f32 %v1422, %v1454
    %v1477 = vmul.f32 %v1423, %v1454
    %v1478 = vmul.f32 %v1424, %v1454
    %v1479 = vmul.f32 %v1425, %v1454
    %v1480 = vmul.f32 %v1426, %v1454
    %v1481 = vmul.f32 %v1427, %v1454
    %v1482 = vmul.f32 %v1428, %v1454
    %v1483 = vmul.f32 %v1429, %v1454
    %v1484 = vmul.f32 %v1430, %v1454
    %v1485 = vmul.f32 %v1431, %v1454
    %v1486 = vmul.f32 %v1432, %v1454
    %v1487 = vmul.f32 %v1433, %v1454
    %v1488 = vmul.f32 %v1434, %v1454
    %v1489 = vmul.f32 %v1435, %v1454
    %v1490 = vmul.f32 %v1436, %v1454
    %v1491 = vmul.f32 %v1437, %v1454
    %v1492 = vmul.f32 %v1438, %v1454
    %v1493 = vmul.f32 %v1439, %v1454
    %v1494 = vmul.f32 %v1440, %v1454
    %v1495 = vmul.f32 %v1441, %v1454
    %v1496 = vmul.f32 %v1442, %v1454
    %v1497 = vmul.f32 %v1443, %v1454
    %v1498 = vmul.f32 %v1444, %v1454
    %v1499 = vmul.f32 %v1445, %v1454
    %v1500 = vmul.f32 %v1446, %v1454
    %v1501 = vmul.f32 %v1447, %v1454
    %v1502 = vsub.f32 %v1455, 1.0
    %v1503 = vsub.f32 %v1456, 1.0
    %v1504 = vsub.f32 %v1457, 1.0
    %v1505 = vsub.f32 %v1458, 1.0
    %v1506 = vsub.f32 %v1459, 1.0
    %v1507 = vsub.f32 %v1460, 1.0
    %v1508 = vsub.f32 %v1461, 1.0
    %v1509 = vsub.f32 %v1462, 1.0
    %v1510 = vsub.f32 %v1463, 1.0
    %v1511 = vsub.f32 %v1464, 1.0
    %v1512 = vsub.f32 %v1465, 1.0
    %v1513 = vsub.f32 %v1466, 1.0
    %v1514 = vsub.f32 %v1467, 1.0
    %v1515 = vsub.f32 %v1468, 1.0
    %v1516 = vsub.f32 %v1469, 1.0
    %v1517 = vsub.f32 %v1470, 1.0
    %v1518 = vsub.f32 %v1471, 1.0
    %v1519 = vsub.f32 %v1472, 1.0
    %v1520 = vsub.f32 %v1473, 1.0
    %v1521 = vsub.f32 %v1474, 1.0
    %v1522 = vsub.f32 %v1475, 1.0
    %v1523 = vsub.f32 %v1476, 1.0
    %v1524 = vsub.f32 %v1477, 1.0
    %v1525 = vsub.f32 %v1478, 1.0
    %v1526 = vsub.f32 %v1479, 1.0
    %v1527 = vsub.f32 %v1480, 1.0
    %v1528 = vsub.f32 %v1481, 1.0
    %v1529 = vsub.f32 %v1482, 1.0
    %v1530 = vsub.f32 %v1483, 1.0
    %v1531 = vsub.f32 %v1484, 1.0
    %v1532 = vsub.f32 %v1485, 1.0
    %v1533 = vsub.f32 %v1486, 1.0
    %v1534 = vsub.f32 %v1487, 1.0
    %v1535 = vsub.f32 %v1488, 1.0
    %v1536 = vsub.f32 %v1489, 1.0
    %v1537 = vsub.f32 %v1490, 1.0
    %v1538 = vsub.f32 %v1491, 1.0
    %v1539 = vsub.f32 %v1492, 1.0
    %v1540 = vsub.f32 %v1493, 1.0
    %v1541 = vsub.f32 %v1494, 1.0
    %v1542 = vsub.f32 %v1495, 1.0
    %v1543 = vsub.f32 %v1496, 1.0
    %v1544 = vsub.f32 %v1497, 1.0
    %v1545 = vsub.f32 %v1498, 1.0
    %v1546 = vsub.f32 %v1499, 1.0
    %v1547 = vsub.f32 %v1500, 1.0
    %v1548 = vsub.f32 %v1501, 1.0
    %1550 = vset.pattern.permute.xlu0 0
    %1551 = vperm.xlu0 %1550, %v410
    %v1552 = vpop.permute.xlu0 %1551
    %1555 = vset.pattern.permute.xlu0 0
    %1556 = vperm.xlu0 %1555, %v411
    %v1557 = vpop.permute.xlu0 %1556
    %1560 = vset.pattern.permute.xlu0 0
    %1561 = vperm.xlu0 %1560, %v412
    %v1562 = vpop.permute.xlu0 %1561
    %1565 = vset.pattern.permute.xlu0 0
    %1566 = vperm.xlu0 %1565, %v413
    %v1567 = vpop.permute.xlu0 %1566
    %1570 = vset.pattern.permute.xlu0 0
    %1571 = vperm.xlu0 %1570, %v414
    %v1572 = vpop.permute.xlu0 %1571
    %v1574 = vmul.f32 %v1552, %v1119
    %v1575 = vmul.f32 %v1552, %v1120
    %v1576 = vmul.f32 %v1552, %v1121
    %v1577 = vmul.f32 %v1552, %v1122
    %v1578 = vmul.f32 %v1552, %v1123
    %v1579 = vmul.f32 %v1552, %v1124
    %v1580 = vmul.f32 %v1552, %v1125
    %v1581 = vmul.f32 %v1552, %v1126
    %v1582 = vmul.f32 %v1552, %v1127
    %v1583 = vmul.f32 %v1552, %v1128
    %v1584 = vmul.f32 %v1552, %v1129
    %v1585 = vmul.f32 %v1552, %v1130
    %v1586 = vmul.f32 %v1552, %v1131
    %v1587 = vmul.f32 %v1552, %v1132
    %v1588 = vmul.f32 %v1552, %v1133
    %v1589 = vmul.f32 %v1552, %v1134
    %v1590 = vmul.f32 %v1552, %v1135
    %v1591 = vmul.f32 %v1552, %v1136
    %v1592 = vmul.f32 %v1552, %v1137
    %v1593 = vmul.f32 %v1552, %v1138
    %v1594 = vmul.f32 %v1552, %v1139
    %v1595 = vmul.f32 %v1552, %v1140
    %v1596 = vmul.f32 %v1552, %v1141
    %v1597 = vmul.f32 %v1552, %v1142
    %v1598 = vmul.f32 %v1552, %v1143
    %v1599 = vmul.f32 %v1552, %v1144
    %v1600 = vmul.f32 %v1552, %v1145
    %v1601 = vmul.f32 %v1552, %v1146
    %v1602 = vmul.f32 %v1552, %v1147
    %v1603 = vmul.f32 %v1552, %v1148
    %v1604 = vmul.f32 %v1552, %v1149
    %v1605 = vmul.f32 %v1552, %v1150
    %v1606 = vmul.f32 %v1552, %v1151
    %v1607 = vmul.f32 %v1552, %v1152
    %v1608 = vmul.f32 %v1552, %v1153
    %v1609 = vmul.f32 %v1552, %v1154
    %v1610 = vmul.f32 %v1552, %v1155
    %v1611 = vmul.f32 %v1552, %v1156
    %v1612 = vmul.f32 %v1552, %v1157
    %v1613 = vmul.f32 %v1552, %v1158
    %v1614 = vmul.f32 %v1552, %v1159
    %v1615 = vmul.f32 %v1552, %v1160
    %v1616 = vmul.f32 %v1552, %v1161
    %v1617 = vmul.f32 %v1552, %v1162
    %v1618 = vmul.f32 %v1552, %v1163
    %v1619 = vmul.f32 %v1552, %v1164
    %v1620 = vmul.f32 %v1552, %v1165
    %v1621 = vmul.f32 %v1557, %v1119
    %v1622 = vmul.f32 %v1557, %v1120
    %v1623 = vmul.f32 %v1557, %v1121
    %v1624 = vmul.f32 %v1557, %v1122
    %v1625 = vmul.f32 %v1557, %v1123
    %v1626 = vmul.f32 %v1557, %v1124
    %v1627 = vmul.f32 %v1557, %v1125
    %v1628 = vmul.f32 %v1557, %v1126
    %v1629 = vmul.f32 %v1557, %v1127
    %v1630 = vmul.f32 %v1557, %v1128
    %v1631 = vmul.f32 %v1557, %v1129
    %v1632 = vmul.f32 %v1557, %v1130
    %v1633 = vmul.f32 %v1557, %v1131
    %v1634 = vmul.f32 %v1557, %v1132
    %v1635 = vmul.f32 %v1557, %v1133
    %v1636 = vmul.f32 %v1557, %v1134
    %v1637 = vmul.f32 %v1557, %v1135
    %v1638 = vmul.f32 %v1557, %v1136
    %v1639 = vmul.f32 %v1557, %v1137
    %v1640 = vmul.f32 %v1557, %v1138
    %v1641 = vmul.f32 %v1557, %v1139
    %v1642 = vmul.f32 %v1557, %v1140
    %v1643 = vmul.f32 %v1557, %v1141
    %v1644 = vmul.f32 %v1557, %v1142
    %v1645 = vmul.f32 %v1557, %v1143
    %v1646 = vmul.f32 %v1557, %v1144
    %v1647 = vmul.f32 %v1557, %v1145
    %v1648 = vmul.f32 %v1557, %v1146
    %v1649 = vmul.f32 %v1557, %v1147
    %v1650 = vmul.f32 %v1557, %v1148
    %v1651 = vmul.f32 %v1557, %v1149
    %v1652 = vmul.f32 %v1557, %v1150
    %v1653 = vmul.f32 %v1557, %v1151
    %v1654 = vmul.f32 %v1557, %v1152
    %v1655 = vmul.f32 %v1557, %v1153
    %v1656 = vmul.f32 %v1557, %v1154
    %v1657 = vmul.f32 %v1557, %v1155
    %v1658 = vmul.f32 %v1557, %v1156
    %v1659 = vmul.f32 %v1557, %v1157
    %v1660 = vmul.f32 %v1557, %v1158
    %v1661 = vmul.f32 %v1557, %v1159
    %v1662 = vmul.f32 %v1557, %v1160
    %v1663 = vmul.f32 %v1557, %v1161
    %v1664 = vmul.f32 %v1557, %v1162
    %v1665 = vmul.f32 %v1557, %v1163
    %v1666 = vmul.f32 %v1557, %v1164
    %v1667 = vmul.f32 %v1557, %v1165
    %v1668 = vmul.f32 %v1562, %v1119
    %v1669 = vmul.f32 %v1562, %v1120
    %v1670 = vmul.f32 %v1562, %v1121
    %v1671 = vmul.f32 %v1562, %v1122
    %v1672 = vmul.f32 %v1562, %v1123
    %v1673 = vmul.f32 %v1562, %v1124
    %v1674 = vmul.f32 %v1562, %v1125
    %v1675 = vmul.f32 %v1562, %v1126
    %v1676 = vmul.f32 %v1562, %v1127
    %v1677 = vmul.f32 %v1562, %v1128
    %v1678 = vmul.f32 %v1562, %v1129
    %v1679 = vmul.f32 %v1562, %v1130
    %v1680 = vmul.f32 %v1562, %v1131
    %v1681 = vmul.f32 %v1562, %v1132
    %v1682 = vmul.f32 %v1562, %v1133
    %v1683 = vmul.f32 %v1562, %v1134
    %v1684 = vmul.f32 %v1562, %v1135
    %v1685 = vmul.f32 %v1562, %v1136
    %v1686 = vmul.f32 %v1562, %v1137
    %v1687 = vmul.f32 %v1562, %v1138
    %v1688 = vmul.f32 %v1562, %v1139
    %v1689 = vmul.f32 %v1562, %v1140
    %v1690 = vmul.f32 %v1562, %v1141
    %v1691 = vmul.f32 %v1562, %v1142
    %v1692 = vmul.f32 %v1562, %v1143
    %v1693 = vmul.f32 %v1562, %v1144
    %v1694 = vmul.f32 %v1562, %v1145
    %v1695 = vmul.f32 %v1562, %v1146
    %v1696 = vmul.f32 %v1562, %v1147
    %v1697 = vmul.f32 %v1562, %v1148
    %v1698 = vmul.f32 %v1562, %v1149
    %v1699 = vmul.f32 %v1562, %v1150
    %v1700 = vmul.f32 %v1562, %v1151
    %v1701 = vmul.f32 %v1562, %v1152
    %v1702 = vmul.f32 %v1562, %v1153
    %v1703 = vmul.f32 %v1562, %v1154
    %v1704 = vmul.f32 %v1562, %v1155
    %v1705 = vmul.f32 %v1562, %v1156
    %v1706 = vmul.f32 %v1562, %v1157
    %v1707 = vmul.f32 %v1562, %v1158
    %v1708 = vmul.f32 %v1562, %v1159
    %v1709 = vmul.f32 %v1562, %v1160
    %v1710 = vmul.f32 %v1562, %v1161
    %v1711 = vmul.f32 %v1562, %v1162
    %v1712 = vmul.f32 %v1562, %v1163
    %v1713 = vmul.f32 %v1562, %v1164
    %v1714 = vmul.f32 %v1562, %v1165
    %v1715 = vmul.f32 %v1567, %v1119
    %v1716 = vmul.f32 %v1567, %v1120
    %v1717 = vmul.f32 %v1567, %v1121
    %v1718 = vmul.f32 %v1567, %v1122
    %v1719 = vmul.f32 %v1567, %v1123
    %v1720 = vmul.f32 %v1567, %v1124
    %v1721 = vmul.f32 %v1567, %v1125
    %v1722 = vmul.f32 %v1567, %v1126
    %v1723 = vmul.f32 %v1567, %v1127
    %v1724 = vmul.f32 %v1567, %v1128
    %v1725 = vmul.f32 %v1567, %v1129
    %v1726 = vmul.f32 %v1567, %v1130
    %v1727 = vmul.f32 %v1567, %v1131
    %v1728 = vmul.f32 %v1567, %v1132
    %v1729 = vmul.f32 %v1567, %v1133
    %v1730 = vmul.f32 %v1567, %v1134
    %v1731 = vmul.f32 %v1567, %v1135
    %v1732 = vmul.f32 %v1567, %v1136
    %v1733 = vmul.f32 %v1567, %v1137
    %v1734 = vmul.f32 %v1567, %v1138
    %v1735 = vmul.f32 %v1567, %v1139
    %v1736 = vmul.f32 %v1567, %v1140
    %v1737 = vmul.f32 %v1567, %v1141
    %v1738 = vmul.f32 %v1567, %v1142
    %v1739 = vmul.f32 %v1567, %v1143
    %v1740 = vmul.f32 %v1567, %v1144
    %v1741 = vmul.f32 %v1567, %v1145
    %v1742 = vmul.f32 %v1567, %v1146
    %v1743 = vmul.f32 %v1567, %v1147
    %v1744 = vmul.f32 %v1567, %v1148
    %v1745 = vmul.f32 %v1567, %v1149
    %v1746 = vmul.f32 %v1567, %v1150
    %v1747 = vmul.f32 %v1567, %v1151
    %v1748 = vmul.f32 %v1567, %v1152
    %v1749 = vmul.f32 %v1567, %v1153
    %v1750 = vmul.f32 %v1567, %v1154
    %v1751 = vmul.f32 %v1567, %v1155
    %v1752 = vmul.f32 %v1567, %v1156
    %v1753 = vmul.f32 %v1567, %v1157
    %v1754 = vmul.f32 %v1567, %v1158
    %v1755 = vmul.f32 %v1567, %v1159
    %v1756 = vmul.f32 %v1567, %v1160
    %v1757 = vmul.f32 %v1567, %v1161
    %v1758 = vmul.f32 %v1567, %v1162
    %v1759 = vmul.f32 %v1567, %v1163
    %v1760 = vmul.f32 %v1567, %v1164
    %v1761 = vmul.f32 %v1567, %v1165
    %v1762 = vmul.f32 %v1572, %v1119
    %v1763 = vmul.f32 %v1572, %v1120
    %v1764 = vmul.f32 %v1572, %v1121
    %v1765 = vmul.f32 %v1572, %v1122
    %v1766 = vmul.f32 %v1572, %v1123
    %v1767 = vmul.f32 %v1572, %v1124
    %v1768 = vmul.f32 %v1572, %v1125
    %v1769 = vmul.f32 %v1572, %v1126
    %v1770 = vmul.f32 %v1572, %v1127
    %v1771 = vmul.f32 %v1572, %v1128
    %v1772 = vmul.f32 %v1572, %v1129
    %v1773 = vmul.f32 %v1572, %v1130
    %v1774 = vmul.f32 %v1572, %v1131
    %v1775 = vmul.f32 %v1572, %v1132
    %v1776 = vmul.f32 %v1572, %v1133
    %v1777 = vmul.f32 %v1572, %v1134
    %v1778 = vmul.f32 %v1572, %v1135
    %v1779 = vmul.f32 %v1572, %v1136
    %v1780 = vmul.f32 %v1572, %v1137
    %v1781 = vmul.f32 %v1572, %v1138
    %v1782 = vmul.f32 %v1572, %v1139
    %v1783 = vmul.f32 %v1572, %v1140
    %v1784 = vmul.f32 %v1572, %v1141
    %v1785 = vmul.f32 %v1572, %v1142
    %v1786 = vmul.f32 %v1572, %v1143
    %v1787 = vmul.f32 %v1572, %v1144
    %v1788 = vmul.f32 %v1572, %v1145
    %v1789 = vmul.f32 %v1572, %v1146
    %v1790 = vmul.f32 %v1572, %v1147
    %v1791 = vmul.f32 %v1572, %v1148
    %v1792 = vmul.f32 %v1572, %v1149
    %v1793 = vmul.f32 %v1572, %v1150
    %v1794 = vmul.f32 %v1572, %v1151
    %v1795 = vmul.f32 %v1572, %v1152
    %v1796 = vmul.f32 %v1572, %v1153
    %v1797 = vmul.f32 %v1572, %v1154
    %v1798 = vmul.f32 %v1572, %v1155
    %v1799 = vmul.f32 %v1572, %v1156
    %v1800 = vmul.f32 %v1572, %v1157
    %v1801 = vmul.f32 %v1572, %v1158
    %v1802 = vmul.f32 %v1572, %v1159
    %v1803 = vmul.f32 %v1572, %v1160
    %v1804 = vmul.f32 %v1572, %v1161
    %v1805 = vmul.f32 %v1572, %v1162
    %v1806 = vmul.f32 %v1572, %v1163
    %v1807 = vmul.f32 %v1572, %v1164
    %v1808 = vmul.f32 %v1572, %v1165
    %1809 = vset.pattern.permute.xlu0 1
    %1810 = vperm.xlu0 %1809, %v410
    %v1811 = vpop.permute.xlu0 %1810
    %1813 = vset.pattern.permute.xlu0 1
    %1814 = vperm.xlu0 %1813, %v411
    %v1815 = vpop.permute.xlu0 %1814
    %1817 = vset.pattern.permute.xlu0 1
    %1818 = vperm.xlu0 %1817, %v412
    %v1819 = vpop.permute.xlu0 %1818
    %1821 = vset.pattern.permute.xlu0 1
    %1822 = vperm.xlu0 %1821, %v413
    %v1823 = vpop.permute.xlu0 %1822
    %1825 = vset.pattern.permute.xlu0 1
    %1826 = vperm.xlu0 %1825, %v414
    %v1827 = vpop.permute.xlu0 %1826
    %v1829 = vmul.f32 %v1811, %v1307
    %v1830 = vmul.f32 %v1811, %v1308
    %v1831 = vmul.f32 %v1811, %v1309
    %v1832 = vmul.f32 %v1811, %v1310
    %v1833 = vmul.f32 %v1811, %v1311
    %v1834 = vmul.f32 %v1811, %v1312
    %v1835 = vmul.f32 %v1811, %v1313
    %v1836 = vmul.f32 %v1811, %v1314
    %v1837 = vmul.f32 %v1811, %v1315
    %v1838 = vmul.f32 %v1811, %v1316
    %v1839 = vmul.f32 %v1811, %v1317
    %v1840 = vmul.f32 %v1811, %v1318
    %v1841 = vmul.f32 %v1811, %v1319
    %v1842 = vmul.f32 %v1811, %v1320
    %v1843 = vmul.f32 %v1811, %v1321
    %v1844 = vmul.f32 %v1811, %v1322
    %v1845 = vmul.f32 %v1811, %v1323
    %v1846 = vmul.f32 %v1811, %v1324
    %v1847 = vmul.f32 %v1811, %v1325
    %v1848 = vmul.f32 %v1811, %v1326
    %v1849 = vmul.f32 %v1811, %v1327
    %v1850 = vmul.f32 %v1811, %v1328
    %v1851 = vmul.f32 %v1811, %v1329
    %v1852 = vmul.f32 %v1811, %v1330
    %v1853 = vmul.f32 %v1811, %v1331
    %v1854 = vmul.f32 %v1811, %v1332
    %v1855 = vmul.f32 %v1811, %v1333
    %v1856 = vmul.f32 %v1811, %v1334
    %v1857 = vmul.f32 %v1811, %v1335
    %v1858 = vmul.f32 %v1811, %v1336
    %v1859 = vmul.f32 %v1811, %v1337
    %v1860 = vmul.f32 %v1811, %v1338
    %v1861 = vmul.f32 %v1811, %v1339
    %v1862 = vmul.f32 %v1811, %v1340
    %v1863 = vmul.f32 %v1811, %v1341
    %v1864 = vmul.f32 %v1811, %v1342
    %v1865 = vmul.f32 %v1811, %v1343
    %v1866 = vmul.f32 %v1811, %v1344
    %v1867 = vmul.f32 %v1811, %v1345
    %v1868 = vmul.f32 %v1811, %v1346
    %v1869 = vmul.f32 %v1811, %v1347
    %v1870 = vmul.f32 %v1811, %v1348
    %v1871 = vmul.f32 %v1811, %v1349
    %v1872 = vmul.f32 %v1811, %v1350
    %v1873 = vmul.f32 %v1811, %v1351
    %v1874 = vmul.f32 %v1811, %v1352
    %v1875 = vmul.f32 %v1811, %v1353
    %v1876 = vmul.f32 %v1815, %v1307
    %v1877 = vmul.f32 %v1815, %v1308
    %v1878 = vmul.f32 %v1815, %v1309
    %v1879 = vmul.f32 %v1815, %v1310
    %v1880 = vmul.f32 %v1815, %v1311
    %v1881 = vmul.f32 %v1815, %v1312
    %v1882 = vmul.f32 %v1815, %v1313
    %v1883 = vmul.f32 %v1815, %v1314
    %v1884 = vmul.f32 %v1815, %v1315
    %v1885 = vmul.f32 %v1815, %v1316
    %v1886 = vmul.f32 %v1815, %v1317
    %v1887 = vmul.f32 %v1815, %v1318
    %v1888 = vmul.f32 %v1815, %v1319
    %v1889 = vmul.f32 %v1815, %v1320
    %v1890 = vmul.f32 %v1815, %v1321
    %v1891 = vmul.f32 %v1815, %v1322
    %v1892 = vmul.f32 %v1815, %v1323
    %v1893 = vmul.f32 %v1815, %v1324
    %v1894 = vmul.f32 %v1815, %v1325
    %v1895 = vmul.f32 %v1815, %v1326
    %v1896 = vmul.f32 %v1815, %v1327
    %v1897 = vmul.f32 %v1815, %v1328
    %v1898 = vmul.f32 %v1815, %v1329
    %v1899 = vmul.f32 %v1815, %v1330
    %v1900 = vmul.f32 %v1815, %v1331
    %v1901 = vmul.f32 %v1815, %v1332
    %v1902 = vmul.f32 %v1815, %v1333
    %v1903 = vmul.f32 %v1815, %v1334
    %v1904 = vmul.f32 %v1815, %v1335
    %v1905 = vmul.f32 %v1815, %v1336
    %v1906 = vmul.f32 %v1815, %v1337
    %v1907 = vmul.f32 %v1815, %v1338
    %v1908 = vmul.f32 %v1815, %v1339
    %v1909 = vmul.f32 %v1815, %v1340
    %v1910 = vmul.f32 %v1815, %v1341
    %v1911 = vmul.f32 %v1815, %v1342
    %v1912 = vmul.f32 %v1815, %v1343
    %v1913 = vmul.f32 %v1815, %v1344
    %v1914 = vmul.f32 %v1815, %v1345
    %v1915 = vmul.f32 %v1815, %v1346
    %v1916 = vmul.f32 %v1815, %v1347
    %v1917 = vmul.f32 %v1815, %v1348
    %v1918 = vmul.f32 %v1815, %v1349
    %v1919 = vmul.f32 %v1815, %v1350
    %v1920 = vmul.f32 %v1815, %v1351
    %v1921 = vmul.f32 %v1815, %v1352
    %v1922 = vmul.f32 %v1815, %v1353
    %v1923 = vmul.f32 %v1819, %v1307
    %v1924 = vmul.f32 %v1819, %v1308
    %v1925 = vmul.f32 %v1819, %v1309
    %v1926 = vmul.f32 %v1819, %v1310
    %v1927 = vmul.f32 %v1819, %v1311
    %v1928 = vmul.f32 %v1819, %v1312
    %v1929 = vmul.f32 %v1819, %v1313
    %v1930 = vmul.f32 %v1819, %v1314
    %v1931 = vmul.f32 %v1819, %v1315
    %v1932 = vmul.f32 %v1819, %v1316
    %v1933 = vmul.f32 %v1819, %v1317
    %v1934 = vmul.f32 %v1819, %v1318
    %v1935 = vmul.f32 %v1819, %v1319
    %v1936 = vmul.f32 %v1819, %v1320
    %v1937 = vmul.f32 %v1819, %v1321
    %v1938 = vmul.f32 %v1819, %v1322
    %v1939 = vmul.f32 %v1819, %v1323
    %v1940 = vmul.f32 %v1819, %v1324
    %v1941 = vmul.f32 %v1819, %v1325
    %v1942 = vmul.f32 %v1819, %v1326
    %v1943 = vmul.f32 %v1819, %v1327
    %v1944 = vmul.f32 %v1819, %v1328
    %v1945 = vmul.f32 %v1819, %v1329
    %v1946 = vmul.f32 %v1819, %v1330
    %v1947 = vmul.f32 %v1819, %v1331
    %v1948 = vmul.f32 %v1819, %v1332
    %v1949 = vmul.f32 %v1819, %v1333
    %v1950 = vmul.f32 %v1819, %v1334
    %v1951 = vmul.f32 %v1819, %v1335
    %v1952 = vmul.f32 %v1819, %v1336
    %v1953 = vmul.f32 %v1819, %v1337
    %v1954 = vmul.f32 %v1819, %v1338
    %v1955 = vmul.f32 %v1819, %v1339
    %v1956 = vmul.f32 %v1819, %v1340
    %v1957 = vmul.f32 %v1819, %v1341
    %v1958 = vmul.f32 %v1819, %v1342
    %v1959 = vmul.f32 %v1819, %v1343
    %v1960 = vmul.f32 %v1819, %v1344
    %v1961 = vmul.f32 %v1819, %v1345
    %v1962 = vmul.f32 %v1819, %v1346
    %v1963 = vmul.f32 %v1819, %v1347
    %v1964 = vmul.f32 %v1819, %v1348
    %v1965 = vmul.f32 %v1819, %v1349
    %v1966 = vmul.f32 %v1819, %v1350
    %v1967 = vmul.f32 %v1819, %v1351
    %v1968 = vmul.f32 %v1819, %v1352
    %v1969 = vmul.f32 %v1819, %v1353
    %v1970 = vmul.f32 %v1823, %v1307
    %v1971 = vmul.f32 %v1823, %v1308
    %v1972 = vmul.f32 %v1823, %v1309
    %v1973 = vmul.f32 %v1823, %v1310
    %v1974 = vmul.f32 %v1823, %v1311
    %v1975 = vmul.f32 %v1823, %v1312
    %v1976 = vmul.f32 %v1823, %v1313
    %v1977 = vmul.f32 %v1823, %v1314
    %v1978 = vmul.f32 %v1823, %v1315
    %v1979 = vmul.f32 %v1823, %v1316
    %v1980 = vmul.f32 %v1823, %v1317
    %v1981 = vmul.f32 %v1823, %v1318
    %v1982 = vmul.f32 %v1823, %v1319
    %v1983 = vmul.f32 %v1823, %v1320
    %v1984 = vmul.f32 %v1823, %v1321
    %v1985 = vmul.f32 %v1823, %v1322
    %v1986 = vmul.f32 %v1823, %v1323
    %v1987 = vmul.f32 %v1823, %v1324
    %v1988 = vmul.f32 %v1823, %v1325
    %v1989 = vmul.f32 %v1823, %v1326
    %v1990 = vmul.f32 %v1823, %v1327
    %v1991 = vmul.f32 %v1823, %v1328
    %v1992 = vmul.f32 %v1823, %v1329
    %v1993 = vmul.f32 %v1823, %v1330
    %v1994 = vmul.f32 %v1823, %v1331
    %v1995 = vmul.f32 %v1823, %v1332
    %v1996 = vmul.f32 %v1823, %v1333
    %v1997 = vmul.f32 %v1823, %v1334
    %v1998 = vmul.f32 %v1823, %v1335
    %v1999 = vmul.f32 %v1823, %v1336
    %v2000 = vmul.f32 %v1823, %v1337
    %v2001 = vmul.f32 %v1823, %v1338
    %v2002 = vmul.f32 %v1823, %v1339
    %v2003 = vmul.f32 %v1823, %v1340
    %v2004 = vmul.f32 %v1823, %v1341
    %v2005 = vmul.f32 %v1823, %v1342
    %v2006 = vmul.f32 %v1823, %v1343
    %v2007 = vmul.f32 %v1823, %v1344
    %v2008 = vmul.f32 %v1823, %v1345
    %v2009 = vmul.f32 %v1823, %v1346
    %v2010 = vmul.f32 %v1823, %v1347
    %v2011 = vmul.f32 %v1823, %v1348
    %v2012 = vmul.f32 %v1823, %v1349
    %v2013 = vmul.f32 %v1823, %v1350
    %v2014 = vmul.f32 %v1823, %v1351
    %v2015 = vmul.f32 %v1823, %v1352
    %v2016 = vmul.f32 %v1823, %v1353
    %v2017 = vmul.f32 %v1827, %v1307
    %v2018 = vmul.f32 %v1827, %v1308
    %v2019 = vmul.f32 %v1827, %v1309
    %v2020 = vmul.f32 %v1827, %v1310
    %v2021 = vmul.f32 %v1827, %v1311
    %v2022 = vmul.f32 %v1827, %v1312
    %v2023 = vmul.f32 %v1827, %v1313
    %v2024 = vmul.f32 %v1827, %v1314
    %v2025 = vmul.f32 %v1827, %v1315
    %v2026 = vmul.f32 %v1827, %v1316
    %v2027 = vmul.f32 %v1827, %v1317
    %v2028 = vmul.f32 %v1827, %v1318
    %v2029 = vmul.f32 %v1827, %v1319
    %v2030 = vmul.f32 %v1827, %v1320
    %v2031 = vmul.f32 %v1827, %v1321
    %v2032 = vmul.f32 %v1827, %v1322
    %v2033 = vmul.f32 %v1827, %v1323
    %v2034 = vmul.f32 %v1827, %v1324
    %v2035 = vmul.f32 %v1827, %v1325
    %v2036 = vmul.f32 %v1827, %v1326
    %v2037 = vmul.f32 %v1827, %v1327
    %v2038 = vmul.f32 %v1827, %v1328
    %v2039 = vmul.f32 %v1827, %v1329
    %v2040 = vmul.f32 %v1827, %v1330
    %v2041 = vmul.f32 %v1827, %v1331
    %v2042 = vmul.f32 %v1827, %v1332
    %v2043 = vmul.f32 %v1827, %v1333
    %v2044 = vmul.f32 %v1827, %v1334
    %v2045 = vmul.f32 %v1827, %v1335
    %v2046 = vmul.f32 %v1827, %v1336
    %v2047 = vmul.f32 %v1827, %v1337
    %v2048 = vmul.f32 %v1827, %v1338
    %v2049 = vmul.f32 %v1827, %v1339
    %v2050 = vmul.f32 %v1827, %v1340
    %v2051 = vmul.f32 %v1827, %v1341
    %v2052 = vmul.f32 %v1827, %v1342
    %v2053 = vmul.f32 %v1827, %v1343
    %v2054 = vmul.f32 %v1827, %v1344
    %v2055 = vmul.f32 %v1827, %v1345
    %v2056 = vmul.f32 %v1827, %v1346
    %v2057 = vmul.f32 %v1827, %v1347
    %v2058 = vmul.f32 %v1827, %v1348
    %v2059 = vmul.f32 %v1827, %v1349
    %v2060 = vmul.f32 %v1827, %v1350
    %v2061 = vmul.f32 %v1827, %v1351
    %v2062 = vmul.f32 %v1827, %v1352
    %v2063 = vmul.f32 %v1827, %v1353
    %v2064 = vadd.f32 %v1574, %v1829
    %v2065 = vadd.f32 %v1575, %v1830
    %v2066 = vadd.f32 %v1576, %v1831
    %v2067 = vadd.f32 %v1577, %v1832
    %v2068 = vadd.f32 %v1578, %v1833
    %v2069 = vadd.f32 %v1579, %v1834
    %v2070 = vadd.f32 %v1580, %v1835
    %v2071 = vadd.f32 %v1581, %v1836
    %v2072 = vadd.f32 %v1582, %v1837
    %v2073 = vadd.f32 %v1583, %v1838
    %v2074 = vadd.f32 %v1584, %v1839
    %v2075 = vadd.f32 %v1585, %v1840
    %v2076 = vadd.f32 %v1586, %v1841
    %v2077 = vadd.f32 %v1587, %v1842
    %v2078 = vadd.f32 %v1588, %v1843
    %v2079 = vadd.f32 %v1589, %v1844
    %v2080 = vadd.f32 %v1590, %v1845
    %v2081 = vadd.f32 %v1591, %v1846
    %v2082 = vadd.f32 %v1592, %v1847
    %v2083 = vadd.f32 %v1593, %v1848
    %v2084 = vadd.f32 %v1594, %v1849
    %v2085 = vadd.f32 %v1595, %v1850
    %v2086 = vadd.f32 %v1596, %v1851
    %v2087 = vadd.f32 %v1597, %v1852
    %v2088 = vadd.f32 %v1598, %v1853
    %v2089 = vadd.f32 %v1599, %v1854
    %v2090 = vadd.f32 %v1600, %v1855
    %v2091 = vadd.f32 %v1601, %v1856
    %v2092 = vadd.f32 %v1602, %v1857
    %v2093 = vadd.f32 %v1603, %v1858
    %v2094 = vadd.f32 %v1604, %v1859
    %v2095 = vadd.f32 %v1605, %v1860
    %v2096 = vadd.f32 %v1606, %v1861
    %v2097 = vadd.f32 %v1607, %v1862
    %v2098 = vadd.f32 %v1608, %v1863
    %v2099 = vadd.f32 %v1609, %v1864
    %v2100 = vadd.f32 %v1610, %v1865
    %v2101 = vadd.f32 %v1611, %v1866
    %v2102 = vadd.f32 %v1612, %v1867
    %v2103 = vadd.f32 %v1613, %v1868
    %v2104 = vadd.f32 %v1614, %v1869
    %v2105 = vadd.f32 %v1615, %v1870
    %v2106 = vadd.f32 %v1616, %v1871
    %v2107 = vadd.f32 %v1617, %v1872
    %v2108 = vadd.f32 %v1618, %v1873
    %v2109 = vadd.f32 %v1619, %v1874
    %v2110 = vadd.f32 %v1620, %v1875
    %v2111 = vadd.f32 %v1621, %v1876
    %v2112 = vadd.f32 %v1622, %v1877
    %v2113 = vadd.f32 %v1623, %v1878
    %v2114 = vadd.f32 %v1624, %v1879
    %v2115 = vadd.f32 %v1625, %v1880
    %v2116 = vadd.f32 %v1626, %v1881
    %v2117 = vadd.f32 %v1627, %v1882
    %v2118 = vadd.f32 %v1628, %v1883
    %v2119 = vadd.f32 %v1629, %v1884
    %v2120 = vadd.f32 %v1630, %v1885
    %v2121 = vadd.f32 %v1631, %v1886
    %v2122 = vadd.f32 %v1632, %v1887
    %v2123 = vadd.f32 %v1633, %v1888
    %v2124 = vadd.f32 %v1634, %v1889
    %v2125 = vadd.f32 %v1635, %v1890
    %v2126 = vadd.f32 %v1636, %v1891
    %v2127 = vadd.f32 %v1637, %v1892
    %v2128 = vadd.f32 %v1638, %v1893
    %v2129 = vadd.f32 %v1639, %v1894
    %v2130 = vadd.f32 %v1640, %v1895
    %v2131 = vadd.f32 %v1641, %v1896
    %v2132 = vadd.f32 %v1642, %v1897
    %v2133 = vadd.f32 %v1643, %v1898
    %v2134 = vadd.f32 %v1644, %v1899
    %v2135 = vadd.f32 %v1645, %v1900
    %v2136 = vadd.f32 %v1646, %v1901
    %v2137 = vadd.f32 %v1647, %v1902
    %v2138 = vadd.f32 %v1648, %v1903
    %v2139 = vadd.f32 %v1649, %v1904
    %v2140 = vadd.f32 %v1650, %v1905
    %v2141 = vadd.f32 %v1651, %v1906
    %v2142 = vadd.f32 %v1652, %v1907
    %v2143 = vadd.f32 %v1653, %v1908
    %v2144 = vadd.f32 %v1654, %v1909
    %v2145 = vadd.f32 %v1655, %v1910
    %v2146 = vadd.f32 %v1656, %v1911
    %v2147 = vadd.f32 %v1657, %v1912
    %v2148 = vadd.f32 %v1658, %v1913
    %v2149 = vadd.f32 %v1659, %v1914
    %v2150 = vadd.f32 %v1660, %v1915
    %v2151 = vadd.f32 %v1661, %v1916
    %v2152 = vadd.f32 %v1662, %v1917
    %v2153 = vadd.f32 %v1663, %v1918
    %v2154 = vadd.f32 %v1664, %v1919
    %v2155 = vadd.f32 %v1665, %v1920
    %v2156 = vadd.f32 %v1666, %v1921
    %v2157 = vadd.f32 %v1667, %v1922
    %v2158 = vadd.f32 %v1668, %v1923
    %v2159 = vadd.f32 %v1669, %v1924
    %v2160 = vadd.f32 %v1670, %v1925
    %v2161 = vadd.f32 %v1671, %v1926
    %v2162 = vadd.f32 %v1672, %v1927
    %v2163 = vadd.f32 %v1673, %v1928
    %v2164 = vadd.f32 %v1674, %v1929
    %v2165 = vadd.f32 %v1675, %v1930
    %v2166 = vadd.f32 %v1676, %v1931
    %v2167 = vadd.f32 %v1677, %v1932
    %v2168 = vadd.f32 %v1678, %v1933
    %v2169 = vadd.f32 %v1679, %v1934
    %v2170 = vadd.f32 %v1680, %v1935
    %v2171 = vadd.f32 %v1681, %v1936
    %v2172 = vadd.f32 %v1682, %v1937
    %v2173 = vadd.f32 %v1683, %v1938
    %v2174 = vadd.f32 %v1684, %v1939
    %v2175 = vadd.f32 %v1685, %v1940
    %v2176 = vadd.f32 %v1686, %v1941
    %v2177 = vadd.f32 %v1687, %v1942
    %v2178 = vadd.f32 %v1688, %v1943
    %v2179 = vadd.f32 %v1689, %v1944
    %v2180 = vadd.f32 %v1690, %v1945
    %v2181 = vadd.f32 %v1691, %v1946
    %v2182 = vadd.f32 %v1692, %v1947
    %v2183 = vadd.f32 %v1693, %v1948
    %v2184 = vadd.f32 %v1694, %v1949
    %v2185 = vadd.f32 %v1695, %v1950
    %v2186 = vadd.f32 %v1696, %v1951
    %v2187 = vadd.f32 %v1697, %v1952
    %v2188 = vadd.f32 %v1698, %v1953
    %v2189 = vadd.f32 %v1699, %v1954
    %v2190 = vadd.f32 %v1700, %v1955
    %v2191 = vadd.f32 %v1701, %v1956
    %v2192 = vadd.f32 %v1702, %v1957
    %v2193 = vadd.f32 %v1703, %v1958
    %v2194 = vadd.f32 %v1704, %v1959
    %v2195 = vadd.f32 %v1705, %v1960
    %v2196 = vadd.f32 %v1706, %v1961
    %v2197 = vadd.f32 %v1707, %v1962
    %v2198 = vadd.f32 %v1708, %v1963
    %v2199 = vadd.f32 %v1709, %v1964
    %v2200 = vadd.f32 %v1710, %v1965
    %v2201 = vadd.f32 %v1711, %v1966
    %v2202 = vadd.f32 %v1712, %v1967
    %v2203 = vadd.f32 %v1713, %v1968
    %v2204 = vadd.f32 %v1714, %v1969
    %v2205 = vadd.f32 %v1715, %v1970
    %v2206 = vadd.f32 %v1716, %v1971
    %v2207 = vadd.f32 %v1717, %v1972
    %v2208 = vadd.f32 %v1718, %v1973
    %v2209 = vadd.f32 %v1719, %v1974
    %v2210 = vadd.f32 %v1720, %v1975
    %v2211 = vadd.f32 %v1721, %v1976
    %v2212 = vadd.f32 %v1722, %v1977
    %v2213 = vadd.f32 %v1723, %v1978
    %v2214 = vadd.f32 %v1724, %v1979
    %v2215 = vadd.f32 %v1725, %v1980
    %v2216 = vadd.f32 %v1726, %v1981
    %v2217 = vadd.f32 %v1727, %v1982
    %v2218 = vadd.f32 %v1728, %v1983
    %v2219 = vadd.f32 %v1729, %v1984
    %v2220 = vadd.f32 %v1730, %v1985
    %v2221 = vadd.f32 %v1731, %v1986
    %v2222 = vadd.f32 %v1732, %v1987
    %v2223 = vadd.f32 %v1733, %v1988
    %v2224 = vadd.f32 %v1734, %v1989
    %v2225 = vadd.f32 %v1735, %v1990
    %v2226 = vadd.f32 %v1736, %v1991
    %v2227 = vadd.f32 %v1737, %v1992
    %v2228 = vadd.f32 %v1738, %v1993
    %v2229 = vadd.f32 %v1739, %v1994
    %v2230 = vadd.f32 %v1740, %v1995
    %v2231 = vadd.f32 %v1741, %v1996
    %v2232 = vadd.f32 %v1742, %v1997
    %v2233 = vadd.f32 %v1743, %v1998
    %v2234 = vadd.f32 %v1744, %v1999
    %v2235 = vadd.f32 %v1745, %v2000
    %v2236 = vadd.f32 %v1746, %v2001
    %v2237 = vadd.f32 %v1747, %v2002
    %v2238 = vadd.f32 %v1748, %v2003
    %v2239 = vadd.f32 %v1749, %v2004
    %v2240 = vadd.f32 %v1750, %v2005
    %v2241 = vadd.f32 %v1751, %v2006
    %v2242 = vadd.f32 %v1752, %v2007
    %v2243 = vadd.f32 %v1753, %v2008
    %v2244 = vadd.f32 %v1754, %v2009
    %v2245 = vadd.f32 %v1755, %v2010
    %v2246 = vadd.f32 %v1756, %v2011
    %v2247 = vadd.f32 %v1757, %v2012
    %v2248 = vadd.f32 %v1758, %v2013
    %v2249 = vadd.f32 %v1759, %v2014
    %v2250 = vadd.f32 %v1760, %v2015
    %v2251 = vadd.f32 %v1761, %v2016
    %v2252 = vadd.f32 %v1762, %v2017
    %v2253 = vadd.f32 %v1763, %v2018
    %v2254 = vadd.f32 %v1764, %v2019
    %v2255 = vadd.f32 %v1765, %v2020
    %v2256 = vadd.f32 %v1766, %v2021
    %v2257 = vadd.f32 %v1767, %v2022
    %v2258 = vadd.f32 %v1768, %v2023
    %v2259 = vadd.f32 %v1769, %v2024
    %v2260 = vadd.f32 %v1770, %v2025
    %v2261 = vadd.f32 %v1771, %v2026
    %v2262 = vadd.f32 %v1772, %v2027
    %v2263 = vadd.f32 %v1773, %v2028
    %v2264 = vadd.f32 %v1774, %v2029
    %v2265 = vadd.f32 %v1775, %v2030
    %v2266 = vadd.f32 %v1776, %v2031
    %v2267 = vadd.f32 %v1777, %v2032
    %v2268 = vadd.f32 %v1778, %v2033
    %v2269 = vadd.f32 %v1779, %v2034
    %v2270 = vadd.f32 %v1780, %v2035
    %v2271 = vadd.f32 %v1781, %v2036
    %v2272 = vadd.f32 %v1782, %v2037
    %v2273 = vadd.f32 %v1783, %v2038
    %v2274 = vadd.f32 %v1784, %v2039
    %v2275 = vadd.f32 %v1785, %v2040
    %v2276 = vadd.f32 %v1786, %v2041
    %v2277 = vadd.f32 %v1787, %v2042
    %v2278 = vadd.f32 %v1788, %v2043
    %v2279 = vadd.f32 %v1789, %v2044
    %v2280 = vadd.f32 %v1790, %v2045
    %v2281 = vadd.f32 %v1791, %v2046
    %v2282 = vadd.f32 %v1792, %v2047
    %v2283 = vadd.f32 %v1793, %v2048
    %v2284 = vadd.f32 %v1794, %v2049
    %v2285 = vadd.f32 %v1795, %v2050
    %v2286 = vadd.f32 %v1796, %v2051
    %v2287 = vadd.f32 %v1797, %v2052
    %v2288 = vadd.f32 %v1798, %v2053
    %v2289 = vadd.f32 %v1799, %v2054
    %v2290 = vadd.f32 %v1800, %v2055
    %v2291 = vadd.f32 %v1801, %v2056
    %v2292 = vadd.f32 %v1802, %v2057
    %v2293 = vadd.f32 %v1803, %v2058
    %v2294 = vadd.f32 %v1804, %v2059
    %v2295 = vadd.f32 %v1805, %v2060
    %v2296 = vadd.f32 %v1806, %v2061
    %v2297 = vadd.f32 %v1807, %v2062
    %v2298 = vadd.f32 %v1808, %v2063
    %2299 = vset.pattern.permute.xlu0 2
    %2300 = vperm.xlu0 %2299, %v410
    %v2301 = vpop.permute.xlu0 %2300
    %2303 = vset.pattern.permute.xlu0 2
    %2304 = vperm.xlu0 %2303, %v411
    %v2305 = vpop.permute.xlu0 %2304
    %2307 = vset.pattern.permute.xlu0 2
    %2308 = vperm.xlu0 %2307, %v412
    %v2309 = vpop.permute.xlu0 %2308
    %2311 = vset.pattern.permute.xlu0 2
    %2312 = vperm.xlu0 %2311, %v413
    %v2313 = vpop.permute.xlu0 %2312
    %2315 = vset.pattern.permute.xlu0 2
    %2316 = vperm.xlu0 %2315, %v414
    %v2317 = vpop.permute.xlu0 %2316
    %v2319 = vmul.f32 %v2301, %v1502
    %v2320 = vmul.f32 %v2301, %v1503
    %v2321 = vmul.f32 %v2301, %v1504
    %v2322 = vmul.f32 %v2301, %v1505
    %v2323 = vmul.f32 %v2301, %v1506
    %v2324 = vmul.f32 %v2301, %v1507
    %v2325 = vmul.f32 %v2301, %v1508
    %v2326 = vmul.f32 %v2301, %v1509
    %v2327 = vmul.f32 %v2301, %v1510
    %v2328 = vmul.f32 %v2301, %v1511
    %v2329 = vmul.f32 %v2301, %v1512
    %v2330 = vmul.f32 %v2301, %v1513
    %v2331 = vmul.f32 %v2301, %v1514
    %v2332 = vmul.f32 %v2301, %v1515
    %v2333 = vmul.f32 %v2301, %v1516
    %v2334 = vmul.f32 %v2301, %v1517
    %v2335 = vmul.f32 %v2301, %v1518
    %v2336 = vmul.f32 %v2301, %v1519
    %v2337 = vmul.f32 %v2301, %v1520
    %v2338 = vmul.f32 %v2301, %v1521
    %v2339 = vmul.f32 %v2301, %v1522
    %v2340 = vmul.f32 %v2301, %v1523
    %v2341 = vmul.f32 %v2301, %v1524
    %v2342 = vmul.f32 %v2301, %v1525
    %v2343 = vmul.f32 %v2301, %v1526
    %v2344 = vmul.f32 %v2301, %v1527
    %v2345 = vmul.f32 %v2301, %v1528
    %v2346 = vmul.f32 %v2301, %v1529
    %v2347 = vmul.f32 %v2301, %v1530
    %v2348 = vmul.f32 %v2301, %v1531
    %v2349 = vmul.f32 %v2301, %v1532
    %v2350 = vmul.f32 %v2301, %v1533
    %v2351 = vmul.f32 %v2301, %v1534
    %v2352 = vmul.f32 %v2301, %v1535
    %v2353 = vmul.f32 %v2301, %v1536
    %v2354 = vmul.f32 %v2301, %v1537
    %v2355 = vmul.f32 %v2301, %v1538
    %v2356 = vmul.f32 %v2301, %v1539
    %v2357 = vmul.f32 %v2301, %v1540
    %v2358 = vmul.f32 %v2301, %v1541
    %v2359 = vmul.f32 %v2301, %v1542
    %v2360 = vmul.f32 %v2301, %v1543
    %v2361 = vmul.f32 %v2301, %v1544
    %v2362 = vmul.f32 %v2301, %v1545
    %v2363 = vmul.f32 %v2301, %v1546
    %v2364 = vmul.f32 %v2301, %v1547
    %v2365 = vmul.f32 %v2301, %v1548
    %v2366 = vmul.f32 %v2305, %v1502
    %v2367 = vmul.f32 %v2305, %v1503
    %v2368 = vmul.f32 %v2305, %v1504
    %v2369 = vmul.f32 %v2305, %v1505
    %v2370 = vmul.f32 %v2305, %v1506
    %v2371 = vmul.f32 %v2305, %v1507
    %v2372 = vmul.f32 %v2305, %v1508
    %v2373 = vmul.f32 %v2305, %v1509
    %v2374 = vmul.f32 %v2305, %v1510
    %v2375 = vmul.f32 %v2305, %v1511
    %v2376 = vmul.f32 %v2305, %v1512
    %v2377 = vmul.f32 %v2305, %v1513
    %v2378 = vmul.f32 %v2305, %v1514
    %v2379 = vmul.f32 %v2305, %v1515
    %v2380 = vmul.f32 %v2305, %v1516
    %v2381 = vmul.f32 %v2305, %v1517
    %v2382 = vmul.f32 %v2305, %v1518
    %v2383 = vmul.f32 %v2305, %v1519
    %v2384 = vmul.f32 %v2305, %v1520
    %v2385 = vmul.f32 %v2305, %v1521
    %v2386 = vmul.f32 %v2305, %v1522
    %v2387 = vmul.f32 %v2305, %v1523
    %v2388 = vmul.f32 %v2305, %v1524
    %v2389 = vmul.f32 %v2305, %v1525
    %v2390 = vmul.f32 %v2305, %v1526
    %v2391 = vmul.f32 %v2305, %v1527
    %v2392 = vmul.f32 %v2305, %v1528
    %v2393 = vmul.f32 %v2305, %v1529
    %v2394 = vmul.f32 %v2305, %v1530
    %v2395 = vmul.f32 %v2305, %v1531
    %v2396 = vmul.f32 %v2305, %v1532
    %v2397 = vmul.f32 %v2305, %v1533
    %v2398 = vmul.f32 %v2305, %v1534
    %v2399 = vmul.f32 %v2305, %v1535
    %v2400 = vmul.f32 %v2305, %v1536
    %v2401 = vmul.f32 %v2305, %v1537
    %v2402 = vmul.f32 %v2305, %v1538
    %v2403 = vmul.f32 %v2305, %v1539
    %v2404 = vmul.f32 %v2305, %v1540
    %v2405 = vmul.f32 %v2305, %v1541
    %v2406 = vmul.f32 %v2305, %v1542
    %v2407 = vmul.f32 %v2305, %v1543
    %v2408 = vmul.f32 %v2305, %v1544
    %v2409 = vmul.f32 %v2305, %v1545
    %v2410 = vmul.f32 %v2305, %v1546
    %v2411 = vmul.f32 %v2305, %v1547
    %v2412 = vmul.f32 %v2305, %v1548
    %v2413 = vmul.f32 %v2309, %v1502
    %v2414 = vmul.f32 %v2309, %v1503
    %v2415 = vmul.f32 %v2309, %v1504
    %v2416 = vmul.f32 %v2309, %v1505
    %v2417 = vmul.f32 %v2309, %v1506
    %v2418 = vmul.f32 %v2309, %v1507
    %v2419 = vmul.f32 %v2309, %v1508
    %v2420 = vmul.f32 %v2309, %v1509
    %v2421 = vmul.f32 %v2309, %v1510
    %v2422 = vmul.f32 %v2309, %v1511
    %v2423 = vmul.f32 %v2309, %v1512
    %v2424 = vmul.f32 %v2309, %v1513
    %v2425 = vmul.f32 %v2309, %v1514
    %v2426 = vmul.f32 %v2309, %v1515
    %v2427 = vmul.f32 %v2309, %v1516
    %v2428 = vmul.f32 %v2309, %v1517
    %v2429 = vmul.f32 %v2309, %v1518
    %v2430 = vmul.f32 %v2309, %v1519
    %v2431 = vmul.f32 %v2309, %v1520
    %v2432 = vmul.f32 %v2309, %v1521
    %v2433 = vmul.f32 %v2309, %v1522
    %v2434 = vmul.f32 %v2309, %v1523
    %v2435 = vmul.f32 %v2309, %v1524
    %v2436 = vmul.f32 %v2309, %v1525
    %v2437 = vmul.f32 %v2309, %v1526
    %v2438 = vmul.f32 %v2309, %v1527
    %v2439 = vmul.f32 %v2309, %v1528
    %v2440 = vmul.f32 %v2309, %v1529
    %v2441 = vmul.f32 %v2309, %v1530
    %v2442 = vmul.f32 %v2309, %v1531
    %v2443 = vmul.f32 %v2309, %v1532
    %v2444 = vmul.f32 %v2309, %v1533
    %v2445 = vmul.f32 %v2309, %v1534
    %v2446 = vmul.f32 %v2309, %v1535
    %v2447 = vmul.f32 %v2309, %v1536
    %v2448 = vmul.f32 %v2309, %v1537
    %v2449 = vmul.f32 %v2309, %v1538
    %v2450 = vmul.f32 %v2309, %v1539
    %v2451 = vmul.f32 %v2309, %v1540
    %v2452 = vmul.f32 %v2309, %v1541
    %v2453 = vmul.f32 %v2309, %v1542
    %v2454 = vmul.f32 %v2309, %v1543
    %v2455 = vmul.f32 %v2309, %v1544
    %v2456 = vmul.f32 %v2309, %v1545
    %v2457 = vmul.f32 %v2309, %v1546
    %v2458 = vmul.f32 %v2309, %v1547
    %v2459 = vmul.f32 %v2309, %v1548
    %v2460 = vmul.f32 %v2313, %v1502
    %v2461 = vmul.f32 %v2313, %v1503
    %v2462 = vmul.f32 %v2313, %v1504
    %v2463 = vmul.f32 %v2313, %v1505
    %v2464 = vmul.f32 %v2313, %v1506
    %v2465 = vmul.f32 %v2313, %v1507
    %v2466 = vmul.f32 %v2313, %v1508
    %v2467 = vmul.f32 %v2313, %v1509
    %v2468 = vmul.f32 %v2313, %v1510
    %v2469 = vmul.f32 %v2313, %v1511
    %v2470 = vmul.f32 %v2313, %v1512
    %v2471 = vmul.f32 %v2313, %v1513
    %v2472 = vmul.f32 %v2313, %v1514
    %v2473 = vmul.f32 %v2313, %v1515
    %v2474 = vmul.f32 %v2313, %v1516
    %v2475 = vmul.f32 %v2313, %v1517
    %v2476 = vmul.f32 %v2313, %v1518
    %v2477 = vmul.f32 %v2313, %v1519
    %v2478 = vmul.f32 %v2313, %v1520
    %v2479 = vmul.f32 %v2313, %v1521
    %v2480 = vmul.f32 %v2313, %v1522
    %v2481 = vmul.f32 %v2313, %v1523
    %v2482 = vmul.f32 %v2313, %v1524
    %v2483 = vmul.f32 %v2313, %v1525
    %v2484 = vmul.f32 %v2313, %v1526
    %v2485 = vmul.f32 %v2313, %v1527
    %v2486 = vmul.f32 %v2313, %v1528
    %v2487 = vmul.f32 %v2313, %v1529
    %v2488 = vmul.f32 %v2313, %v1530
    %v2489 = vmul.f32 %v2313, %v1531
    %v2490 = vmul.f32 %v2313, %v1532
    %v2491 = vmul.f32 %v2313, %v1533
    %v2492 = vmul.f32 %v2313, %v1534
    %v2493 = vmul.f32 %v2313, %v1535
    %v2494 = vmul.f32 %v2313, %v1536
    %v2495 = vmul.f32 %v2313, %v1537
    %v2496 = vmul.f32 %v2313, %v1538
    %v2497 = vmul.f32 %v2313, %v1539
    %v2498 = vmul.f32 %v2313, %v1540
    %v2499 = vmul.f32 %v2313, %v1541
    %v2500 = vmul.f32 %v2313, %v1542
    %v2501 = vmul.f32 %v2313, %v1543
    %v2502 = vmul.f32 %v2313, %v1544
    %v2503 = vmul.f32 %v2313, %v1545
    %v2504 = vmul.f32 %v2313, %v1546
    %v2505 = vmul.f32 %v2313, %v1547
    %v2506 = vmul.f32 %v2313, %v1548
    %v2507 = vmul.f32 %v2317, %v1502
    %v2508 = vmul.f32 %v2317, %v1503
    %v2509 = vmul.f32 %v2317, %v1504
    %v2510 = vmul.f32 %v2317, %v1505
    %v2511 = vmul.f32 %v2317, %v1506
    %v2512 = vmul.f32 %v2317, %v1507
    %v2513 = vmul.f32 %v2317, %v1508
    %v2514 = vmul.f32 %v2317, %v1509
    %v2515 = vmul.f32 %v2317, %v1510
    %v2516 = vmul.f32 %v2317, %v1511
    %v2517 = vmul.f32 %v2317, %v1512
    %v2518 = vmul.f32 %v2317, %v1513
    %v2519 = vmul.f32 %v2317, %v1514
    %v2520 = vmul.f32 %v2317, %v1515
    %v2521 = vmul.f32 %v2317, %v1516
    %v2522 = vmul.f32 %v2317, %v1517
    %v2523 = vmul.f32 %v2317, %v1518
    %v2524 = vmul.f32 %v2317, %v1519
    %v2525 = vmul.f32 %v2317, %v1520
    %v2526 = vmul.f32 %v2317, %v1521
    %v2527 = vmul.f32 %v2317, %v1522
    %v2528 = vmul.f32 %v2317, %v1523
    %v2529 = vmul.f32 %v2317, %v1524
    %v2530 = vmul.f32 %v2317, %v1525
    %v2531 = vmul.f32 %v2317, %v1526
    %v2532 = vmul.f32 %v2317, %v1527
    %v2533 = vmul.f32 %v2317, %v1528
    %v2534 = vmul.f32 %v2317, %v1529
    %v2535 = vmul.f32 %v2317, %v1530
    %v2536 = vmul.f32 %v2317, %v1531
    %v2537 = vmul.f32 %v2317, %v1532
    %v2538 = vmul.f32 %v2317, %v1533
    %v2539 = vmul.f32 %v2317, %v1534
    %v2540 = vmul.f32 %v2317, %v1535
    %v2541 = vmul.f32 %v2317, %v1536
    %v2542 = vmul.f32 %v2317, %v1537
    %v2543 = vmul.f32 %v2317, %v1538
    %v2544 = vmul.f32 %v2317, %v1539
    %v2545 = vmul.f32 %v2317, %v1540
    %v2546 = vmul.f32 %v2317, %v1541
    %v2547 = vmul.f32 %v2317, %v1542
    %v2548 = vmul.f32 %v2317, %v1543
    %v2549 = vmul.f32 %v2317, %v1544
    %v2550 = vmul.f32 %v2317, %v1545
    %v2551 = vmul.f32 %v2317, %v1546
    %v2552 = vmul.f32 %v2317, %v1547
    %v2553 = vmul.f32 %v2317, %v1548
    %v2554 = vadd.f32 %v2064, %v2319
    %v2555 = vadd.f32 %v2065, %v2320
    %v2556 = vadd.f32 %v2066, %v2321
    %v2557 = vadd.f32 %v2067, %v2322
    %v2558 = vadd.f32 %v2068, %v2323
    %v2559 = vadd.f32 %v2069, %v2324
    %v2560 = vadd.f32 %v2070, %v2325
    %v2561 = vadd.f32 %v2071, %v2326
    %v2562 = vadd.f32 %v2072, %v2327
    %v2563 = vadd.f32 %v2073, %v2328
    %v2564 = vadd.f32 %v2074, %v2329
    %v2565 = vadd.f32 %v2075, %v2330
    %v2566 = vadd.f32 %v2076, %v2331
    %v2567 = vadd.f32 %v2077, %v2332
    %v2568 = vadd.f32 %v2078, %v2333
    %v2569 = vadd.f32 %v2079, %v2334
    %v2570 = vadd.f32 %v2080, %v2335
    %v2571 = vadd.f32 %v2081, %v2336
    %v2572 = vadd.f32 %v2082, %v2337
    %v2573 = vadd.f32 %v2083, %v2338
    %v2574 = vadd.f32 %v2084, %v2339
    %v2575 = vadd.f32 %v2085, %v2340
    %v2576 = vadd.f32 %v2086, %v2341
    %v2577 = vadd.f32 %v2087, %v2342
    %v2578 = vadd.f32 %v2088, %v2343
    %v2579 = vadd.f32 %v2089, %v2344
    %v2580 = vadd.f32 %v2090, %v2345
    %v2581 = vadd.f32 %v2091, %v2346
    %v2582 = vadd.f32 %v2092, %v2347
    %v2583 = vadd.f32 %v2093, %v2348
    %v2584 = vadd.f32 %v2094, %v2349
    %v2585 = vadd.f32 %v2095, %v2350
    %v2586 = vadd.f32 %v2096, %v2351
    %v2587 = vadd.f32 %v2097, %v2352
    %v2588 = vadd.f32 %v2098, %v2353
    %v2589 = vadd.f32 %v2099, %v2354
    %v2590 = vadd.f32 %v2100, %v2355
    %v2591 = vadd.f32 %v2101, %v2356
    %v2592 = vadd.f32 %v2102, %v2357
    %v2593 = vadd.f32 %v2103, %v2358
    %v2594 = vadd.f32 %v2104, %v2359
    %v2595 = vadd.f32 %v2105, %v2360
    %v2596 = vadd.f32 %v2106, %v2361
    %v2597 = vadd.f32 %v2107, %v2362
    %v2598 = vadd.f32 %v2108, %v2363
    %v2599 = vadd.f32 %v2109, %v2364
    %v2600 = vadd.f32 %v2110, %v2365
    %v2601 = vadd.f32 %v2111, %v2366
    %v2602 = vadd.f32 %v2112, %v2367
    %v2603 = vadd.f32 %v2113, %v2368
    %v2604 = vadd.f32 %v2114, %v2369
    %v2605 = vadd.f32 %v2115, %v2370
    %v2606 = vadd.f32 %v2116, %v2371
    %v2607 = vadd.f32 %v2117, %v2372
    %v2608 = vadd.f32 %v2118, %v2373
    %v2609 = vadd.f32 %v2119, %v2374
    %v2610 = vadd.f32 %v2120, %v2375
    %v2611 = vadd.f32 %v2121, %v2376
    %v2612 = vadd.f32 %v2122, %v2377
    %v2613 = vadd.f32 %v2123, %v2378
    %v2614 = vadd.f32 %v2124, %v2379
    %v2615 = vadd.f32 %v2125, %v2380
    %v2616 = vadd.f32 %v2126, %v2381
    %v2617 = vadd.f32 %v2127, %v2382
    %v2618 = vadd.f32 %v2128, %v2383
    %v2619 = vadd.f32 %v2129, %v2384
    %v2620 = vadd.f32 %v2130, %v2385
    %v2621 = vadd.f32 %v2131, %v2386
    %v2622 = vadd.f32 %v2132, %v2387
    %v2623 = vadd.f32 %v2133, %v2388
    %v2624 = vadd.f32 %v2134, %v2389
    %v2625 = vadd.f32 %v2135, %v2390
    %v2626 = vadd.f32 %v2136, %v2391
    %v2627 = vadd.f32 %v2137, %v2392
    %v2628 = vadd.f32 %v2138, %v2393
    %v2629 = vadd.f32 %v2139, %v2394
    %v2630 = vadd.f32 %v2140, %v2395
    %v2631 = vadd.f32 %v2141, %v2396
    %v2632 = vadd.f32 %v2142, %v2397
    %v2633 = vadd.f32 %v2143, %v2398
    %v2634 = vadd.f32 %v2144, %v2399
    %v2635 = vadd.f32 %v2145, %v2400
    %v2636 = vadd.f32 %v2146, %v2401
    %v2637 = vadd.f32 %v2147, %v2402
    %v2638 = vadd.f32 %v2148, %v2403
    %v2639 = vadd.f32 %v2149, %v2404
    %v2640 = vadd.f32 %v2150, %v2405
    %v2641 = vadd.f32 %v2151, %v2406
    %v2642 = vadd.f32 %v2152, %v2407
    %v2643 = vadd.f32 %v2153, %v2408
    %v2644 = vadd.f32 %v2154, %v2409
    %v2645 = vadd.f32 %v2155, %v2410
    %v2646 = vadd.f32 %v2156, %v2411
    %v2647 = vadd.f32 %v2157, %v2412
    %v2648 = vadd.f32 %v2158, %v2413
    %v2649 = vadd.f32 %v2159, %v2414
    %v2650 = vadd.f32 %v2160, %v2415
    %v2651 = vadd.f32 %v2161, %v2416
    %v2652 = vadd.f32 %v2162, %v2417
    %v2653 = vadd.f32 %v2163, %v2418
    %v2654 = vadd.f32 %v2164, %v2419
    %v2655 = vadd.f32 %v2165, %v2420
    %v2656 = vadd.f32 %v2166, %v2421
    %v2657 = vadd.f32 %v2167, %v2422
    %v2658 = vadd.f32 %v2168, %v2423
    %v2659 = vadd.f32 %v2169, %v2424
    %v2660 = vadd.f32 %v2170, %v2425
    %v2661 = vadd.f32 %v2171, %v2426
    %v2662 = vadd.f32 %v2172, %v2427
    %v2663 = vadd.f32 %v2173, %v2428
    %v2664 = vadd.f32 %v2174, %v2429
    %v2665 = vadd.f32 %v2175, %v2430
    %v2666 = vadd.f32 %v2176, %v2431
    %v2667 = vadd.f32 %v2177, %v2432
    %v2668 = vadd.f32 %v2178, %v2433
    %v2669 = vadd.f32 %v2179, %v2434
    %v2670 = vadd.f32 %v2180, %v2435
    %v2671 = vadd.f32 %v2181, %v2436
    %v2672 = vadd.f32 %v2182, %v2437
    %v2673 = vadd.f32 %v2183, %v2438
    %v2674 = vadd.f32 %v2184, %v2439
    %v2675 = vadd.f32 %v2185, %v2440
    %v2676 = vadd.f32 %v2186, %v2441
    %v2677 = vadd.f32 %v2187, %v2442
    %v2678 = vadd.f32 %v2188, %v2443
    %v2679 = vadd.f32 %v2189, %v2444
    %v2680 = vadd.f32 %v2190, %v2445
    %v2681 = vadd.f32 %v2191, %v2446
    %v2682 = vadd.f32 %v2192, %v2447
    %v2683 = vadd.f32 %v2193, %v2448
    %v2684 = vadd.f32 %v2194, %v2449
    %v2685 = vadd.f32 %v2195, %v2450
    %v2686 = vadd.f32 %v2196, %v2451
    %v2687 = vadd.f32 %v2197, %v2452
    %v2688 = vadd.f32 %v2198, %v2453
    %v2689 = vadd.f32 %v2199, %v2454
    %v2690 = vadd.f32 %v2200, %v2455
    %v2691 = vadd.f32 %v2201, %v2456
    %v2692 = vadd.f32 %v2202, %v2457
    %v2693 = vadd.f32 %v2203, %v2458
    %v2694 = vadd.f32 %v2204, %v2459
    %v2695 = vadd.f32 %v2205, %v2460
    %v2696 = vadd.f32 %v2206, %v2461
    %v2697 = vadd.f32 %v2207, %v2462
    %v2698 = vadd.f32 %v2208, %v2463
    %v2699 = vadd.f32 %v2209, %v2464
    %v2700 = vadd.f32 %v2210, %v2465
    %v2701 = vadd.f32 %v2211, %v2466
    %v2702 = vadd.f32 %v2212, %v2467
    %v2703 = vadd.f32 %v2213, %v2468
    %v2704 = vadd.f32 %v2214, %v2469
    %v2705 = vadd.f32 %v2215, %v2470
    %v2706 = vadd.f32 %v2216, %v2471
    %v2707 = vadd.f32 %v2217, %v2472
    %v2708 = vadd.f32 %v2218, %v2473
    %v2709 = vadd.f32 %v2219, %v2474
    %v2710 = vadd.f32 %v2220, %v2475
    %v2711 = vadd.f32 %v2221, %v2476
    %v2712 = vadd.f32 %v2222, %v2477
    %v2713 = vadd.f32 %v2223, %v2478
    %v2714 = vadd.f32 %v2224, %v2479
    %v2715 = vadd.f32 %v2225, %v2480
    %v2716 = vadd.f32 %v2226, %v2481
    %v2717 = vadd.f32 %v2227, %v2482
    %v2718 = vadd.f32 %v2228, %v2483
    %v2719 = vadd.f32 %v2229, %v2484
    %v2720 = vadd.f32 %v2230, %v2485
    %v2721 = vadd.f32 %v2231, %v2486
    %v2722 = vadd.f32 %v2232, %v2487
    %v2723 = vadd.f32 %v2233, %v2488
    %v2724 = vadd.f32 %v2234, %v2489
    %v2725 = vadd.f32 %v2235, %v2490
    %v2726 = vadd.f32 %v2236, %v2491
    %v2727 = vadd.f32 %v2237, %v2492
    %v2728 = vadd.f32 %v2238, %v2493
    %v2729 = vadd.f32 %v2239, %v2494
    %v2730 = vadd.f32 %v2240, %v2495
    %v2731 = vadd.f32 %v2241, %v2496
    %v2732 = vadd.f32 %v2242, %v2497
    %v2733 = vadd.f32 %v2243, %v2498
    %v2734 = vadd.f32 %v2244, %v2499
    %v2735 = vadd.f32 %v2245, %v2500
    %v2736 = vadd.f32 %v2246, %v2501
    %v2737 = vadd.f32 %v2247, %v2502
    %v2738 = vadd.f32 %v2248, %v2503
    %v2739 = vadd.f32 %v2249, %v2504
    %v2740 = vadd.f32 %v2250, %v2505
    %v2741 = vadd.f32 %v2251, %v2506
    %v2742 = vadd.f32 %v2252, %v2507
    %v2743 = vadd.f32 %v2253, %v2508
    %v2744 = vadd.f32 %v2254, %v2509
    %v2745 = vadd.f32 %v2255, %v2510
    %v2746 = vadd.f32 %v2256, %v2511
    %v2747 = vadd.f32 %v2257, %v2512
    %v2748 = vadd.f32 %v2258, %v2513
    %v2749 = vadd.f32 %v2259, %v2514
    %v2750 = vadd.f32 %v2260, %v2515
    %v2751 = vadd.f32 %v2261, %v2516
    %v2752 = vadd.f32 %v2262, %v2517
    %v2753 = vadd.f32 %v2263, %v2518
    %v2754 = vadd.f32 %v2264, %v2519
    %v2755 = vadd.f32 %v2265, %v2520
    %v2756 = vadd.f32 %v2266, %v2521
    %v2757 = vadd.f32 %v2267, %v2522
    %v2758 = vadd.f32 %v2268, %v2523
    %v2759 = vadd.f32 %v2269, %v2524
    %v2760 = vadd.f32 %v2270, %v2525
    %v2761 = vadd.f32 %v2271, %v2526
    %v2762 = vadd.f32 %v2272, %v2527
    %v2763 = vadd.f32 %v2273, %v2528
    %v2764 = vadd.f32 %v2274, %v2529
    %v2765 = vadd.f32 %v2275, %v2530
    %v2766 = vadd.f32 %v2276, %v2531
    %v2767 = vadd.f32 %v2277, %v2532
    %v2768 = vadd.f32 %v2278, %v2533
    %v2769 = vadd.f32 %v2279, %v2534
    %v2770 = vadd.f32 %v2280, %v2535
    %v2771 = vadd.f32 %v2281, %v2536
    %v2772 = vadd.f32 %v2282, %v2537
    %v2773 = vadd.f32 %v2283, %v2538
    %v2774 = vadd.f32 %v2284, %v2539
    %v2775 = vadd.f32 %v2285, %v2540
    %v2776 = vadd.f32 %v2286, %v2541
    %v2777 = vadd.f32 %v2287, %v2542
    %v2778 = vadd.f32 %v2288, %v2543
    %v2779 = vadd.f32 %v2289, %v2544
    %v2780 = vadd.f32 %v2290, %v2545
    %v2781 = vadd.f32 %v2291, %v2546
    %v2782 = vadd.f32 %v2292, %v2547
    %v2783 = vadd.f32 %v2293, %v2548
    %v2784 = vadd.f32 %v2294, %v2549
    %v2785 = vadd.f32 %v2295, %v2550
    %v2786 = vadd.f32 %v2296, %v2551
    %v2787 = vadd.f32 %v2297, %v2552
    %v2788 = vadd.f32 %v2298, %v2553
    %2789 = vset.pattern.permute.xlu0 3
    %2790 = vperm.xlu0 %2789, %v410
    %v2791 = vpop.permute.xlu0 %2790
    %2793 = vset.pattern.permute.xlu0 3
    %2794 = vperm.xlu0 %2793, %v411
    %v2795 = vpop.permute.xlu0 %2794
    %2797 = vset.pattern.permute.xlu0 3
    %2798 = vperm.xlu0 %2797, %v412
    %v2799 = vpop.permute.xlu0 %2798
    %2801 = vset.pattern.permute.xlu0 3
    %2802 = vperm.xlu0 %2801, %v413
    %v2803 = vpop.permute.xlu0 %2802
    %2805 = vset.pattern.permute.xlu0 3
    %2806 = vperm.xlu0 %2805, %v414
    %v2807 = vpop.permute.xlu0 %2806
    %v2809 = vadd.f32 %v2554, %v2791
    %v2810 = vadd.f32 %v2555, %v2791
    %v2811 = vadd.f32 %v2556, %v2791
    %v2812 = vadd.f32 %v2557, %v2791
    %v2813 = vadd.f32 %v2558, %v2791
    %v2814 = vadd.f32 %v2559, %v2791
    %v2815 = vadd.f32 %v2560, %v2791
    %v2816 = vadd.f32 %v2561, %v2791
    %v2817 = vadd.f32 %v2562, %v2791
    %v2818 = vadd.f32 %v2563, %v2791
    %v2819 = vadd.f32 %v2564, %v2791
    %v2820 = vadd.f32 %v2565, %v2791
    %v2821 = vadd.f32 %v2566, %v2791
    %v2822 = vadd.f32 %v2567, %v2791
    %v2823 = vadd.f32 %v2568, %v2791
    %v2824 = vadd.f32 %v2569, %v2791
    %v2825 = vadd.f32 %v2570, %v2791
    %v2826 = vadd.f32 %v2571, %v2791
    %v2827 = vadd.f32 %v2572, %v2791
    %v2828 = vadd.f32 %v2573, %v2791
    %v2829 = vadd.f32 %v2574, %v2791
    %v2830 = vadd.f32 %v2575, %v2791
    %v2831 = vadd.f32 %v2576, %v2791
    %v2832 = vadd.f32 %v2577, %v2791
    %v2833 = vadd.f32 %v2578, %v2791
    %v2834 = vadd.f32 %v2579, %v2791
    %v2835 = vadd.f32 %v2580, %v2791
    %v2836 = vadd.f32 %v2581, %v2791
    %v2837 = vadd.f32 %v2582, %v2791
    %v2838 = vadd.f32 %v2583, %v2791
    %v2839 = vadd.f32 %v2584, %v2791
    %v2840 = vadd.f32 %v2585, %v2791
    %v2841 = vadd.f32 %v2586, %v2791
    %v2842 = vadd.f32 %v2587, %v2791
    %v2843 = vadd.f32 %v2588, %v2791
    %v2844 = vadd.f32 %v2589, %v2791
    %v2845 = vadd.f32 %v2590, %v2791
    %v2846 = vadd.f32 %v2591, %v2791
    %v2847 = vadd.f32 %v2592, %v2791
    %v2848 = vadd.f32 %v2593, %v2791
    %v2849 = vadd.f32 %v2594, %v2791
    %v2850 = vadd.f32 %v2595, %v2791
    %v2851 = vadd.f32 %v2596, %v2791
    %v2852 = vadd.f32 %v2597, %v2791
    %v2853 = vadd.f32 %v2598, %v2791
    %v2854 = vadd.f32 %v2599, %v2791
    %v2855 = vadd.f32 %v2600, %v2791
    %v2856 = vadd.f32 %v2601, %v2795
    %v2857 = vadd.f32 %v2602, %v2795
    %v2858 = vadd.f32 %v2603, %v2795
    %v2859 = vadd.f32 %v2604, %v2795
    %v2860 = vadd.f32 %v2605, %v2795
    %v2861 = vadd.f32 %v2606, %v2795
    %v2862 = vadd.f32 %v2607, %v2795
    %v2863 = vadd.f32 %v2608, %v2795
    %v2864 = vadd.f32 %v2609, %v2795
    %v2865 = vadd.f32 %v2610, %v2795
    %v2866 = vadd.f32 %v2611, %v2795
    %v2867 = vadd.f32 %v2612, %v2795
    %v2868 = vadd.f32 %v2613, %v2795
    %v2869 = vadd.f32 %v2614, %v2795
    %v2870 = vadd.f32 %v2615, %v2795
    %v2871 = vadd.f32 %v2616, %v2795
    %v2872 = vadd.f32 %v2617, %v2795
    %v2873 = vadd.f32 %v2618, %v2795
    %v2874 = vadd.f32 %v2619, %v2795
    %v2875 = vadd.f32 %v2620, %v2795
    %v2876 = vadd.f32 %v2621, %v2795
    %v2877 = vadd.f32 %v2622, %v2795
    %v2878 = vadd.f32 %v2623, %v2795
    %v2879 = vadd.f32 %v2624, %v2795
    %v2880 = vadd.f32 %v2625, %v2795
    %v2881 = vadd.f32 %v2626, %v2795
    %v2882 = vadd.f32 %v2627, %v2795
    %v2883 = vadd.f32 %v2628, %v2795
    %v2884 = vadd.f32 %v2629, %v2795
    %v2885 = vadd.f32 %v2630, %v2795
    %v2886 = vadd.f32 %v2631, %v2795
    %v2887 = vadd.f32 %v2632, %v2795
    %v2888 = vadd.f32 %v2633, %v2795
    %v2889 = vadd.f32 %v2634, %v2795
    %v2890 = vadd.f32 %v2635, %v2795
    %v2891 = vadd.f32 %v2636, %v2795
    %v2892 = vadd.f32 %v2637, %v2795
    %v2893 = vadd.f32 %v2638, %v2795
    %v2894 = vadd.f32 %v2639, %v2795
    %v2895 = vadd.f32 %v2640, %v2795
    %v2896 = vadd.f32 %v2641, %v2795
    %v2897 = vadd.f32 %v2642, %v2795
    %v2898 = vadd.f32 %v2643, %v2795
    %v2899 = vadd.f32 %v2644, %v2795
    %v2900 = vadd.f32 %v2645, %v2795
    %v2901 = vadd.f32 %v2646, %v2795
    %v2902 = vadd.f32 %v2647, %v2795
    %v2903 = vadd.f32 %v2648, %v2799
    %v2904 = vadd.f32 %v2649, %v2799
    %v2905 = vadd.f32 %v2650, %v2799
    %v2906 = vadd.f32 %v2651, %v2799
    %v2907 = vadd.f32 %v2652, %v2799
    %v2908 = vadd.f32 %v2653, %v2799
    %v2909 = vadd.f32 %v2654, %v2799
    %v2910 = vadd.f32 %v2655, %v2799
    %v2911 = vadd.f32 %v2656, %v2799
    %v2912 = vadd.f32 %v2657, %v2799
    %v2913 = vadd.f32 %v2658, %v2799
    %v2914 = vadd.f32 %v2659, %v2799
    %v2915 = vadd.f32 %v2660, %v2799
    %v2916 = vadd.f32 %v2661, %v2799
    %v2917 = vadd.f32 %v2662, %v2799
    %v2918 = vadd.f32 %v2663, %v2799
    %v2919 = vadd.f32 %v2664, %v2799
    %v2920 = vadd.f32 %v2665, %v2799
    %v2921 = vadd.f32 %v2666, %v2799
    %v2922 = vadd.f32 %v2667, %v2799
    %v2923 = vadd.f32 %v2668, %v2799
    %v2924 = vadd.f32 %v2669, %v2799
    %v2925 = vadd.f32 %v2670, %v2799
    %v2926 = vadd.f32 %v2671, %v2799
    %v2927 = vadd.f32 %v2672, %v2799
    %v2928 = vadd.f32 %v2673, %v2799
    %v2929 = vadd.f32 %v2674, %v2799
    %v2930 = vadd.f32 %v2675, %v2799
    %v2931 = vadd.f32 %v2676, %v2799
    %v2932 = vadd.f32 %v2677, %v2799
    %v2933 = vadd.f32 %v2678, %v2799
    %v2934 = vadd.f32 %v2679, %v2799
    %v2935 = vadd.f32 %v2680, %v2799
    %v2936 = vadd.f32 %v2681, %v2799
    %v2937 = vadd.f32 %v2682, %v2799
    %v2938 = vadd.f32 %v2683, %v2799
    %v2939 = vadd.f32 %v2684, %v2799
    %v2940 = vadd.f32 %v2685, %v2799
    %v2941 = vadd.f32 %v2686, %v2799
    %v2942 = vadd.f32 %v2687, %v2799
    %v2943 = vadd.f32 %v2688, %v2799
    %v2944 = vadd.f32 %v2689, %v2799
    %v2945 = vadd.f32 %v2690, %v2799
    %v2946 = vadd.f32 %v2691, %v2799
    %v2947 = vadd.f32 %v2692, %v2799
    %v2948 = vadd.f32 %v2693, %v2799
    %v2949 = vadd.f32 %v2694, %v2799
    %v2950 = vadd.f32 %v2695, %v2803
    %v2951 = vadd.f32 %v2696, %v2803
    %v2952 = vadd.f32 %v2697, %v2803
    %v2953 = vadd.f32 %v2698, %v2803
    %v2954 = vadd.f32 %v2699, %v2803
    %v2955 = vadd.f32 %v2700, %v2803
    %v2956 = vadd.f32 %v2701, %v2803
    %v2957 = vadd.f32 %v2702, %v2803
    %v2958 = vadd.f32 %v2703, %v2803
    %v2959 = vadd.f32 %v2704, %v2803
    %v2960 = vadd.f32 %v2705, %v2803
    %v2961 = vadd.f32 %v2706, %v2803
    %v2962 = vadd.f32 %v2707, %v2803
    %v2963 = vadd.f32 %v2708, %v2803
    %v2964 = vadd.f32 %v2709, %v2803
    %v2965 = vadd.f32 %v2710, %v2803
    %v2966 = vadd.f32 %v2711, %v2803
    %v2967 = vadd.f32 %v2712, %v2803
    %v2968 = vadd.f32 %v2713, %v2803
    %v2969 = vadd.f32 %v2714, %v2803
    %v2970 = vadd.f32 %v2715, %v2803
    %v2971 = vadd.f32 %v2716, %v2803
    %v2972 = vadd.f32 %v2717, %v2803
    %v2973 = vadd.f32 %v2718, %v2803
    %v2974 = vadd.f32 %v2719, %v2803
    %v2975 = vadd.f32 %v2720, %v2803
    %v2976 = vadd.f32 %v2721, %v2803
    %v2977 = vadd.f32 %v2722, %v2803
    %v2978 = vadd.f32 %v2723, %v2803
    %v2979 = vadd.f32 %v2724, %v2803
    %v2980 = vadd.f32 %v2725, %v2803
    %v2981 = vadd.f32 %v2726, %v2803
    %v2982 = vadd.f32 %v2727, %v2803
    %v2983 = vadd.f32 %v2728, %v2803
    %v2984 = vadd.f32 %v2729, %v2803
    %v2985 = vadd.f32 %v2730, %v2803
    %v2986 = vadd.f32 %v2731, %v2803
    %v2987 = vadd.f32 %v2732, %v2803
    %v2988 = vadd.f32 %v2733, %v2803
    %v2989 = vadd.f32 %v2734, %v2803
    %v2990 = vadd.f32 %v2735, %v2803
    %v2991 = vadd.f32 %v2736, %v2803
    %v2992 = vadd.f32 %v2737, %v2803
    %v2993 = vadd.f32 %v2738, %v2803
    %v2994 = vadd.f32 %v2739, %v2803
    %v2995 = vadd.f32 %v2740, %v2803
    %v2996 = vadd.f32 %v2741, %v2803
    %v2997 = vadd.f32 %v2742, %v2807
    %v2998 = vadd.f32 %v2743, %v2807
    %v2999 = vadd.f32 %v2744, %v2807
    %v3000 = vadd.f32 %v2745, %v2807
    %v3001 = vadd.f32 %v2746, %v2807
    %v3002 = vadd.f32 %v2747, %v2807
    %v3003 = vadd.f32 %v2748, %v2807
    %v3004 = vadd.f32 %v2749, %v2807
    %v3005 = vadd.f32 %v2750, %v2807
    %v3006 = vadd.f32 %v2751, %v2807
    %v3007 = vadd.f32 %v2752, %v2807
    %v3008 = vadd.f32 %v2753, %v2807
    %v3009 = vadd.f32 %v2754, %v2807
    %v3010 = vadd.f32 %v2755, %v2807
    %v3011 = vadd.f32 %v2756, %v2807
    %v3012 = vadd.f32 %v2757, %v2807
    %v3013 = vadd.f32 %v2758, %v2807
    %v3014 = vadd.f32 %v2759, %v2807
    %v3015 = vadd.f32 %v2760, %v2807
    %v3016 = vadd.f32 %v2761, %v2807
    %v3017 = vadd.f32 %v2762, %v2807
    %v3018 = vadd.f32 %v2763, %v2807
    %v3019 = vadd.f32 %v2764, %v2807
    %v3020 = vadd.f32 %v2765, %v2807
    %v3021 = vadd.f32 %v2766, %v2807
    %v3022 = vadd.f32 %v2767, %v2807
    %v3023 = vadd.f32 %v2768, %v2807
    %v3024 = vadd.f32 %v2769, %v2807
    %v3025 = vadd.f32 %v2770, %v2807
    %v3026 = vadd.f32 %v2771, %v2807
    %v3027 = vadd.f32 %v2772, %v2807
    %v3028 = vadd.f32 %v2773, %v2807
    %v3029 = vadd.f32 %v2774, %v2807
    %v3030 = vadd.f32 %v2775, %v2807
    %v3031 = vadd.f32 %v2776, %v2807
    %v3032 = vadd.f32 %v2777, %v2807
    %v3033 = vadd.f32 %v2778, %v2807
    %v3034 = vadd.f32 %v2779, %v2807
    %v3035 = vadd.f32 %v2780, %v2807
    %v3036 = vadd.f32 %v2781, %v2807
    %v3037 = vadd.f32 %v2782, %v2807
    %v3038 = vadd.f32 %v2783, %v2807
    %v3039 = vadd.f32 %v2784, %v2807
    %v3040 = vadd.f32 %v2785, %v2807
    %v3041 = vadd.f32 %v2786, %v2807
    %v3042 = vadd.f32 %v2787, %v2807
    %v3043 = vadd.f32 %v2788, %v2807
    %3044 = vst [vmem:[#allocation4] sm:$0xff] %v2809
    %3045 = vst [vmem:[#allocation4 + $0x8] sm:$0xff] %v2810
    %3046 = vst [vmem:[#allocation4 + $0x10] sm:$0xff] %v2811
    %3047 = vst [vmem:[#allocation4 + $0x18] sm:$0xff] %v2812
    %3048 = vst [vmem:[#allocation4 + $0x20] sm:$0xff] %v2813
    %3049 = vst [vmem:[#allocation4 + $0x28] sm:$0xff] %v2814
    %3050 = vst [vmem:[#allocation4 + $0x30] sm:$0xff] %v2815
    %3051 = vst [vmem:[#allocation4 + $0x38] sm:$0xff] %v2816
    %3052 = vst [vmem:[#allocation4 + $0x40] sm:$0xff] %v2817
    %3053 = vst [vmem:[#allocation4 + $0x48] sm:$0xff] %v2818
    %3054 = vst [vmem:[#allocation4 + $0x50] sm:$0xff] %v2819
    %3055 = vst [vmem:[#allocation4 + $0x58] sm:$0xff] %v2820
    %3056 = vst [vmem:[#allocation4 + $0x60] sm:$0xff] %v2821
    %3057 = vst [vmem:[#allocation4 + $0x68] sm:$0xff] %v2822
    %3058 = vst [vmem:[#allocation4 + $0x70] sm:$0xff] %v2823
    %3059 = vst [vmem:[#allocation4 + $0x78] sm:$0xff] %v2824
    %3060 = vst [vmem:[#allocation4 + $0x80] sm:$0xff] %v2825
    %3061 = vst [vmem:[#allocation4 + $0x88] sm:$0xff] %v2826
    %3062 = vst [vmem:[#allocation4 + $0x90] sm:$0xff] %v2827
    %3063 = vst [vmem:[#allocation4 + $0x98] sm:$0xff] %v2828
    %3064 = vst [vmem:[#allocation4 + $0xa0] sm:$0xff] %v2829
    %3065 = vst [vmem:[#allocation4 + $0xa8] sm:$0xff] %v2830
    %3066 = vst [vmem:[#allocation4 + $0xb0] sm:$0xff] %v2831
    %3067 = vst [vmem:[#allocation4 + $0xb8] sm:$0xff] %v2832
    %3068 = vst [vmem:[#allocation4 + $0xc0] sm:$0xff] %v2833
    %3069 = vst [vmem:[#allocation4 + $0xc8] sm:$0xff] %v2834
    %3070 = vst [vmem:[#allocation4 + $0xd0] sm:$0xff] %v2835
    %3071 = vst [vmem:[#allocation4 + $0xd8] sm:$0xff] %v2836
    %3072 = vst [vmem:[#allocation4 + $0xe0] sm:$0xff] %v2837
    %3073 = vst [vmem:[#allocation4 + $0xe8] sm:$0xff] %v2838
    %3074 = vst [vmem:[#allocation4 + $0xf0] sm:$0xff] %v2839
    %3075 = vst [vmem:[#allocation4 + $0xf8] sm:$0xff] %v2840
    %3076 = vst [vmem:[#allocation4 + $0x100] sm:$0xff] %v2841
    %3077 = vst [vmem:[#allocation4 + $0x108] sm:$0xff] %v2842
    %3078 = vst [vmem:[#allocation4 + $0x110] sm:$0xff] %v2843
    %3079 = vst [vmem:[#allocation4 + $0x118] sm:$0xff] %v2844
    %3080 = vst [vmem:[#allocation4 + $0x120] sm:$0xff] %v2845
    %3081 = vst [vmem:[#allocation4 + $0x128] sm:$0xff] %v2846
    %3082 = vst [vmem:[#allocation4 + $0x130] sm:$0xff] %v2847
    %3083 = vst [vmem:[#allocation4 + $0x138] sm:$0xff] %v2848
    %3084 = vst [vmem:[#allocation4 + $0x140] sm:$0xff] %v2849
    %3085 = vst [vmem:[#allocation4 + $0x148] sm:$0xff] %v2850
    %3086 = vst [vmem:[#allocation4 + $0x150] sm:$0xff] %v2851
    %3087 = vst [vmem:[#allocation4 + $0x158] sm:$0xff] %v2852
    %3088 = vst [vmem:[#allocation4 + $0x160] sm:$0xff] %v2853
    %3089 = vst [vmem:[#allocation4 + $0x168] sm:$0xff] %v2854
    %3090 = vst [vmem:[#allocation4 + $0x170] sm:$0xff] %v2855
    %3091 = vst [vmem:[#allocation4 + $0x178] sm:$0xff] %v2856
    %3092 = vst [vmem:[#allocation4 + $0x180] sm:$0xff] %v2857
    %3093 = vst [vmem:[#allocation4 + $0x188] sm:$0xff] %v2858
    %3094 = vst [vmem:[#allocation4 + $0x190] sm:$0xff] %v2859
    %3095 = vst [vmem:[#allocation4 + $0x198] sm:$0xff] %v2860
    %3096 = vst [vmem:[#allocation4 + $0x1a0] sm:$0xff] %v2861
    %3097 = vst [vmem:[#allocation4 + $0x1a8] sm:$0xff] %v2862
    %3098 = vst [vmem:[#allocation4 + $0x1b0] sm:$0xff] %v2863
    %3099 = vst [vmem:[#allocation4 + $0x1b8] sm:$0xff] %v2864
    %3100 = vst [vmem:[#allocation4 + $0x1c0] sm:$0xff] %v2865
    %3101 = vst [vmem:[#allocation4 + $0x1c8] sm:$0xff] %v2866
    %3102 = vst [vmem:[#allocation4 + $0x1d0] sm:$0xff] %v2867
    %3103 = vst [vmem:[#allocation4 + $0x1d8] sm:$0xff] %v2868
    %3104 = vst [vmem:[#allocation4 + $0x1e0] sm:$0xff] %v2869
    %3105 = vst [vmem:[#allocation4 + $0x1e8] sm:$0xff] %v2870
    %3106 = vst [vmem:[#allocation4 + $0x1f0] sm:$0xff] %v2871
    %3107 = vst [vmem:[#allocation4 + $0x1f8] sm:$0xff] %v2872
    %3108 = vst [vmem:[#allocation4 + $0x200] sm:$0xff] %v2873
    %3109 = vst [vmem:[#allocation4 + $0x208] sm:$0xff] %v2874
    %3110 = vst [vmem:[#allocation4 + $0x210] sm:$0xff] %v2875
    %3111 = vst [vmem:[#allocation4 + $0x218] sm:$0xff] %v2876
    %3112 = vst [vmem:[#allocation4 + $0x220] sm:$0xff] %v2877
    %3113 = vst [vmem:[#allocation4 + $0x228] sm:$0xff] %v2878
    %3114 = vst [vmem:[#allocation4 + $0x230] sm:$0xff] %v2879
    %3115 = vst [vmem:[#allocation4 + $0x238] sm:$0xff] %v2880
    %3116 = vst [vmem:[#allocation4 + $0x240] sm:$0xff] %v2881
    %3117 = vst [vmem:[#allocation4 + $0x248] sm:$0xff] %v2882
    %3118 = vst [vmem:[#allocation4 + $0x250] sm:$0xff] %v2883
    %3119 = vst [vmem:[#allocation4 + $0x258] sm:$0xff] %v2884
    %3120 = vst [vmem:[#allocation4 + $0x260] sm:$0xff] %v2885
    %3121 = vst [vmem:[#allocation4 + $0x268] sm:$0xff] %v2886
    %3122 = vst [vmem:[#allocation4 + $0x270] sm:$0xff] %v2887
    %3123 = vst [vmem:[#allocation4 + $0x278] sm:$0xff] %v2888
    %3124 = vst [vmem:[#allocation4 + $0x280] sm:$0xff] %v2889
    %3125 = vst [vmem:[#allocation4 + $0x288] sm:$0xff] %v2890
    %3126 = vst [vmem:[#allocation4 + $0x290] sm:$0xff] %v2891
    %3127 = vst [vmem:[#allocation4 + $0x298] sm:$0xff] %v2892
    %3128 = vst [vmem:[#allocation4 + $0x2a0] sm:$0xff] %v2893
    %3129 = vst [vmem:[#allocation4 + $0x2a8] sm:$0xff] %v2894
    %3130 = vst [vmem:[#allocation4 + $0x2b0] sm:$0xff] %v2895
    %3131 = vst [vmem:[#allocation4 + $0x2b8] sm:$0xff] %v2896
    %3132 = vst [vmem:[#allocation4 + $0x2c0] sm:$0xff] %v2897
    %3133 = vst [vmem:[#allocation4 + $0x2c8] sm:$0xff] %v2898
    %3134 = vst [vmem:[#allocation4 + $0x2d0] sm:$0xff] %v2899
    %3135 = vst [vmem:[#allocation4 + $0x2d8] sm:$0xff] %v2900
    %3136 = vst [vmem:[#allocation4 + $0x2e0] sm:$0xff] %v2901
    %3137 = vst [vmem:[#allocation4 + $0x2e8] sm:$0xff] %v2902
    %3138 = vst [vmem:[#allocation4 + $0x2f0] sm:$0xff] %v2903
    %3139 = vst [vmem:[#allocation4 + $0x2f8] sm:$0xff] %v2904
    %3140 = vst [vmem:[#allocation4 + $0x300] sm:$0xff] %v2905
    %3141 = vst [vmem:[#allocation4 + $0x308] sm:$0xff] %v2906
    %3142 = vst [vmem:[#allocation4 + $0x310] sm:$0xff] %v2907
    %3143 = vst [vmem:[#allocation4 + $0x318] sm:$0xff] %v2908
    %3144 = vst [vmem:[#allocation4 + $0x320] sm:$0xff] %v2909
    %3145 = vst [vmem:[#allocation4 + $0x328] sm:$0xff] %v2910
    %3146 = vst [vmem:[#allocation4 + $0x330] sm:$0xff] %v2911
    %3147 = vst [vmem:[#allocation4 + $0x338] sm:$0xff] %v2912
    %3148 = vst [vmem:[#allocation4 + $0x340] sm:$0xff] %v2913
    %3149 = vst [vmem:[#allocation4 + $0x348] sm:$0xff] %v2914
    %3150 = vst [vmem:[#allocation4 + $0x350] sm:$0xff] %v2915
    %3151 = vst [vmem:[#allocation4 + $0x358] sm:$0xff] %v2916
    %3152 = vst [vmem:[#allocation4 + $0x360] sm:$0xff] %v2917
    %3153 = vst [vmem:[#allocation4 + $0x368] sm:$0xff] %v2918
    %3154 = vst [vmem:[#allocation4 + $0x370] sm:$0xff] %v2919
    %3155 = vst [vmem:[#allocation4 + $0x378] sm:$0xff] %v2920
    %3156 = vst [vmem:[#allocation4 + $0x380] sm:$0xff] %v2921
    %3157 = vst [vmem:[#allocation4 + $0x388] sm:$0xff] %v2922
    %3158 = vst [vmem:[#allocation4 + $0x390] sm:$0xff] %v2923
    %3159 = vst [vmem:[#allocation4 + $0x398] sm:$0xff] %v2924
    %3160 = vst [vmem:[#allocation4 + $0x3a0] sm:$0xff] %v2925
    %3161 = vst [vmem:[#allocation4 + $0x3a8] sm:$0xff] %v2926
    %3162 = vst [vmem:[#allocation4 + $0x3b0] sm:$0xff] %v2927
    %3163 = vst [vmem:[#allocation4 + $0x3b8] sm:$0xff] %v2928
    %3164 = vst [vmem:[#allocation4 + $0x3c0] sm:$0xff] %v2929
    %3165 = vst [vmem:[#allocation4 + $0x3c8] sm:$0xff] %v2930
    %3166 = vst [vmem:[#allocation4 + $0x3d0] sm:$0xff] %v2931
    %3167 = vst [vmem:[#allocation4 + $0x3d8] sm:$0xff] %v2932
    %3168 = vst [vmem:[#allocation4 + $0x3e0] sm:$0xff] %v2933
    %3169 = vst [vmem:[#allocation4 + $0x3e8] sm:$0xff] %v2934
    %3170 = vst [vmem:[#allocation4 + $0x3f0] sm:$0xff] %v2935
    %3171 = vst [vmem:[#allocation4 + $0x3f8] sm:$0xff] %v2936
    %3172 = vst [vmem:[#allocation4 + $0x400] sm:$0xff] %v2937
    %3173 = vst [vmem:[#allocation4 + $0x408] sm:$0xff] %v2938
    %3174 = vst [vmem:[#allocation4 + $0x410] sm:$0xff] %v2939
    %3175 = vst [vmem:[#allocation4 + $0x418] sm:$0xff] %v2940
    %3176 = vst [vmem:[#allocation4 + $0x420] sm:$0xff] %v2941
    %3177 = vst [vmem:[#allocation4 + $0x428] sm:$0xff] %v2942
    %3178 = vst [vmem:[#allocation4 + $0x430] sm:$0xff] %v2943
    %3179 = vst [vmem:[#allocation4 + $0x438] sm:$0xff] %v2944
    %3180 = vst [vmem:[#allocation4 + $0x440] sm:$0xff] %v2945
    %3181 = vst [vmem:[#allocation4 + $0x448] sm:$0xff] %v2946
    %3182 = vst [vmem:[#allocation4 + $0x450] sm:$0xff] %v2947
    %3183 = vst [vmem:[#allocation4 + $0x458] sm:$0xff] %v2948
    %3184 = vst [vmem:[#allocation4 + $0x460] sm:$0xff] %v2949
    %3185 = vst [vmem:[#allocation4 + $0x468] sm:$0xff] %v2950
    %3186 = vst [vmem:[#allocation4 + $0x470] sm:$0xff] %v2951
    %3187 = vst [vmem:[#allocation4 + $0x478] sm:$0xff] %v2952
    %3188 = vst [vmem:[#allocation4 + $0x480] sm:$0xff] %v2953
    %3189 = vst [vmem:[#allocation4 + $0x488] sm:$0xff] %v2954
    %3190 = vst [vmem:[#allocation4 + $0x490] sm:$0xff] %v2955
    %3191 = vst [vmem:[#allocation4 + $0x498] sm:$0xff] %v2956
    %3192 = vst [vmem:[#allocation4 + $0x4a0] sm:$0xff] %v2957
    %3193 = vst [vmem:[#allocation4 + $0x4a8] sm:$0xff] %v2958
    %3194 = vst [vmem:[#allocation4 + $0x4b0] sm:$0xff] %v2959
    %3195 = vst [vmem:[#allocation4 + $0x4b8] sm:$0xff] %v2960
    %3196 = vst [vmem:[#allocation4 + $0x4c0] sm:$0xff] %v2961
    %3197 = vst [vmem:[#allocation4 + $0x4c8] sm:$0xff] %v2962
    %3198 = vst [vmem:[#allocation4 + $0x4d0] sm:$0xff] %v2963
    %3199 = vst [vmem:[#allocation4 + $0x4d8] sm:$0xff] %v2964
    %3200 = vst [vmem:[#allocation4 + $0x4e0] sm:$0xff] %v2965
    %3201 = vst [vmem:[#allocation4 + $0x4e8] sm:$0xff] %v2966
    %3202 = vst [vmem:[#allocation4 + $0x4f0] sm:$0xff] %v2967
    %3203 = vst [vmem:[#allocation4 + $0x4f8] sm:$0xff] %v2968
    %3204 = vst [vmem:[#allocation4 + $0x500] sm:$0xff] %v2969
    %3205 = vst [vmem:[#allocation4 + $0x508] sm:$0xff] %v2970
    %3206 = vst [vmem:[#allocation4 + $0x510] sm:$0xff] %v2971
    %3207 = vst [vmem:[#allocation4 + $0x518] sm:$0xff] %v2972
    %3208 = vst [vmem:[#allocation4 + $0x520] sm:$0xff] %v2973
    %3209 = vst [vmem:[#allocation4 + $0x528] sm:$0xff] %v2974
    %3210 = vst [vmem:[#allocation4 + $0x530] sm:$0xff] %v2975
    %3211 = vst [vmem:[#allocation4 + $0x538] sm:$0xff] %v2976
    %3212 = vst [vmem:[#allocation4 + $0x540] sm:$0xff] %v2977
    %3213 = vst [vmem:[#allocation4 + $0x548] sm:$0xff] %v2978
    %3214 = vst [vmem:[#allocation4 + $0x550] sm:$0xff] %v2979
    %3215 = vst [vmem:[#allocation4 + $0x558] sm:$0xff] %v2980
    %3216 = vst [vmem:[#allocation4 + $0x560] sm:$0xff] %v2981
    %3217 = vst [vmem:[#allocation4 + $0x568] sm:$0xff] %v2982
    %3218 = vst [vmem:[#allocation4 + $0x570] sm:$0xff] %v2983
    %3219 = vst [vmem:[#allocation4 + $0x578] sm:$0xff] %v2984
    %3220 = vst [vmem:[#allocation4 + $0x580] sm:$0xff] %v2985
    %3221 = vst [vmem:[#allocation4 + $0x588] sm:$0xff] %v2986
    %3222 = vst [vmem:[#allocation4 + $0x590] sm:$0xff] %v2987
    %3223 = vst [vmem:[#allocation4 + $0x598] sm:$0xff] %v2988
    %3224 = vst [vmem:[#allocation4 + $0x5a0] sm:$0xff] %v2989
    %3225 = vst [vmem:[#allocation4 + $0x5a8] sm:$0xff] %v2990
    %3226 = vst [vmem:[#allocation4 + $0x5b0] sm:$0xff] %v2991
    %3227 = vst [vmem:[#allocation4 + $0x5b8] sm:$0xff] %v2992
    %3228 = vst [vmem:[#allocation4 + $0x5c0] sm:$0xff] %v2993
    %3229 = vst [vmem:[#allocation4 + $0x5c8] sm:$0xff] %v2994
    %3230 = vst [vmem:[#allocation4 + $0x5d0] sm:$0xff] %v2995
    %3231 = vst [vmem:[#allocation4 + $0x5d8] sm:$0xff] %v2996
    %3232 = vst [vmem:[#allocation4 + $0x5e0] sm:$0xf] %v2997
    %3233 = vst [vmem:[#allocation4 + $0x5e8] sm:$0xf] %v2998
    %3234 = vst [vmem:[#allocation4 + $0x5f0] sm:$0xf] %v2999
    %3235 = vst [vmem:[#allocation4 + $0x5f8] sm:$0xf] %v3000
    %3236 = vst [vmem:[#allocation4 + $0x600] sm:$0xf] %v3001
    %3237 = vst [vmem:[#allocation4 + $0x608] sm:$0xf] %v3002
    %3238 = vst [vmem:[#allocation4 + $0x610] sm:$0xf] %v3003
    %3239 = vst [vmem:[#allocation4 + $0x618] sm:$0xf] %v3004
    %3240 = vst [vmem:[#allocation4 + $0x620] sm:$0xf] %v3005
    %3241 = vst [vmem:[#allocation4 + $0x628] sm:$0xf] %v3006
    %3242 = vst [vmem:[#allocation4 + $0x630] sm:$0xf] %v3007
    %3243 = vst [vmem:[#allocation4 + $0x638] sm:$0xf] %v3008
    %3244 = vst [vmem:[#allocation4 + $0x640] sm:$0xf] %v3009
    %3245 = vst [vmem:[#allocation4 + $0x648] sm:$0xf] %v3010
    %3246 = vst [vmem:[#allocation4 + $0x650] sm:$0xf] %v3011
    %3247 = vst [vmem:[#allocation4 + $0x658] sm:$0xf] %v3012
    %3248 = vst [vmem:[#allocation4 + $0x660] sm:$0xf] %v3013
    %3249 = vst [vmem:[#allocation4 + $0x668] sm:$0xf] %v3014
    %3250 = vst [vmem:[#allocation4 + $0x670] sm:$0xf] %v3015
    %3251 = vst [vmem:[#allocation4 + $0x678] sm:$0xf] %v3016
    %3252 = vst [vmem:[#allocation4 + $0x680] sm:$0xf] %v3017
    %3253 = vst [vmem:[#allocation4 + $0x688] sm:$0xf] %v3018
    %3254 = vst [vmem:[#allocation4 + $0x690] sm:$0xf] %v3019
    %3255 = vst [vmem:[#allocation4 + $0x698] sm:$0xf] %v3020
    %3256 = vst [vmem:[#allocation4 + $0x6a0] sm:$0xf] %v3021
    %3257 = vst [vmem:[#allocation4 + $0x6a8] sm:$0xf] %v3022
    %3258 = vst [vmem:[#allocation4 + $0x6b0] sm:$0xf] %v3023
    %3259 = vst [vmem:[#allocation4 + $0x6b8] sm:$0xf] %v3024
    %3260 = vst [vmem:[#allocation4 + $0x6c0] sm:$0xf] %v3025
    %3261 = vst [vmem:[#allocation4 + $0x6c8] sm:$0xf] %v3026
    %3262 = vst [vmem:[#allocation4 + $0x6d0] sm:$0xf] %v3027
    %3263 = vst [vmem:[#allocation4 + $0x6d8] sm:$0xf] %v3028
    %3264 = vst [vmem:[#allocation4 + $0x6e0] sm:$0xf] %v3029
    %3265 = vst [vmem:[#allocation4 + $0x6e8] sm:$0xf] %v3030
    %3266 = vst [vmem:[#allocation4 + $0x6f0] sm:$0xf] %v3031
    %3267 = vst [vmem:[#allocation4 + $0x6f8] sm:$0xf] %v3032
    %3268 = vst [vmem:[#allocation4 + $0x700] sm:$0xf] %v3033
    %3269 = vst [vmem:[#allocation4 + $0x708] sm:$0xf] %v3034
    %3270 = vst [vmem:[#allocation4 + $0x710] sm:$0xf] %v3035
    %3271 = vst [vmem:[#allocation4 + $0x718] sm:$0xf] %v3036
    %3272 = vst [vmem:[#allocation4 + $0x720] sm:$0xf] %v3037
    %3273 = vst [vmem:[#allocation4 + $0x728] sm:$0xf] %v3038
    %3274 = vst [vmem:[#allocation4 + $0x730] sm:$0xf] %v3039
    %3275 = vst [vmem:[#allocation4 + $0x738] sm:$0xf] %v3040
    %3276 = vst [vmem:[#allocation4 + $0x740] sm:$0xf] %v3041
    %3277 = vst [vmem:[#allocation4 + $0x748] sm:$0xf] %v3042
    %3278 = vst [vmem:[#allocation4 + $0x750] sm:$0xf] %v3043
    // Predicated region
    $region10: #{tpu_custom_call.1} parent=1 // pred_check
      _
    $region11: #{tpu_custom_call.1} parent=1 // pred_check_branch
      %3280 = sbr.rel (0) target = $region13
    $region12: #{tpu_custom_call.1} parent=1 // pred_region
      %3282 = vsyncadd [#allocation3], 0
      %s3283 = sshll.u32 [#allocation2], 4
      %s3284 = int_to_ptr.vmem [resolvable:$true] %s3283
      %s3285 = sshll.u32 %s2, 4
      %s3286 = int_to_ptr.hbm [resolvable:$true] %s3285
      %3291 = dma.vmem_to_hbm [thread:$0]  %s3284, 5120, %s3286, [#allocation3], 640, 640, 40
    $region13: #{tpu_custom_call.1} parent=1 // pred_fallthru
      _
    // Predicated region
    $region14: #{tpu_custom_call.1} parent=1 // pred_check
      _
    $region15: #{tpu_custom_call.1} parent=1 // pred_check_branch
      %3293 = sbr.rel (0) target = $region17
    $region16: #{tpu_custom_call.1} parent=1 // pred_region
      %3295 = vsyncadd [#allocation5], 0
      %s3296 = sshll.u32 [#allocation4], 4
      %s3297 = int_to_ptr.vmem [resolvable:$true] %s3296
      %s3298 = sshll.u32 %s3, 4
      %s3299 = int_to_ptr.hbm [resolvable:$true] %s3298
      %3304 = dma.vmem_to_hbm [thread:$0]  %s3297, 30080, %s3299, [#allocation5], 6016, 6016, 376
    $region17: #{tpu_custom_call.1} parent=1 // pred_fallthru
      _
    // Predicated region
    $region18: #{tpu_custom_call.1} parent=1 // pred_check
      _
    $region19: #{tpu_custom_call.1} parent=1 // pred_check_branch
      %3306 = sbr.rel (0) target = $region21
    $region20: #{tpu_custom_call.1} parent=1 // pred_region
      %3308 = dma.done [#allocation3], 5120
    $region21: #{tpu_custom_call.1} parent=1 // pred_fallthru
      _
    // Predicated region
    $region22: #{tpu_custom_call.1} parent=1 // pred_check
      _
    $region23: #{tpu_custom_call.1} parent=1 // pred_check_branch
      %3310 = sbr.rel (0) target = $region25
    $region24: #{tpu_custom_call.1} parent=1 // pred_region
      %3312 = dma.done [#allocation5], 30080
    $region25: #{tpu_custom_call.1} parent=1 // pred_fallthru
      _
    %3313 = vsyncpa [#allocation3], 1
    %3314 = vsyncpa [#allocation5], 1

</llo_original>
